<compile_context>
chip_gen: v5e
topology: v5e:2x2
jax: 0.10.0
libtpu: 0.0.40
codegen_flags: <defaults>
</compile_context>

<pallas_src>
import functools
import math

import jax
import jax.numpy as jnp
from jax.experimental import pallas as pl
from jax.experimental.pallas import tpu as pltpu


def _round_up(x, m):
    return (x + m - 1) // m * m


def _lcm(a, b):
    return a * b // math.gcd(a, b)


# ----------------------------- Pallas kernels ------------------------------

def _matmul_bias_act_kernel(a_ref, b_ref, bias_ref, o_ref, acc_ref, *, relu):
    # a: (tm, tk) bf16, b: (tk, N) bf16, bias: (1, N) f32, acc: (tm, N) f32
    @pl.when(pl.program_id(1) == 0)
    def _init():
        acc_ref[...] = jnp.zeros_like(acc_ref)

    acc_ref[...] += jnp.dot(a_ref[...], b_ref[...],
                            preferred_element_type=jnp.float32)

    @pl.when(pl.program_id(1) == pl.num_programs(1) - 1)
    def _finalize():
        out = acc_ref[...] + bias_ref[...]
        if relu:
            out = jnp.maximum(out, 0.0)
        o_ref[...] = out.astype(o_ref.dtype)


def matmul_bias_act(a, b, bias, *, relu=False, out_dtype=jnp.float32):
    """Fused (M,K)x(K,N) + bias (+ReLU) on the MXU.

    `b` / `bias` are pre-padded lane-dense (K, N multiples of 128); `a`'s K
    must match. M is tiled on a 'parallel' grid axis, K on an 'arbitrary'
    reduction axis with an f32 VMEM accumulator.
    """
    M, K = a.shape
    Kb, N = b.shape
    assert K == Kb, (K, Kb)
    assert K % 128 == 0 and N % 128 == 0, (K, N)
    assert bias.shape == (1, N), bias.shape

    # M tiling: >=2 parallel steps for moderate M (v7x has 2 TCs), larger
    # streaming tiles for big M (v6e HBM streaming).
    if M < 512:
        tm = _round_up(max(M, 8), 8)
    elif M < 2048:
        tm = 256
    elif M < 8192:
        tm = 512
    else:
        tm = 1024
    Mp = _round_up(M, tm)
    if Mp != M:
        a = jnp.pad(a, ((0, Mp - M), (0, 0)))
    a = a.astype(jnp.bfloat16)
    b = b.astype(jnp.bfloat16)

    # K tiling: keeps (tm,tk)+(tk,N) tiles VMEM-safe when K scales with image
    # area (the global-style FC).
    if K <= 1024:
        tk = K
    else:
        tk = next(c for c in (1024, 512, 256, 128) if K % c == 0)
    nk = K // tk

    # Grid-invariant blocks get single buffering (halves their VMEM use).
    w_kwargs = dict(pipeline_mode=pl.Buffered(1)) if nk == 1 else {}

    kernel = functools.partial(_matmul_bias_act_kernel, relu=relu)
    out = pl.pallas_call(
        kernel,
        out_shape=jax.ShapeDtypeStruct((Mp, N), out_dtype),
        grid=(Mp // tm, nk),
        in_specs=[
            pl.BlockSpec((tm, tk), lambda i, k: (i, k)),
            pl.BlockSpec((tk, N), lambda i, k: (k, 0), **w_kwargs),
            pl.BlockSpec((1, N), lambda i, k: (0, 0),
                         pipeline_mode=pl.Buffered(1)),
        ],
        out_specs=pl.BlockSpec((tm, N), lambda i, k: (i, 0)),
        scratch_shapes=[pltpu.VMEM((tm, N), jnp.float32)],
        compiler_params=pltpu.CompilerParams(
            dimension_semantics=("parallel", "arbitrary"),
            vmem_limit_bytes=48 * 1024 * 1024),
    )(a, b, bias)
    return out[:M]


def _adaconv_kernel(p_ref, w_ref, o_ref, *, kk, relu):
    # p: (KK, tr, CL) bf16 taps, w: (KK, CL) f32, o: (tr, CL).
    # Unrolled lane/sublane-dense VPU FMAs; weight row broadcast along sublanes.
    acc = p_ref[0].astype(jnp.float32) * w_ref[pl.ds(0, 1), :]
    for k in range(1, kk):
        acc = acc + p_ref[k].astype(jnp.float32) * w_ref[pl.ds(k, 1), :]
    if relu:
        acc = jnp.maximum(acc, 0.0)
    o_ref[...] = acc.astype(o_ref.dtype)


def adaptive_depthwise_conv(x, w, *, relu=True, out_dtype=jnp.bfloat16):
    """x: (B, H, W, C) NHWC; w: (B, C, kh, kw) per-sample depthwise kernels.

    Stride 1, zero padding kh//2 (matches F.conv2d defaults for odd k).
    """
    B, H, W, C = x.shape
    _, Cw, kh, kw = w.shape
    assert Cw == C, (Cw, C)
    pad = kh // 2
    kk = kh * kw

    x = x.astype(jnp.bfloat16)
    xp = jnp.pad(x, ((0, 0), (pad, pad), (pad, pad), (0, 0)))

    L = H * W * C
    taps = [xp[:, i:i + H, j:j + W, :].reshape(B, 1, L)
            for i in range(kh) for j in range(kw)]
    p = jnp.concatenate(taps, axis=1)                        # (B, KK, L) bf16
    # TODO(synk): replace the KK-fold tap slab with shifted in-kernel reads /
    # halo DMA at large resolutions so each activation byte is read once.

    # Lane width: multiple of 128 AND of C, so the depthwise weight pattern
    # (period C along the flattened (H,W,C) axis) is one fixed lane vector.
    CL = _lcm(C, 128)
    R = pl.cdiv(L, CL)
    if R <= 128:
        tr, Rp = R, R            # single full-dim block (no sublane constraint)
    else:
        tr = 128
        Rp = _round_up(R, tr)
    Lp = Rp * CL
    if Lp != L:
        p = jnp.pad(p, ((0, 0), (0, 0), (0, Lp - L)))
    p = p.reshape(B, kk, Rp, CL)

    # Raw per-sample weights tiled ONCE to the lane width (tiny, grid-invariant)
    # instead of materializing a (KK,B,H*W,C) broadcast slab in HBM.
    wk = jnp.transpose(w.reshape(B, C, kk), (0, 2, 1))       # (B, KK, C)
    w2 = jnp.tile(wk.astype(jnp.float32), (1, 1, CL // C))   # (B, KK, CL)

    kernel = functools.partial(_adaconv_kernel, kk=kk, relu=relu)
    out = pl.pallas_call(
        kernel,
        out_shape=jax.ShapeDtypeStruct((B, Rp, CL), out_dtype),
        grid=(B, Rp // tr),
        in_specs=[
            pl.BlockSpec((None, kk, tr, CL), lambda b, i: (b, 0, i, 0)),
            pl.BlockSpec((None, kk, CL), lambda b, i: (b, 0, 0)),
        ],
        out_specs=pl.BlockSpec((None, tr, CL), lambda b, i: (b, i, 0)),
        compiler_params=pltpu.CompilerParams(
            dimension_semantics=("parallel", "parallel")),
    )(p, w2)
    return out.reshape(B, Lp)[:, :L].reshape(B, H, W, C)


# ------------------------------ JAX glue ops --------------------------------

def upsample_nearest2x(x):
    # NHWC nearest-neighbor 2x — pure layout op, left to XLA.
    x = jnp.repeat(x, 2, axis=1)
    return jnp.repeat(x, 2, axis=2)


# --------------------------------- Layers -----------------------------------

class Conv2d:
    """PyTorch-semantics Conv2d on NHWC activations.

    Weights are pre-reshaped / zero-padded / bf16-cast once at init as
    (round_up(k*k*Cin, 128), round_up(Cout, 128)).
    """

    def __init__(self, key, cin, cout, k, *, stride=1, pad=1, relu=False):
        self.cin, self.cout, self.k = cin, cout, k
        self.stride, self.pad, self.relu = stride, pad, relu
        w = jax.random.normal(key, (k, k, cin, cout), jnp.float32) * 0.05
        b = jnp.zeros((cout,), jnp.float32)
        K = k * k * cin
        self.kdim = K
        Kp, Np = _round_up(K, 128), _round_up(cout, 128)
        wp = jnp.zeros((Kp, Np), jnp.float32).at[:K, :cout].set(w.reshape(K, cout))
        self.w_packed = wp.astype(jnp.bfloat16)
        self.bias_packed = jnp.zeros((1, Np), jnp.float32).at[0, :cout].set(b)

    def __call__(self, x, out_dtype=jnp.bfloat16):
        B, H, W, Cin = x.shape
        assert Cin == self.cin, (Cin, self.cin)
        k, s, pd = self.k, self.stride, self.pad
        Ho = (H + 2 * pd - k) // s + 1
        Wo = (W + 2 * pd - k) // s + 1
        # im2col lands in HBM at 2 B/elem.
        x = x.astype(jnp.bfloat16)
        xp = jnp.pad(x, ((0, 0), (pd, pd), (pd, pd), (0, 0)))
        # NHWC im2col: concat taps along the channel (lane) axis, no transposes.
        # TODO(synk): fold the k*k taps into an in-kernel K-reduction (halo DMA)
        # to avoid the k*k activation expansion (v5e/v6e HBM win).
        taps = [xp[:, i:i + s * Ho:s, j:j + s * Wo:s, :]
                for i in range(k) for j in range(k)]
        patches = jnp.concatenate(taps, axis=-1)          # (B, Ho, Wo, k*k*Cin)
        a = patches.reshape(B * Ho * Wo, self.kdim)
        Kp = self.w_packed.shape[0]
        if Kp != self.kdim:
            a = jnp.pad(a, ((0, 0), (0, Kp - self.kdim)))
        out = matmul_bias_act(a, self.w_packed, self.bias_packed,
                              relu=self.relu, out_dtype=out_dtype)
        return out[:, :self.cout].reshape(B, Ho, Wo, self.cout)


class Linear:
    def __init__(self, key, fan_in, fan_out):
        self.fan_in, self.fan_out = fan_in, fan_out
        w = jax.random.normal(key, (fan_in, fan_out), jnp.float32)
        w = w * (1.0 / float(fan_in) ** 0.5)
        Kp, Np = _round_up(fan_in, 128), _round_up(fan_out, 128)
        wp = jnp.zeros((Kp, Np), jnp.float32).at[:fan_in, :fan_out].set(w)
        self.w_packed = wp.astype(jnp.bfloat16)
        self.bias_packed = jnp.zeros((1, Np), jnp.float32)

    def __call__(self, a, out_dtype=jnp.float32):
        M, K = a.shape
        assert K == self.fan_in, (K, self.fan_in)
        Kp = self.w_packed.shape[0]
        if Kp != K:
            a = jnp.pad(a, ((0, 0), (0, Kp - K)))
        out = matmul_bias_act(a, self.w_packed, self.bias_packed,
                              relu=False, out_dtype=out_dtype)
        return out[:, :self.fan_out]


# --------------------------------- Modules ----------------------------------

class Encoder:
    scale_factor = 4

    def __init__(self, key, in_ch=3, style_dim=32):
        k1, k2, k3 = jax.random.split(key, 3)
        self.conv1 = Conv2d(k1, in_ch, 16, 3, stride=1, pad=1, relu=True)
        self.conv2 = Conv2d(k2, 16, 32, 3, stride=2, pad=1, relu=True)
        self.conv3 = Conv2d(k3, 32, style_dim, 3, stride=2, pad=1, relu=True)

    def freeze(self):
        pass  # forward-only synthetic weights; nothing to freeze

    def __call__(self, x):
        f1 = self.conv1(x)
        f2 = self.conv2(f1)
        f3 = self.conv3(f2)
        return [f1, f2, f3]


class GlobalStyleEncoder:
    def __init__(self, key, style_feat_shape, style_descriptor_shape,
                 fixed_batch_size=None):
        C, H, W = style_feat_shape
        Cd, kh, kw = style_descriptor_shape
        self.desc_shape = style_descriptor_shape
        # TODO(synk): fan-in is flattened in NHWC order; permute if importing
        # trained PyTorch (NCHW-flattened) FC weights.
        self.fc = Linear(key, C * H * W, Cd * kh * kw)

    def __call__(self, style_feat):
        # style_feat: NHWC (B, H, W, C)
        B = style_feat.shape[0]
        a = style_feat.reshape(B, -1)
        w = self.fc(a, out_dtype=jnp.float32)
        Cd, kh, kw = self.desc_shape
        return w.reshape(B, Cd, kh, kw)


class Decoder:
    def __init__(self, key, style_dim, style_kernel, groups=None,
                 fixed_batch_size=None, input_hw=(4, 4)):
        k1, k2, k3 = jax.random.split(key, 3)
        self.conv1 = Conv2d(k1, style_dim, 16, 3, stride=1, pad=1, relu=True)
        self.conv2 = Conv2d(k2, 16, 16, 3, stride=1, pad=1, relu=True)
        self.conv3 = Conv2d(k3, 16, 3, 3, stride=1, pad=1, relu=False)

    def __call__(self, content_feat, w):
        # adaptive (per-sample, depthwise) style convolution + ReLU — Pallas.
        # bf16 output: the next conv casts to bf16 for the MXU anyway.
        x = adaptive_depthwise_conv(content_feat, w, relu=True,
                                    out_dtype=jnp.bfloat16)
        x = self.conv1(x)
        x = upsample_nearest2x(x)
        x = self.conv2(x)
        x = upsample_nearest2x(x)
        x = self.conv3(x, out_dtype=jnp.float32)
        return x


class StyleTransfer:
    def __init__(self, image_shape, style_dim, style_kernel, groups=None,
                 fixed_batch_size=None):
        key = jax.random.PRNGKey(42)
        ke, kg, kd = jax.random.split(key, 3)
        self.image_shape = image_shape
        self.style_dim = style_dim
        self.style_kernel = style_kernel
        self.groups = groups  # TODO(synk): grouped adaptive conv not modeled
        self.fixed_batch_size = fixed_batch_size
        self.encoder = Encoder(ke, in_ch=3, style_dim=style_dim)
        self.encoder.freeze()
        scale = self.encoder.scale_factor
        encoder_hw = (image_shape[0] // scale, image_shape[1] // scale)
        self.global_style_encoder = GlobalStyleEncoder(
            kg,
            style_feat_shape=(style_dim, encoder_hw[0], encoder_hw[1]),
            style_descriptor_shape=(style_dim, style_kernel, style_kernel),
            fixed_batch_size=fixed_batch_size)
        self.decoder = Decoder(kd, style_dim=style_dim, style_kernel=style_kernel,
                               groups=groups, fixed_batch_size=fixed_batch_size,
                               input_hw=encoder_hw)
        self._forward_jit = jax.jit(self._forward_nchw)
        self._forward_feats_jit = jax.jit(self._forward_with_features_nchw)

    # NCHW <-> NHWC conversion only at the model boundary.
    def _encode_both(self, c, s):
        # Single encoder pass over [content; style]: halves pallas_call count
        # and doubles M per matmul grid (MXU occupancy / megacore sharding).
        B = c.shape[0]
        feats = self.encoder(jnp.concatenate([c, s], axis=0))
        content_feats = [f[:B] for f in feats]
        style_feats = [f[B:] for f in feats]
        return content_feats, style_feats

    def _forward_nchw(self, content, style):
        c = jnp.transpose(content, (0, 2, 3, 1))
        s = jnp.transpose(style, (0, 2, 3, 1))
        content_feats, style_feats = self._encode_both(c, s)
        w = self.global_style_encoder(style_feats[-1])
        x = self.decoder(content_feats[-1], w)
        return jnp.transpose(x, (0, 3, 1, 2))

    def forward(self, content, style):
        return self._forward_jit(content, style)

    __call__ = forward

    def _forward_with_features_nchw(self, content, style):
        c = jnp.transpose(content, (0, 2, 3, 1))
        s = jnp.transpose(style, (0, 2, 3, 1))
        content_feats, style_feats = self._encode_both(c, s)
        w = self.global_style_encoder(style_feats[-1])
        x = self.decoder(content_feats[-1], w)
        x_feats = self.encoder(x)
        to_nchw = lambda t: jnp.transpose(t, (0, 3, 1, 2))
        return (to_nchw(x),
                [to_nchw(f) for f in content_feats],
                [to_nchw(f) for f in style_feats],
                [to_nchw(f) for f in x_feats])

    def forward_with_features(self, content, style):
        return self._forward_feats_jit(content, style)


# ----------------------------------- main ------------------------------------

if __name__ == "__main__":
    key = jax.random.PRNGKey(0)
    kc, ks = jax.random.split(key)
    content = jax.random.normal(kc, (2, 3, 16, 16), jnp.float32)
    style = jax.random.normal(ks, (2, 3, 16, 16), jnp.float32)

    model = StyleTransfer(image_shape=(16, 16), style_dim=32, style_kernel=3,
                          groups=32, fixed_batch_size=2)
    out = model(content, style)
    out = jax.block_until_ready(out)
    assert out.shape == (2, 3, 16, 16), out.shape
    assert bool(jnp.all(jnp.isfinite(out)))
    print("KERNEL_OK")
</pallas_src>

<mosaic_0001>
module attributes {stable_mosaic.version = 11 : i64} {
  func.func @_matmul_bias_act_kernel(%arg0: i32, %arg1: i32, %arg2: memref<256x128xbf16, #tpu.memory_space<vmem>>, %arg3: memref<128x128xbf16, #tpu.memory_space<vmem>>, %arg4: memref<1x128xf32, #tpu.memory_space<vmem>>, %arg5: memref<256x128xbf16, #tpu.memory_space<vmem>>, %arg6: memref<256x128xf32, #tpu.memory_space<vmem>>) attributes {dimension_semantics = [#tpu.dimension_semantics<parallel>, #tpu.dimension_semantics<arbitrary>], iteration_bounds = array<i64: 4, 1>, scalar_prefetch = 0 : i64, scratch_operands = 1 : i64, tpu.core_type = #tpu.core_type<tc>, window_params = [{transform_indices = @transform_0, window_bounds = array<i64: 256, 128>}, {pipeline_mode = #tpu.pipeline_mode<synchronous>, transform_indices = @transform_1, window_bounds = array<i64: 128, 128>}, {pipeline_mode = #tpu.pipeline_mode<synchronous>, transform_indices = @transform_2, window_bounds = array<i64: 1, 128>}, {transform_indices = @transform_3, window_bounds = array<i64: 256, 128>}]} {
    %c0_i32 = arith.constant 0 : i32
    %0 = arith.cmpi eq, %arg1, %c0_i32 : i32
    %1 = arith.extui %0 : i1 to i32
    %c0_i32_0 = arith.constant 0 : i32
    %2 = arith.cmpi ne, %1, %c0_i32_0 : i32
    scf.if %2 {
      %cst_10 = arith.constant 0.000000e+00 : f32
      %12 = vector.broadcast %cst_10 : f32 to vector<256x128xf32>
      %c0_11 = arith.constant 0 : index
      %c0_12 = arith.constant 0 : index
      %13 = vector.load %arg6[%c0_11, %c0_12] : memref<256x128xf32, #tpu.memory_space<vmem>>, vector<256x128xf32>
      tpu.vector_store %arg6[%c0_11, %c0_12], %12 {strides = array<i32>} : memref<256x128xf32, #tpu.memory_space<vmem>>, vector<256x128xf32>,
    } else {
    }
    %c0 = arith.constant 0 : index
    %c0_1 = arith.constant 0 : index
    %3 = vector.load %arg6[%c0, %c0_1] : memref<256x128xf32, #tpu.memory_space<vmem>>, vector<256x128xf32>
    %c0_2 = arith.constant 0 : index
    %c0_3 = arith.constant 0 : index
    %4 = vector.load %arg2[%c0_2, %c0_3] : memref<256x128xbf16, #tpu.memory_space<vmem>>, vector<256x128xbf16>
    %c0_4 = arith.constant 0 : index
    %c0_5 = arith.constant 0 : index
    %5 = vector.load %arg3[%c0_4, %c0_5] : memref<128x128xbf16, #tpu.memory_space<vmem>>, vector<128x128xbf16>
    %cst = arith.constant dense<0.000000e+00> : vector<256x128xf32>
    %6 = tpu.matmul %4, %5, %cst {dimension_numbers = #tpu.dot_dimension_numbers<[1], [0], [0], [1], [0, 0, 1, 1], [], []>} : vector<256x128xbf16>, vector<128x128xbf16>, vector<256x128xf32> -> vector<256x128xf32>
    %7 = arith.addf %3, %6 : vector<256x128xf32>
    %c0_6 = arith.constant 0 : index
    %c0_7 = arith.constant 0 : index
    %8 = vector.load %arg6[%c0_6, %c0_7] : memref<256x128xf32, #tpu.memory_space<vmem>>, vector<256x128xf32>
    tpu.vector_store %arg6[%c0_6, %c0_7], %7 {strides = array<i32>} : memref<256x128xf32, #tpu.memory_space<vmem>>, vector<256x128xf32>,
    %c0_i32_8 = arith.constant 0 : i32
    %9 = arith.cmpi eq, %arg1, %c0_i32_8 : i32
    %10 = arith.extui %9 : i1 to i32
    %c0_i32_9 = arith.constant 0 : i32
    %11 = arith.cmpi ne, %10, %c0_i32_9 : i32
    scf.if %11 {
      %c0_10 = arith.constant 0 : index
      %c0_11 = arith.constant 0 : index
      %12 = vector.load %arg6[%c0_10, %c0_11] : memref<256x128xf32, #tpu.memory_space<vmem>>, vector<256x128xf32>
      %c0_12 = arith.constant 0 : index
      %c0_13 = arith.constant 0 : index
      %13 = vector.load %arg4[%c0_12, %c0_13] : memref<1x128xf32, #tpu.memory_space<vmem>>, vector<1x128xf32>
      %14 = vector.broadcast %13 : vector<1x128xf32> to vector<256x128xf32>
      %15 = arith.addf %12, %14 : vector<256x128xf32>
      %cst_14 = arith.constant 0.000000e+00 : f32
      %16 = vector.broadcast %cst_14 : f32 to vector<256x128xf32>
      %17 = arith.maximumf %15, %16 : vector<256x128xf32>
      %18 = arith.truncf %17 : vector<256x128xf32> to vector<256x128xbf16>
      %c0_15 = arith.constant 0 : index
      %c0_16 = arith.constant 0 : index
      %19 = vector.load %arg5[%c0_15, %c0_16] : memref<256x128xbf16, #tpu.memory_space<vmem>>, vector<256x128xbf16>
      tpu.vector_store %arg5[%c0_15, %c0_16], %18 {strides = array<i32>} : memref<256x128xbf16, #tpu.memory_space<vmem>>, vector<256x128xbf16>,
    } else {
    }
    return
  }
  func.func @transform_0(%arg0: i32, %arg1: i32) -> (i32, i32) {
    %c0_i32 = arith.constant 0 : i32
    return %arg0, %arg1 : i32, i32
  }
  func.func @transform_1(%arg0: i32, %arg1: i32) -> (i32, i32) {
    %c0_i32 = arith.constant 0 : i32
    %c0_i32_0 = arith.constant 0 : i32
    return %arg1, %c0_i32 : i32, i32
  }
  func.func @transform_2(%arg0: i32, %arg1: i32) -> (i32, i32) {
    %c0_i32 = arith.constant 0 : i32
    %c0_i32_0 = arith.constant 0 : i32
    %c0_i32_1 = arith.constant 0 : i32
    return %c0_i32, %c0_i32_0 : i32, i32
  }
  func.func @transform_3(%arg0: i32, %arg1: i32) -> (i32, i32) {
    %c0_i32 = arith.constant 0 : i32
    %c0_i32_0 = arith.constant 0 : i32
    return %arg0, %c0_i32 : i32, i32
  }
}

module attributes {stable_mosaic.version = 11 : i64} {
  func.func @_matmul_bias_act_kernel(%arg0: i32, %arg1: i32, %arg2: memref<256x256xbf16, #tpu.memory_space<vmem>>, %arg3: memref<256x128xbf16, #tpu.memory_space<vmem>>, %arg4: memref<1x128xf32, #tpu.memory_space<vmem>>, %arg5: memref<256x128xbf16, #tpu.memory_space<vmem>>, %arg6: memref<256x128xf32, #tpu.memory_space<vmem>>) attributes {dimension_semantics = [#tpu.dimension_semantics<parallel>, #tpu.dimension_semantics<arbitrary>], iteration_bounds = array<i64: 1, 1>, scalar_prefetch = 0 : i64, scratch_operands = 1 : i64, tpu.core_type = #tpu.core_type<tc>, window_params = [{transform_indices = @transform_0, window_bounds = array<i64: 256, 256>}, {pipeline_mode = #tpu.pipeline_mode<synchronous>, transform_indices = @transform_1, window_bounds = array<i64: 256, 128>}, {pipeline_mode = #tpu.pipeline_mode<synchronous>, transform_indices = @transform_2, window_bounds = array<i64: 1, 128>}, {transform_indices = @transform_3, window_bounds = array<i64: 256, 128>}]} {
    %c0_i32 = arith.constant 0 : i32
    %0 = arith.cmpi eq, %arg1, %c0_i32 : i32
    %1 = arith.extui %0 : i1 to i32
    %c0_i32_0 = arith.constant 0 : i32
    %2 = arith.cmpi ne, %1, %c0_i32_0 : i32
    scf.if %2 {
      %cst_10 = arith.constant 0.000000e+00 : f32
      %12 = vector.broadcast %cst_10 : f32 to vector<256x128xf32>
      %c0_11 = arith.constant 0 : index
      %c0_12 = arith.constant 0 : index
      %13 = vector.load %arg6[%c0_11, %c0_12] : memref<256x128xf32, #tpu.memory_space<vmem>>, vector<256x128xf32>
      tpu.vector_store %arg6[%c0_11, %c0_12], %12 {strides = array<i32>} : memref<256x128xf32, #tpu.memory_space<vmem>>, vector<256x128xf32>,
    } else {
    }
    %c0 = arith.constant 0 : index
    %c0_1 = arith.constant 0 : index
    %3 = vector.load %arg6[%c0, %c0_1] : memref<256x128xf32, #tpu.memory_space<vmem>>, vector<256x128xf32>
    %c0_2 = arith.constant 0 : index
    %c0_3 = arith.constant 0 : index
    %4 = vector.load %arg2[%c0_2, %c0_3] : memref<256x256xbf16, #tpu.memory_space<vmem>>, vector<256x256xbf16>
    %c0_4 = arith.constant 0 : index
    %c0_5 = arith.constant 0 : index
    %5 = vector.load %arg3[%c0_4, %c0_5] : memref<256x128xbf16, #tpu.memory_space<vmem>>, vector<256x128xbf16>
    %cst = arith.constant dense<0.000000e+00> : vector<256x128xf32>
    %6 = tpu.matmul %4, %5, %cst {dimension_numbers = #tpu.dot_dimension_numbers<[1], [0], [0], [1], [0, 0, 1, 1], [], []>} : vector<256x256xbf16>, vector<256x128xbf16>, vector<256x128xf32> -> vector<256x128xf32>
    %7 = arith.addf %3, %6 : vector<256x128xf32>
    %c0_6 = arith.constant 0 : index
    %c0_7 = arith.constant 0 : index
    %8 = vector.load %arg6[%c0_6, %c0_7] : memref<256x128xf32, #tpu.memory_space<vmem>>, vector<256x128xf32>
    tpu.vector_store %arg6[%c0_6, %c0_7], %7 {strides = array<i32>} : memref<256x128xf32, #tpu.memory_space<vmem>>, vector<256x128xf32>,
    %c0_i32_8 = arith.constant 0 : i32
    %9 = arith.cmpi eq, %arg1, %c0_i32_8 : i32
    %10 = arith.extui %9 : i1 to i32
    %c0_i32_9 = arith.constant 0 : i32
    %11 = arith.cmpi ne, %10, %c0_i32_9 : i32
    scf.if %11 {
      %c0_10 = arith.constant 0 : index
      %c0_11 = arith.constant 0 : index
      %12 = vector.load %arg6[%c0_10, %c0_11] : memref<256x128xf32, #tpu.memory_space<vmem>>, vector<256x128xf32>
      %c0_12 = arith.constant 0 : index
      %c0_13 = arith.constant 0 : index
      %13 = vector.load %arg4[%c0_12, %c0_13] : memref<1x128xf32, #tpu.memory_space<vmem>>, vector<1x128xf32>
      %14 = vector.broadcast %13 : vector<1x128xf32> to vector<256x128xf32>
      %15 = arith.addf %12, %14 : vector<256x128xf32>
      %cst_14 = arith.constant 0.000000e+00 : f32
      %16 = vector.broadcast %cst_14 : f32 to vector<256x128xf32>
      %17 = arith.maximumf %15, %16 : vector<256x128xf32>
      %18 = arith.truncf %17 : vector<256x128xf32> to vector<256x128xbf16>
      %c0_15 = arith.constant 0 : index
      %c0_16 = arith.constant 0 : index
      %19 = vector.load %arg5[%c0_15, %c0_16] : memref<256x128xbf16, #tpu.memory_space<vmem>>, vector<256x128xbf16>
      tpu.vector_store %arg5[%c0_15, %c0_16], %18 {strides = array<i32>} : memref<256x128xbf16, #tpu.memory_space<vmem>>, vector<256x128xbf16>,
    } else {
    }
    return
  }
  func.func @transform_0(%arg0: i32, %arg1: i32) -> (i32, i32) {
    %c0_i32 = arith.constant 0 : i32
    return %arg0, %arg1 : i32, i32
  }
  func.func @transform_1(%arg0: i32, %arg1: i32) -> (i32, i32) {
    %c0_i32 = arith.constant 0 : i32
    %c0_i32_0 = arith.constant 0 : i32
    return %arg1, %c0_i32 : i32, i32
  }
  func.func @transform_2(%arg0: i32, %arg1: i32) -> (i32, i32) {
    %c0_i32 = arith.constant 0 : i32
    %c0_i32_0 = arith.constant 0 : i32
    %c0_i32_1 = arith.constant 0 : i32
    return %c0_i32, %c0_i32_0 : i32, i32
  }
  func.func @transform_3(%arg0: i32, %arg1: i32) -> (i32, i32) {
    %c0_i32 = arith.constant 0 : i32
    %c0_i32_0 = arith.constant 0 : i32
    return %arg0, %c0_i32 : i32, i32
  }
}

module attributes {stable_mosaic.version = 11 : i64} {
  func.func @_matmul_bias_act_kernel(%arg0: i32, %arg1: i32, %arg2: memref<64x384xbf16, #tpu.memory_space<vmem>>, %arg3: memref<384x128xbf16, #tpu.memory_space<vmem>>, %arg4: memref<1x128xf32, #tpu.memory_space<vmem>>, %arg5: memref<64x128xbf16, #tpu.memory_space<vmem>>, %arg6: memref<64x128xf32, #tpu.memory_space<vmem>>) attributes {dimension_semantics = [#tpu.dimension_semantics<parallel>, #tpu.dimension_semantics<arbitrary>], iteration_bounds = array<i64: 1, 1>, scalar_prefetch = 0 : i64, scratch_operands = 1 : i64, tpu.core_type = #tpu.core_type<tc>, window_params = [{transform_indices = @transform_0, window_bounds = array<i64: 64, 384>}, {pipeline_mode = #tpu.pipeline_mode<synchronous>, transform_indices = @transform_1, window_bounds = array<i64: 384, 128>}, {pipeline_mode = #tpu.pipeline_mode<synchronous>, transform_indices = @transform_2, window_bounds = array<i64: 1, 128>}, {transform_indices = @transform_3, window_bounds = array<i64: 64, 128>}]} {
    %c0_i32 = arith.constant 0 : i32
    %0 = arith.cmpi eq, %arg1, %c0_i32 : i32
    %1 = arith.extui %0 : i1 to i32
    %c0_i32_0 = arith.constant 0 : i32
    %2 = arith.cmpi ne, %1, %c0_i32_0 : i32
    scf.if %2 {
      %cst_10 = arith.constant 0.000000e+00 : f32
      %12 = vector.broadcast %cst_10 : f32 to vector<64x128xf32>
      %c0_11 = arith.constant 0 : index
      %c0_12 = arith.constant 0 : index
      %13 = vector.load %arg6[%c0_11, %c0_12] : memref<64x128xf32, #tpu.memory_space<vmem>>, vector<64x128xf32>
      tpu.vector_store %arg6[%c0_11, %c0_12], %12 {strides = array<i32>} : memref<64x128xf32, #tpu.memory_space<vmem>>, vector<64x128xf32>,
    } else {
    }
    %c0 = arith.constant 0 : index
    %c0_1 = arith.constant 0 : index
    %3 = vector.load %arg6[%c0, %c0_1] : memref<64x128xf32, #tpu.memory_space<vmem>>, vector<64x128xf32>
    %c0_2 = arith.constant 0 : index
    %c0_3 = arith.constant 0 : index
    %4 = vector.load %arg2[%c0_2, %c0_3] : memref<64x384xbf16, #tpu.memory_space<vmem>>, vector<64x384xbf16>
    %c0_4 = arith.constant 0 : index
    %c0_5 = arith.constant 0 : index
    %5 = vector.load %arg3[%c0_4, %c0_5] : memref<384x128xbf16, #tpu.memory_space<vmem>>, vector<384x128xbf16>
    %cst = arith.constant dense<0.000000e+00> : vector<64x128xf32>
    %6 = tpu.matmul %4, %5, %cst {dimension_numbers = #tpu.dot_dimension_numbers<[1], [0], [0], [1], [0, 0, 1, 1], [], []>} : vector<64x384xbf16>, vector<384x128xbf16>, vector<64x128xf32> -> vector<64x128xf32>
    %7 = arith.addf %3, %6 : vector<64x128xf32>
    %c0_6 = arith.constant 0 : index
    %c0_7 = arith.constant 0 : index
    %8 = vector.load %arg6[%c0_6, %c0_7] : memref<64x128xf32, #tpu.memory_space<vmem>>, vector<64x128xf32>
    tpu.vector_store %arg6[%c0_6, %c0_7], %7 {strides = array<i32>} : memref<64x128xf32, #tpu.memory_space<vmem>>, vector<64x128xf32>,
    %c0_i32_8 = arith.constant 0 : i32
    %9 = arith.cmpi eq, %arg1, %c0_i32_8 : i32
    %10 = arith.extui %9 : i1 to i32
    %c0_i32_9 = arith.constant 0 : i32
    %11 = arith.cmpi ne, %10, %c0_i32_9 : i32
    scf.if %11 {
      %c0_10 = arith.constant 0 : index
      %c0_11 = arith.constant 0 : index
      %12 = vector.load %arg6[%c0_10, %c0_11] : memref<64x128xf32, #tpu.memory_space<vmem>>, vector<64x128xf32>
      %c0_12 = arith.constant 0 : index
      %c0_13 = arith.constant 0 : index
      %13 = vector.load %arg4[%c0_12, %c0_13] : memref<1x128xf32, #tpu.memory_space<vmem>>, vector<1x128xf32>
      %14 = vector.broadcast %13 : vector<1x128xf32> to vector<64x128xf32>
      %15 = arith.addf %12, %14 : vector<64x128xf32>
      %cst_14 = arith.constant 0.000000e+00 : f32
      %16 = vector.broadcast %cst_14 : f32 to vector<64x128xf32>
      %17 = arith.maximumf %15, %16 : vector<64x128xf32>
      %18 = arith.truncf %17 : vector<64x128xf32> to vector<64x128xbf16>
      %c0_15 = arith.constant 0 : index
      %c0_16 = arith.constant 0 : index
      %19 = vector.load %arg5[%c0_15, %c0_16] : memref<64x128xbf16, #tpu.memory_space<vmem>>, vector<64x128xbf16>
      tpu.vector_store %arg5[%c0_15, %c0_16], %18 {strides = array<i32>} : memref<64x128xbf16, #tpu.memory_space<vmem>>, vector<64x128xbf16>,
    } else {
    }
    return
  }
  func.func @transform_0(%arg0: i32, %arg1: i32) -> (i32, i32) {
    %c0_i32 = arith.constant 0 : i32
    return %arg0, %arg1 : i32, i32
  }
  func.func @transform_1(%arg0: i32, %arg1: i32) -> (i32, i32) {
    %c0_i32 = arith.constant 0 : i32
    %c0_i32_0 = arith.constant 0 : i32
    return %arg1, %c0_i32 : i32, i32
  }
  func.func @transform_2(%arg0: i32, %arg1: i32) -> (i32, i32) {
    %c0_i32 = arith.constant 0 : i32
    %c0_i32_0 = arith.constant 0 : i32
    %c0_i32_1 = arith.constant 0 : i32
    return %c0_i32, %c0_i32_0 : i32, i32
  }
  func.func @transform_3(%arg0: i32, %arg1: i32) -> (i32, i32) {
    %c0_i32 = arith.constant 0 : i32
    %c0_i32_0 = arith.constant 0 : i32
    return %arg0, %c0_i32 : i32, i32
  }
}

module attributes {stable_mosaic.version = 11 : i64} {
  func.func @_matmul_bias_act_kernel(%arg0: i32, %arg1: i32, %arg2: memref<8x512xbf16, #tpu.memory_space<vmem>>, %arg3: memref<512x384xbf16, #tpu.memory_space<vmem>>, %arg4: memref<1x384xf32, #tpu.memory_space<vmem>>, %arg5: memref<8x384xf32, #tpu.memory_space<vmem>>, %arg6: memref<8x384xf32, #tpu.memory_space<vmem>>) attributes {dimension_semantics = [#tpu.dimension_semantics<parallel>, #tpu.dimension_semantics<arbitrary>], iteration_bounds = array<i64: 1, 1>, scalar_prefetch = 0 : i64, scratch_operands = 1 : i64, tpu.core_type = #tpu.core_type<tc>, window_params = [{transform_indices = @transform_0, window_bounds = array<i64: 8, 512>}, {pipeline_mode = #tpu.pipeline_mode<synchronous>, transform_indices = @transform_1, window_bounds = array<i64: 512, 384>}, {pipeline_mode = #tpu.pipeline_mode<synchronous>, transform_indices = @transform_2, window_bounds = array<i64: 1, 384>}, {transform_indices = @transform_3, window_bounds = array<i64: 8, 384>}]} {
    %c0_i32 = arith.constant 0 : i32
    %0 = arith.cmpi eq, %arg1, %c0_i32 : i32
    %1 = arith.extui %0 : i1 to i32
    %c0_i32_0 = arith.constant 0 : i32
    %2 = arith.cmpi ne, %1, %c0_i32_0 : i32
    scf.if %2 {
      %cst_10 = arith.constant 0.000000e+00 : f32
      %12 = vector.broadcast %cst_10 : f32 to vector<8x384xf32>
      %c0_11 = arith.constant 0 : index
      %c0_12 = arith.constant 0 : index
      %13 = vector.load %arg6[%c0_11, %c0_12] : memref<8x384xf32, #tpu.memory_space<vmem>>, vector<8x384xf32>
      tpu.vector_store %arg6[%c0_11, %c0_12], %12 {strides = array<i32>} : memref<8x384xf32, #tpu.memory_space<vmem>>, vector<8x384xf32>,
    } else {
    }
    %c0 = arith.constant 0 : index
    %c0_1 = arith.constant 0 : index
    %3 = vector.load %arg6[%c0, %c0_1] : memref<8x384xf32, #tpu.memory_space<vmem>>, vector<8x384xf32>
    %c0_2 = arith.constant 0 : index
    %c0_3 = arith.constant 0 : index
    %4 = vector.load %arg2[%c0_2, %c0_3] : memref<8x512xbf16, #tpu.memory_space<vmem>>, vector<8x512xbf16>
    %c0_4 = arith.constant 0 : index
    %c0_5 = arith.constant 0 : index
    %5 = vector.load %arg3[%c0_4, %c0_5] : memref<512x384xbf16, #tpu.memory_space<vmem>>, vector<512x384xbf16>
    %cst = arith.constant dense<0.000000e+00> : vector<8x384xf32>
    %6 = tpu.matmul %4, %5, %cst {dimension_numbers = #tpu.dot_dimension_numbers<[1], [0], [0], [1], [0, 0, 1, 1], [], []>} : vector<8x512xbf16>, vector<512x384xbf16>, vector<8x384xf32> -> vector<8x384xf32>
    %7 = arith.addf %3, %6 : vector<8x384xf32>
    %c0_6 = arith.constant 0 : index
    %c0_7 = arith.constant 0 : index
    %8 = vector.load %arg6[%c0_6, %c0_7] : memref<8x384xf32, #tpu.memory_space<vmem>>, vector<8x384xf32>
    tpu.vector_store %arg6[%c0_6, %c0_7], %7 {strides = array<i32>} : memref<8x384xf32, #tpu.memory_space<vmem>>, vector<8x384xf32>,
    %c0_i32_8 = arith.constant 0 : i32
    %9 = arith.cmpi eq, %arg1, %c0_i32_8 : i32
    %10 = arith.extui %9 : i1 to i32
    %c0_i32_9 = arith.constant 0 : i32
    %11 = arith.cmpi ne, %10, %c0_i32_9 : i32
    scf.if %11 {
      %c0_10 = arith.constant 0 : index
      %c0_11 = arith.constant 0 : index
      %12 = vector.load %arg6[%c0_10, %c0_11] : memref<8x384xf32, #tpu.memory_space<vmem>>, vector<8x384xf32>
      %c0_12 = arith.constant 0 : index
      %c0_13 = arith.constant 0 : index
      %13 = vector.load %arg4[%c0_12, %c0_13] : memref<1x384xf32, #tpu.memory_space<vmem>>, vector<1x384xf32>
      %14 = vector.broadcast %13 : vector<1x384xf32> to vector<8x384xf32>
      %15 = arith.addf %12, %14 : vector<8x384xf32>
      %c0_14 = arith.constant 0 : index
      %c0_15 = arith.constant 0 : index
      %16 = vector.load %arg5[%c0_14, %c0_15] : memref<8x384xf32, #tpu.memory_space<vmem>>, vector<8x384xf32>
      tpu.vector_store %arg5[%c0_14, %c0_15], %15 {strides = array<i32>} : memref<8x384xf32, #tpu.memory_space<vmem>>, vector<8x384xf32>,
    } else {
    }
    return
  }
  func.func @transform_0(%arg0: i32, %arg1: i32) -> (i32, i32) {
    %c0_i32 = arith.constant 0 : i32
    return %arg0, %arg1 : i32, i32
  }
  func.func @transform_1(%arg0: i32, %arg1: i32) -> (i32, i32) {
    %c0_i32 = arith.constant 0 : i32
    %c0_i32_0 = arith.constant 0 : i32
    return %arg1, %c0_i32 : i32, i32
  }
  func.func @transform_2(%arg0: i32, %arg1: i32) -> (i32, i32) {
    %c0_i32 = arith.constant 0 : i32
    %c0_i32_0 = arith.constant 0 : i32
    %c0_i32_1 = arith.constant 0 : i32
    return %c0_i32, %c0_i32_0 : i32, i32
  }
  func.func @transform_3(%arg0: i32, %arg1: i32) -> (i32, i32) {
    %c0_i32 = arith.constant 0 : i32
    %c0_i32_0 = arith.constant 0 : i32
    return %arg0, %c0_i32 : i32, i32
  }
}

module attributes {stable_mosaic.version = 11 : i64} {
  func.func @_adaconv_kernel(%arg0: i32, %arg1: i32, %arg2: memref<1x9x4x128xbf16, #tpu.memory_space<vmem>>, %arg3: memref<1x9x128xf32, #tpu.memory_space<vmem>>, %arg4: memref<1x4x128xbf16, #tpu.memory_space<vmem>>) attributes {dimension_semantics = [#tpu.dimension_semantics<parallel>, #tpu.dimension_semantics<parallel>], iteration_bounds = array<i64: 2, 1>, scalar_prefetch = 0 : i64, scratch_operands = 0 : i64, tpu.core_type = #tpu.core_type<tc>, window_params = [{transform_indices = @transform_0, window_bounds = array<i64: 1, 9, 4, 128>}, {transform_indices = @transform_1, window_bounds = array<i64: 1, 9, 128>}, {transform_indices = @transform_2, window_bounds = array<i64: 1, 4, 128>}]} {
    %c0 = arith.constant 0 : index
    %c0_0 = arith.constant 0 : index
    %c0_1 = arith.constant 0 : index
    %c0_2 = arith.constant 0 : index
    %0 = vector.load %arg2[%c0, %c0_0, %c0_1, %c0_2] : memref<1x9x4x128xbf16, #tpu.memory_space<vmem>>, vector<1x1x4x128xbf16>
    %1 = vector.shape_cast %0 : vector<1x1x4x128xbf16> to vector<4x128xbf16>
    %2 = arith.extf %1 : vector<4x128xbf16> to vector<4x128xf32>
    %c0_3 = arith.constant 0 : index
    %c0_4 = arith.constant 0 : index
    %c0_5 = arith.constant 0 : index
    %3 = vector.load %arg3[%c0_3, %c0_4, %c0_5] : memref<1x9x128xf32, #tpu.memory_space<vmem>>, vector<1x1x128xf32>
    %4 = vector.shape_cast %3 : vector<1x1x128xf32> to vector<1x128xf32>
    %5 = vector.broadcast %4 : vector<1x128xf32> to vector<4x128xf32>
    %6 = arith.mulf %2, %5 : vector<4x128xf32>
    %c0_6 = arith.constant 0 : index
    %c1 = arith.constant 1 : index
    %c0_7 = arith.constant 0 : index
    %c0_8 = arith.constant 0 : index
    %7 = vector.load %arg2[%c0_6, %c1, %c0_7, %c0_8] : memref<1x9x4x128xbf16, #tpu.memory_space<vmem>>, vector<1x1x4x128xbf16>
    %8 = vector.shape_cast %7 : vector<1x1x4x128xbf16> to vector<4x128xbf16>
    %9 = arith.extf %8 : vector<4x128xbf16> to vector<4x128xf32>
    %c0_9 = arith.constant 0 : index
    %c1_10 = arith.constant 1 : index
    %c0_11 = arith.constant 0 : index
    %10 = vector.load %arg3[%c0_9, %c1_10, %c0_11] : memref<1x9x128xf32, #tpu.memory_space<vmem>>, vector<1x1x128xf32>
    %11 = vector.shape_cast %10 : vector<1x1x128xf32> to vector<1x128xf32>
    %12 = vector.broadcast %11 : vector<1x128xf32> to vector<4x128xf32>
    %13 = arith.mulf %9, %12 : vector<4x128xf32>
    %14 = arith.addf %6, %13 : vector<4x128xf32>
    %c0_12 = arith.constant 0 : index
    %c2 = arith.constant 2 : index
    %c0_13 = arith.constant 0 : index
    %c0_14 = arith.constant 0 : index
    %15 = vector.load %arg2[%c0_12, %c2, %c0_13, %c0_14] : memref<1x9x4x128xbf16, #tpu.memory_space<vmem>>, vector<1x1x4x128xbf16>
    %16 = vector.shape_cast %15 : vector<1x1x4x128xbf16> to vector<4x128xbf16>
    %17 = arith.extf %16 : vector<4x128xbf16> to vector<4x128xf32>
    %c0_15 = arith.constant 0 : index
    %c2_16 = arith.constant 2 : index
    %c0_17 = arith.constant 0 : index
    %18 = vector.load %arg3[%c0_15, %c2_16, %c0_17] : memref<1x9x128xf32, #tpu.memory_space<vmem>>, vector<1x1x128xf32>
    %19 = vector.shape_cast %18 : vector<1x1x128xf32> to vector<1x128xf32>
    %20 = vector.broadcast %19 : vector<1x128xf32> to vector<4x128xf32>
    %21 = arith.mulf %17, %20 : vector<4x128xf32>
    %22 = arith.addf %14, %21 : vector<4x128xf32>
    %c0_18 = arith.constant 0 : index
    %c3 = arith.constant 3 : index
    %c0_19 = arith.constant 0 : index
    %c0_20 = arith.constant 0 : index
    %23 = vector.load %arg2[%c0_18, %c3, %c0_19, %c0_20] : memref<1x9x4x128xbf16, #tpu.memory_space<vmem>>, vector<1x1x4x128xbf16>
    %24 = vector.shape_cast %23 : vector<1x1x4x128xbf16> to vector<4x128xbf16>
    %25 = arith.extf %24 : vector<4x128xbf16> to vector<4x128xf32>
    %c0_21 = arith.constant 0 : index
    %c3_22 = arith.constant 3 : index
    %c0_23 = arith.constant 0 : index
    %26 = vector.load %arg3[%c0_21, %c3_22, %c0_23] : memref<1x9x128xf32, #tpu.memory_space<vmem>>, vector<1x1x128xf32>
    %27 = vector.shape_cast %26 : vector<1x1x128xf32> to vector<1x128xf32>
    %28 = vector.broadcast %27 : vector<1x128xf32> to vector<4x128xf32>
    %29 = arith.mulf %25, %28 : vector<4x128xf32>
    %30 = arith.addf %22, %29 : vector<4x128xf32>
    %c0_24 = arith.constant 0 : index
    %c4 = arith.constant 4 : index
    %c0_25 = arith.constant 0 : index
    %c0_26 = arith.constant 0 : index
    %31 = vector.load %arg2[%c0_24, %c4, %c0_25, %c0_26] : memref<1x9x4x128xbf16, #tpu.memory_space<vmem>>, vector<1x1x4x128xbf16>
    %32 = vector.shape_cast %31 : vector<1x1x4x128xbf16> to vector<4x128xbf16>
    %33 = arith.extf %32 : vector<4x128xbf16> to vector<4x128xf32>
    %c0_27 = arith.constant 0 : index
    %c4_28 = arith.constant 4 : index
    %c0_29 = arith.constant 0 : index
    %34 = vector.load %arg3[%c0_27, %c4_28, %c0_29] : memref<1x9x128xf32, #tpu.memory_space<vmem>>, vector<1x1x128xf32>
    %35 = vector.shape_cast %34 : vector<1x1x128xf32> to vector<1x128xf32>
    %36 = vector.broadcast %35 : vector<1x128xf32> to vector<4x128xf32>
    %37 = arith.mulf %33, %36 : vector<4x128xf32>
    %38 = arith.addf %30, %37 : vector<4x128xf32>
    %c0_30 = arith.constant 0 : index
    %c5 = arith.constant 5 : index
    %c0_31 = arith.constant 0 : index
    %c0_32 = arith.constant 0 : index
    %39 = vector.load %arg2[%c0_30, %c5, %c0_31, %c0_32] : memref<1x9x4x128xbf16, #tpu.memory_space<vmem>>, vector<1x1x4x128xbf16>
    %40 = vector.shape_cast %39 : vector<1x1x4x128xbf16> to vector<4x128xbf16>
    %41 = arith.extf %40 : vector<4x128xbf16> to vector<4x128xf32>
    %c0_33 = arith.constant 0 : index
    %c5_34 = arith.constant 5 : index
    %c0_35 = arith.constant 0 : index
    %42 = vector.load %arg3[%c0_33, %c5_34, %c0_35] : memref<1x9x128xf32, #tpu.memory_space<vmem>>, vector<1x1x128xf32>
    %43 = vector.shape_cast %42 : vector<1x1x128xf32> to vector<1x128xf32>
    %44 = vector.broadcast %43 : vector<1x128xf32> to vector<4x128xf32>
    %45 = arith.mulf %41, %44 : vector<4x128xf32>
    %46 = arith.addf %38, %45 : vector<4x128xf32>
    %c0_36 = arith.constant 0 : index
    %c6 = arith.constant 6 : index
    %c0_37 = arith.constant 0 : index
    %c0_38 = arith.constant 0 : index
    %47 = vector.load %arg2[%c0_36, %c6, %c0_37, %c0_38] : memref<1x9x4x128xbf16, #tpu.memory_space<vmem>>, vector<1x1x4x128xbf16>
    %48 = vector.shape_cast %47 : vector<1x1x4x128xbf16> to vector<4x128xbf16>
    %49 = arith.extf %48 : vector<4x128xbf16> to vector<4x128xf32>
    %c0_39 = arith.constant 0 : index
    %c6_40 = arith.constant 6 : index
    %c0_41 = arith.constant 0 : index
    %50 = vector.load %arg3[%c0_39, %c6_40, %c0_41] : memref<1x9x128xf32, #tpu.memory_space<vmem>>, vector<1x1x128xf32>
    %51 = vector.shape_cast %50 : vector<1x1x128xf32> to vector<1x128xf32>
    %52 = vector.broadcast %51 : vector<1x128xf32> to vector<4x128xf32>
    %53 = arith.mulf %49, %52 : vector<4x128xf32>
    %54 = arith.addf %46, %53 : vector<4x128xf32>
    %c0_42 = arith.constant 0 : index
    %c7 = arith.constant 7 : index
    %c0_43 = arith.constant 0 : index
    %c0_44 = arith.constant 0 : index
    %55 = vector.load %arg2[%c0_42, %c7, %c0_43, %c0_44] : memref<1x9x4x128xbf16, #tpu.memory_space<vmem>>, vector<1x1x4x128xbf16>
    %56 = vector.shape_cast %55 : vector<1x1x4x128xbf16> to vector<4x128xbf16>
    %57 = arith.extf %56 : vector<4x128xbf16> to vector<4x128xf32>
    %c0_45 = arith.constant 0 : index
    %c7_46 = arith.constant 7 : index
    %c0_47 = arith.constant 0 : index
    %58 = vector.load %arg3[%c0_45, %c7_46, %c0_47] : memref<1x9x128xf32, #tpu.memory_space<vmem>>, vector<1x1x128xf32>
    %59 = vector.shape_cast %58 : vector<1x1x128xf32> to vector<1x128xf32>
    %60 = vector.broadcast %59 : vector<1x128xf32> to vector<4x128xf32>
    %61 = arith.mulf %57, %60 : vector<4x128xf32>
    %62 = arith.addf %54, %61 : vector<4x128xf32>
    %c0_48 = arith.constant 0 : index
    %c8 = arith.constant 8 : index
    %c0_49 = arith.constant 0 : index
    %c0_50 = arith.constant 0 : index
    %63 = vector.load %arg2[%c0_48, %c8, %c0_49, %c0_50] : memref<1x9x4x128xbf16, #tpu.memory_space<vmem>>, vector<1x1x4x128xbf16>
    %64 = vector.shape_cast %63 : vector<1x1x4x128xbf16> to vector<4x128xbf16>
    %65 = arith.extf %64 : vector<4x128xbf16> to vector<4x128xf32>
    %c0_51 = arith.constant 0 : index
    %c8_52 = arith.constant 8 : index
    %c0_53 = arith.constant 0 : index
    %66 = vector.load %arg3[%c0_51, %c8_52, %c0_53] : memref<1x9x128xf32, #tpu.memory_space<vmem>>, vector<1x1x128xf32>
    %67 = vector.shape_cast %66 : vector<1x1x128xf32> to vector<1x128xf32>
    %68 = vector.broadcast %67 : vector<1x128xf32> to vector<4x128xf32>
    %69 = arith.mulf %65, %68 : vector<4x128xf32>
    %70 = arith.addf %62, %69 : vector<4x128xf32>
    %cst = arith.constant 0.000000e+00 : f32
    %71 = vector.broadcast %cst : f32 to vector<4x128xf32>
    %72 = arith.maximumf %70, %71 : vector<4x128xf32>
    %73 = arith.truncf %72 : vector<4x128xf32> to vector<4x128xbf16>
    %c0_54 = arith.constant 0 : index
    %c0_55 = arith.constant 0 : index
    %c0_56 = arith.constant 0 : index
    %74 = vector.load %arg4[%c0_54, %c0_55, %c0_56] : memref<1x4x128xbf16, #tpu.memory_space<vmem>>, vector<1x4x128xbf16>
    %75 = vector.shape_cast %74 : vector<1x4x128xbf16> to vector<4x128xbf16>
    %76 = vector.shape_cast %73 : vector<4x128xbf16> to vector<1x4x128xbf16>
    tpu.vector_store %arg4[%c0_54, %c0_55, %c0_56], %76 {strides = array<i32>} : memref<1x4x128xbf16, #tpu.memory_space<vmem>>, vector<1x4x128xbf16>,
    return
  }
  func.func @transform_0(%arg0: i32, %arg1: i32) -> (i32, i32, i32, i32) {
    %c0_i32 = arith.constant 0 : i32
    %c0_i32_0 = arith.constant 0 : i32
    %c0_i32_1 = arith.constant 0 : i32
    return %arg0, %c0_i32, %arg1, %c0_i32_0 : i32, i32, i32, i32
  }
  func.func @transform_1(%arg0: i32, %arg1: i32) -> (i32, i32, i32) {
    %c0_i32 = arith.constant 0 : i32
    %c0_i32_0 = arith.constant 0 : i32
    %c0_i32_1 = arith.constant 0 : i32
    return %arg0, %c0_i32, %c0_i32_0 : i32, i32, i32
  }
  func.func @transform_2(%arg0: i32, %arg1: i32) -> (i32, i32, i32) {
    %c0_i32 = arith.constant 0 : i32
    %c0_i32_0 = arith.constant 0 : i32
    return %arg0, %arg1, %c0_i32 : i32, i32, i32
  }
}

module attributes {stable_mosaic.version = 11 : i64} {
  func.func @_matmul_bias_act_kernel(%arg0: i32, %arg1: i32, %arg2: memref<32x384xbf16, #tpu.memory_space<vmem>>, %arg3: memref<384x128xbf16, #tpu.memory_space<vmem>>, %arg4: memref<1x128xf32, #tpu.memory_space<vmem>>, %arg5: memref<32x128xbf16, #tpu.memory_space<vmem>>, %arg6: memref<32x128xf32, #tpu.memory_space<vmem>>) attributes {dimension_semantics = [#tpu.dimension_semantics<parallel>, #tpu.dimension_semantics<arbitrary>], iteration_bounds = array<i64: 1, 1>, scalar_prefetch = 0 : i64, scratch_operands = 1 : i64, tpu.core_type = #tpu.core_type<tc>, window_params = [{transform_indices = @transform_0, window_bounds = array<i64: 32, 384>}, {pipeline_mode = #tpu.pipeline_mode<synchronous>, transform_indices = @transform_1, window_bounds = array<i64: 384, 128>}, {pipeline_mode = #tpu.pipeline_mode<synchronous>, transform_indices = @transform_2, window_bounds = array<i64: 1, 128>}, {transform_indices = @transform_3, window_bounds = array<i64: 32, 128>}]} {
    %c0_i32 = arith.constant 0 : i32
    %0 = arith.cmpi eq, %arg1, %c0_i32 : i32
    %1 = arith.extui %0 : i1 to i32
    %c0_i32_0 = arith.constant 0 : i32
    %2 = arith.cmpi ne, %1, %c0_i32_0 : i32
    scf.if %2 {
      %cst_10 = arith.constant 0.000000e+00 : f32
      %12 = vector.broadcast %cst_10 : f32 to vector<32x128xf32>
      %c0_11 = arith.constant 0 : index
      %c0_12 = arith.constant 0 : index
      %13 = vector.load %arg6[%c0_11, %c0_12] : memref<32x128xf32, #tpu.memory_space<vmem>>, vector<32x128xf32>
      tpu.vector_store %arg6[%c0_11, %c0_12], %12 {strides = array<i32>} : memref<32x128xf32, #tpu.memory_space<vmem>>, vector<32x128xf32>,
    } else {
    }
    %c0 = arith.constant 0 : index
    %c0_1 = arith.constant 0 : index
    %3 = vector.load %arg6[%c0, %c0_1] : memref<32x128xf32, #tpu.memory_space<vmem>>, vector<32x128xf32>
    %c0_2 = arith.constant 0 : index
    %c0_3 = arith.constant 0 : index
    %4 = vector.load %arg2[%c0_2, %c0_3] : memref<32x384xbf16, #tpu.memory_space<vmem>>, vector<32x384xbf16>
    %c0_4 = arith.constant 0 : index
    %c0_5 = arith.constant 0 : index
    %5 = vector.load %arg3[%c0_4, %c0_5] : memref<384x128xbf16, #tpu.memory_space<vmem>>, vector<384x128xbf16>
    %cst = arith.constant dense<0.000000e+00> : vector<32x128xf32>
    %6 = tpu.matmul %4, %5, %cst {dimension_numbers = #tpu.dot_dimension_numbers<[1], [0], [0], [1], [0, 0, 1, 1], [], []>} : vector<32x384xbf16>, vector<384x128xbf16>, vector<32x128xf32> -> vector<32x128xf32>
    %7 = arith.addf %3, %6 : vector<32x128xf32>
    %c0_6 = arith.constant 0 : index
    %c0_7 = arith.constant 0 : index
    %8 = vector.load %arg6[%c0_6, %c0_7] : memref<32x128xf32, #tpu.memory_space<vmem>>, vector<32x128xf32>
    tpu.vector_store %arg6[%c0_6, %c0_7], %7 {strides = array<i32>} : memref<32x128xf32, #tpu.memory_space<vmem>>, vector<32x128xf32>,
    %c0_i32_8 = arith.constant 0 : i32
    %9 = arith.cmpi eq, %arg1, %c0_i32_8 : i32
    %10 = arith.extui %9 : i1 to i32
    %c0_i32_9 = arith.constant 0 : i32
    %11 = arith.cmpi ne, %10, %c0_i32_9 : i32
    scf.if %11 {
      %c0_10 = arith.constant 0 : index
      %c0_11 = arith.constant 0 : index
      %12 = vector.load %arg6[%c0_10, %c0_11] : memref<32x128xf32, #tpu.memory_space<vmem>>, vector<32x128xf32>
      %c0_12 = arith.constant 0 : index
      %c0_13 = arith.constant 0 : index
      %13 = vector.load %arg4[%c0_12, %c0_13] : memref<1x128xf32, #tpu.memory_space<vmem>>, vector<1x128xf32>
      %14 = vector.broadcast %13 : vector<1x128xf32> to vector<32x128xf32>
      %15 = arith.addf %12, %14 : vector<32x128xf32>
      %cst_14 = arith.constant 0.000000e+00 : f32
      %16 = vector.broadcast %cst_14 : f32 to vector<32x128xf32>
      %17 = arith.maximumf %15, %16 : vector<32x128xf32>
      %18 = arith.truncf %17 : vector<32x128xf32> to vector<32x128xbf16>
      %c0_15 = arith.constant 0 : index
      %c0_16 = arith.constant 0 : index
      %19 = vector.load %arg5[%c0_15, %c0_16] : memref<32x128xbf16, #tpu.memory_space<vmem>>, vector<32x128xbf16>
      tpu.vector_store %arg5[%c0_15, %c0_16], %18 {strides = array<i32>} : memref<32x128xbf16, #tpu.memory_space<vmem>>, vector<32x128xbf16>,
    } else {
    }
    return
  }
  func.func @transform_0(%arg0: i32, %arg1: i32) -> (i32, i32) {
    %c0_i32 = arith.constant 0 : i32
    return %arg0, %arg1 : i32, i32
  }
  func.func @transform_1(%arg0: i32, %arg1: i32) -> (i32, i32) {
    %c0_i32 = arith.constant 0 : i32
    %c0_i32_0 = arith.constant 0 : i32
    return %arg1, %c0_i32 : i32, i32
  }
  func.func @transform_2(%arg0: i32, %arg1: i32) -> (i32, i32) {
    %c0_i32 = arith.constant 0 : i32
    %c0_i32_0 = arith.constant 0 : i32
    %c0_i32_1 = arith.constant 0 : i32
    return %c0_i32, %c0_i32_0 : i32, i32
  }
  func.func @transform_3(%arg0: i32, %arg1: i32) -> (i32, i32) {
    %c0_i32 = arith.constant 0 : i32
    %c0_i32_0 = arith.constant 0 : i32
    return %arg0, %c0_i32 : i32, i32
  }
}

module attributes {stable_mosaic.version = 11 : i64} {
  func.func @_matmul_bias_act_kernel(%arg0: i32, %arg1: i32, %arg2: memref<128x256xbf16, #tpu.memory_space<vmem>>, %arg3: memref<256x128xbf16, #tpu.memory_space<vmem>>, %arg4: memref<1x128xf32, #tpu.memory_space<vmem>>, %arg5: memref<128x128xbf16, #tpu.memory_space<vmem>>, %arg6: memref<128x128xf32, #tpu.memory_space<vmem>>) attributes {dimension_semantics = [#tpu.dimension_semantics<parallel>, #tpu.dimension_semantics<arbitrary>], iteration_bounds = array<i64: 1, 1>, scalar_prefetch = 0 : i64, scratch_operands = 1 : i64, tpu.core_type = #tpu.core_type<tc>, window_params = [{transform_indices = @transform_0, window_bounds = array<i64: 128, 256>}, {pipeline_mode = #tpu.pipeline_mode<synchronous>, transform_indices = @transform_1, window_bounds = array<i64: 256, 128>}, {pipeline_mode = #tpu.pipeline_mode<synchronous>, transform_indices = @transform_2, window_bounds = array<i64: 1, 128>}, {transform_indices = @transform_3, window_bounds = array<i64: 128, 128>}]} {
    %c0_i32 = arith.constant 0 : i32
    %0 = arith.cmpi eq, %arg1, %c0_i32 : i32
    %1 = arith.extui %0 : i1 to i32
    %c0_i32_0 = arith.constant 0 : i32
    %2 = arith.cmpi ne, %1, %c0_i32_0 : i32
    scf.if %2 {
      %cst_10 = arith.constant 0.000000e+00 : f32
      %12 = vector.broadcast %cst_10 : f32 to vector<128x128xf32>
      %c0_11 = arith.constant 0 : index
      %c0_12 = arith.constant 0 : index
      %13 = vector.load %arg6[%c0_11, %c0_12] : memref<128x128xf32, #tpu.memory_space<vmem>>, vector<128x128xf32>
      tpu.vector_store %arg6[%c0_11, %c0_12], %12 {strides = array<i32>} : memref<128x128xf32, #tpu.memory_space<vmem>>, vector<128x128xf32>,
    } else {
    }
    %c0 = arith.constant 0 : index
    %c0_1 = arith.constant 0 : index
    %3 = vector.load %arg6[%c0, %c0_1] : memref<128x128xf32, #tpu.memory_space<vmem>>, vector<128x128xf32>
    %c0_2 = arith.constant 0 : index
    %c0_3 = arith.constant 0 : index
    %4 = vector.load %arg2[%c0_2, %c0_3] : memref<128x256xbf16, #tpu.memory_space<vmem>>, vector<128x256xbf16>
    %c0_4 = arith.constant 0 : index
    %c0_5 = arith.constant 0 : index
    %5 = vector.load %arg3[%c0_4, %c0_5] : memref<256x128xbf16, #tpu.memory_space<vmem>>, vector<256x128xbf16>
    %cst = arith.constant dense<0.000000e+00> : vector<128x128xf32>
    %6 = tpu.matmul %4, %5, %cst {dimension_numbers = #tpu.dot_dimension_numbers<[1], [0], [0], [1], [0, 0, 1, 1], [], []>} : vector<128x256xbf16>, vector<256x128xbf16>, vector<128x128xf32> -> vector<128x128xf32>
    %7 = arith.addf %3, %6 : vector<128x128xf32>
    %c0_6 = arith.constant 0 : index
    %c0_7 = arith.constant 0 : index
    %8 = vector.load %arg6[%c0_6, %c0_7] : memref<128x128xf32, #tpu.memory_space<vmem>>, vector<128x128xf32>
    tpu.vector_store %arg6[%c0_6, %c0_7], %7 {strides = array<i32>} : memref<128x128xf32, #tpu.memory_space<vmem>>, vector<128x128xf32>,
    %c0_i32_8 = arith.constant 0 : i32
    %9 = arith.cmpi eq, %arg1, %c0_i32_8 : i32
    %10 = arith.extui %9 : i1 to i32
    %c0_i32_9 = arith.constant 0 : i32
    %11 = arith.cmpi ne, %10, %c0_i32_9 : i32
    scf.if %11 {
      %c0_10 = arith.constant 0 : index
      %c0_11 = arith.constant 0 : index
      %12 = vector.load %arg6[%c0_10, %c0_11] : memref<128x128xf32, #tpu.memory_space<vmem>>, vector<128x128xf32>
      %c0_12 = arith.constant 0 : index
      %c0_13 = arith.constant 0 : index
      %13 = vector.load %arg4[%c0_12, %c0_13] : memref<1x128xf32, #tpu.memory_space<vmem>>, vector<1x128xf32>
      %14 = vector.broadcast %13 : vector<1x128xf32> to vector<128x128xf32>
      %15 = arith.addf %12, %14 : vector<128x128xf32>
      %cst_14 = arith.constant 0.000000e+00 : f32
      %16 = vector.broadcast %cst_14 : f32 to vector<128x128xf32>
      %17 = arith.maximumf %15, %16 : vector<128x128xf32>
      %18 = arith.truncf %17 : vector<128x128xf32> to vector<128x128xbf16>
      %c0_15 = arith.constant 0 : index
      %c0_16 = arith.constant 0 : index
      %19 = vector.load %arg5[%c0_15, %c0_16] : memref<128x128xbf16, #tpu.memory_space<vmem>>, vector<128x128xbf16>
      tpu.vector_store %arg5[%c0_15, %c0_16], %18 {strides = array<i32>} : memref<128x128xbf16, #tpu.memory_space<vmem>>, vector<128x128xbf16>,
    } else {
    }
    return
  }
  func.func @transform_0(%arg0: i32, %arg1: i32) -> (i32, i32) {
    %c0_i32 = arith.constant 0 : i32
    return %arg0, %arg1 : i32, i32
  }
  func.func @transform_1(%arg0: i32, %arg1: i32) -> (i32, i32) {
    %c0_i32 = arith.constant 0 : i32
    %c0_i32_0 = arith.constant 0 : i32
    return %arg1, %c0_i32 : i32, i32
  }
  func.func @transform_2(%arg0: i32, %arg1: i32) -> (i32, i32) {
    %c0_i32 = arith.constant 0 : i32
    %c0_i32_0 = arith.constant 0 : i32
    %c0_i32_1 = arith.constant 0 : i32
    return %c0_i32, %c0_i32_0 : i32, i32
  }
  func.func @transform_3(%arg0: i32, %arg1: i32) -> (i32, i32) {
    %c0_i32 = arith.constant 0 : i32
    %c0_i32_0 = arith.constant 0 : i32
    return %arg0, %c0_i32 : i32, i32
  }
}

module attributes {stable_mosaic.version = 11 : i64} {
  func.func @_matmul_bias_act_kernel(%arg0: i32, %arg1: i32, %arg2: memref<256x256xbf16, #tpu.memory_space<vmem>>, %arg3: memref<256x128xbf16, #tpu.memory_space<vmem>>, %arg4: memref<1x128xf32, #tpu.memory_space<vmem>>, %arg5: memref<256x128xf32, #tpu.memory_space<vmem>>, %arg6: memref<256x128xf32, #tpu.memory_space<vmem>>) attributes {dimension_semantics = [#tpu.dimension_semantics<parallel>, #tpu.dimension_semantics<arbitrary>], iteration_bounds = array<i64: 2, 1>, scalar_prefetch = 0 : i64, scratch_operands = 1 : i64, tpu.core_type = #tpu.core_type<tc>, window_params = [{transform_indices = @transform_0, window_bounds = array<i64: 256, 256>}, {pipeline_mode = #tpu.pipeline_mode<synchronous>, transform_indices = @transform_1, window_bounds = array<i64: 256, 128>}, {pipeline_mode = #tpu.pipeline_mode<synchronous>, transform_indices = @transform_2, window_bounds = array<i64: 1, 128>}, {transform_indices = @transform_3, window_bounds = array<i64: 256, 128>}]} {
    %c0_i32 = arith.constant 0 : i32
    %0 = arith.cmpi eq, %arg1, %c0_i32 : i32
    %1 = arith.extui %0 : i1 to i32
    %c0_i32_0 = arith.constant 0 : i32
    %2 = arith.cmpi ne, %1, %c0_i32_0 : i32
    scf.if %2 {
      %cst_10 = arith.constant 0.000000e+00 : f32
      %12 = vector.broadcast %cst_10 : f32 to vector<256x128xf32>
      %c0_11 = arith.constant 0 : index
      %c0_12 = arith.constant 0 : index
      %13 = vector.load %arg6[%c0_11, %c0_12] : memref<256x128xf32, #tpu.memory_space<vmem>>, vector<256x128xf32>
      tpu.vector_store %arg6[%c0_11, %c0_12], %12 {strides = array<i32>} : memref<256x128xf32, #tpu.memory_space<vmem>>, vector<256x128xf32>,
    } else {
    }
    %c0 = arith.constant 0 : index
    %c0_1 = arith.constant 0 : index
    %3 = vector.load %arg6[%c0, %c0_1] : memref<256x128xf32, #tpu.memory_space<vmem>>, vector<256x128xf32>
    %c0_2 = arith.constant 0 : index
    %c0_3 = arith.constant 0 : index
    %4 = vector.load %arg2[%c0_2, %c0_3] : memref<256x256xbf16, #tpu.memory_space<vmem>>, vector<256x256xbf16>
    %c0_4 = arith.constant 0 : index
    %c0_5 = arith.constant 0 : index
    %5 = vector.load %arg3[%c0_4, %c0_5] : memref<256x128xbf16, #tpu.memory_space<vmem>>, vector<256x128xbf16>
    %cst = arith.constant dense<0.000000e+00> : vector<256x128xf32>
    %6 = tpu.matmul %4, %5, %cst {dimension_numbers = #tpu.dot_dimension_numbers<[1], [0], [0], [1], [0, 0, 1, 1], [], []>} : vector<256x256xbf16>, vector<256x128xbf16>, vector<256x128xf32> -> vector<256x128xf32>
    %7 = arith.addf %3, %6 : vector<256x128xf32>
    %c0_6 = arith.constant 0 : index
    %c0_7 = arith.constant 0 : index
    %8 = vector.load %arg6[%c0_6, %c0_7] : memref<256x128xf32, #tpu.memory_space<vmem>>, vector<256x128xf32>
    tpu.vector_store %arg6[%c0_6, %c0_7], %7 {strides = array<i32>} : memref<256x128xf32, #tpu.memory_space<vmem>>, vector<256x128xf32>,
    %c0_i32_8 = arith.constant 0 : i32
    %9 = arith.cmpi eq, %arg1, %c0_i32_8 : i32
    %10 = arith.extui %9 : i1 to i32
    %c0_i32_9 = arith.constant 0 : i32
    %11 = arith.cmpi ne, %10, %c0_i32_9 : i32
    scf.if %11 {
      %c0_10 = arith.constant 0 : index
      %c0_11 = arith.constant 0 : index
      %12 = vector.load %arg6[%c0_10, %c0_11] : memref<256x128xf32, #tpu.memory_space<vmem>>, vector<256x128xf32>
      %c0_12 = arith.constant 0 : index
      %c0_13 = arith.constant 0 : index
      %13 = vector.load %arg4[%c0_12, %c0_13] : memref<1x128xf32, #tpu.memory_space<vmem>>, vector<1x128xf32>
      %14 = vector.broadcast %13 : vector<1x128xf32> to vector<256x128xf32>
      %15 = arith.addf %12, %14 : vector<256x128xf32>
      %c0_14 = arith.constant 0 : index
      %c0_15 = arith.constant 0 : index
      %16 = vector.load %arg5[%c0_14, %c0_15] : memref<256x128xf32, #tpu.memory_space<vmem>>, vector<256x128xf32>
      tpu.vector_store %arg5[%c0_14, %c0_15], %15 {strides = array<i32>} : memref<256x128xf32, #tpu.memory_space<vmem>>, vector<256x128xf32>,
    } else {
    }
    return
  }
  func.func @transform_0(%arg0: i32, %arg1: i32) -> (i32, i32) {
    %c0_i32 = arith.constant 0 : i32
    return %arg0, %arg1 : i32, i32
  }
  func.func @transform_1(%arg0: i32, %arg1: i32) -> (i32, i32) {
    %c0_i32 = arith.constant 0 : i32
    %c0_i32_0 = arith.constant 0 : i32
    return %arg1, %c0_i32 : i32, i32
  }
  func.func @transform_2(%arg0: i32, %arg1: i32) -> (i32, i32) {
    %c0_i32 = arith.constant 0 : i32
    %c0_i32_0 = arith.constant 0 : i32
    %c0_i32_1 = arith.constant 0 : i32
    return %c0_i32, %c0_i32_0 : i32, i32
  }
  func.func @transform_3(%arg0: i32, %arg1: i32) -> (i32, i32) {
    %c0_i32 = arith.constant 0 : i32
    %c0_i32_0 = arith.constant 0 : i32
    return %arg0, %c0_i32 : i32, i32
  }
}

</mosaic_0001>

<llo_original>
// kernel: _forward_nchw.8
$region0: #{_forward_nchw.8}
  #allocation0 [shape = 'u32[]', space=smem, size = 0x4, offset = 0x4, fixed_abs, tag = 'smem constant byte address 0x4 - core index']
  #allocation1 [shape = 'u32[72,128]{1,0:T(1,128)}', space=vmem, size = 0x9000, scoped, tag = 'internal scratch']
  #allocation2 [shape = 'f32[256,128]{1,0:T(8,128)}', space=vmem, size = 0x20000, scoped, tag = 'scratch operand']
  %s0 = inlined_call_operand.vmem [shape: bf16[1024,128], index: 0, kind: input, shape index: {}]
  %s1 = inlined_call_operand.vmem [shape: bf16[128,128], index: 1, kind: input, shape index: {}]
  %s2 = inlined_call_operand.vmem [shape: f32[1,128], index: 2, kind: input, shape index: {}]
  %s3 = inlined_call_operand.vmem [shape: bf16[1024,128], index: 3, kind: output, shape index: {}]
  %s4 = sld [smem:[#allocation0]]
  $region53: #{_forward_nchw.8} parent=0
    _
  %s6 = ssub.s32 1, %s4
  %s7 = scalar_select 0, %s6, %s4
  loop: start=0, step=1, limit=6
  $region2: #{_forward_nchw.8} parent=0 // loop_pre_header
    _
  $region3: #{_forward_nchw.8} parent=0 // loop_header
    %s9 = sphi 0, %s13
    %p10 = scmp.ge.s32.totalorder %s9, 6
    %s16 = sphi 0, %s28
    %s17 = sphi 0, %s24
    %s18 = sphi 0, %s16
    %s19 = sphi 0, %s17
    %s20 = sphi 0, %s18
    %s21 = sphi 0, %s19
    %s33 = sphi 0, %s35
    %s36 = sphi 0, %s33
    %s37 = sphi 0, %s36
    %s53 = sphi 0, %s37
    %s59 = sphi 0, %s61
    %s62 = sphi 0, %s59
    %s63 = sphi 0, %s62
    %s79 = sphi 0, %s63
    %s83 = sphi 0, %s83
    %s85 = sphi 0, %s83
    %s86 = sphi 0, %s85
    %s100 = sphi 0, %s86
    %s106 = sphi 0, %s108
    %s109 = sphi 0, %s106
    %s110 = sphi 0, %s109
    %s126 = sphi 0, %s110
  $region4: #{_forward_nchw.8} parent=0 // loop_header_branch
    %12 = sbr.rel (%p10) target = $region8
  $region5: #{_forward_nchw.8} parent=0 // loop_body
    %s14 = ssub.s32 %s9, 1
    %s15 = ssub.s32 %s9, 2
    %s22 = sadd.s32 1, %s17
    %p23 = scmp.ge.s32.totalorder %s22, 1
    %s24 = scalar_select %p23, 0, %s22
    %s25 = sadd.s32 1, %s16
    %s26 = scalar_select %p23, %s25, %s16
    %p27 = scmp.ge.s32.totalorder %s26, 4
    %s28 = scalar_select %p27, 0, %s26
    %s29 = ssub.s32 %s16, %s28
    %s30 = ssub.s32 %s17, %s24
    %s31 = sor.u32 %s29, %s30
    %p32 = scmp.eq.s32.totalorder %s31, 0
    %s34 = sadd.s32 %s33, 1
    %s35 = scalar_select %p32, %s33, %s34
    %p38 = pneg %p32
    %p39 = scmp.eq.s32.totalorder %s9, 3
    %p40 = por %p38, %p39
    %p41 = scmp.ne.s32.totalorder %s33, %s36
    %p42 = scmp.eq.s32.totalorder %s9, 0
    %p43 = por %p41, %p42
    %p44 = scmp.ne.s32.totalorder %s33, %s36
    %p45 = scmp.eq.s32.totalorder %s14, 3
    %p46 = por %p44, %p45
    %p47 = scmp.ne.s32.totalorder %s36, %s37
    %p48 = scmp.eq.s32.totalorder %s14, 0
    %p49 = por %p47, %p48
    %p50 = scmp.ne.s32.totalorder %s36, %s37
    %p51 = scmp.eq.s32.totalorder %s15, 3
    %p52 = por %p50, %p51
    %p54 = scmp.ne.s32.totalorder %s37, %s53
    %p55 = scmp.eq.s32.totalorder %s15, 0
    %p56 = por %p54, %p55
    %s57 = ssub.s32 %s17, %s24
    %p58 = scmp.eq.s32.totalorder %s57, 0
    %s60 = sadd.s32 %s59, 1
    %s61 = scalar_select %p58, %s59, %s60
    %p64 = pneg %p58
    %p65 = scmp.eq.s32.totalorder %s9, 3
    %p66 = por %p64, %p65
    %p67 = scmp.ne.s32.totalorder %s59, %s62
    %p68 = scmp.eq.s32.totalorder %s9, 0
    %p69 = por %p67, %p68
    %p70 = scmp.ne.s32.totalorder %s59, %s62
    %p71 = scmp.eq.s32.totalorder %s14, 3
    %p72 = por %p70, %p71
    %p73 = scmp.ne.s32.totalorder %s62, %s63
    %p74 = scmp.eq.s32.totalorder %s14, 0
    %p75 = por %p73, %p74
    %p76 = scmp.ne.s32.totalorder %s62, %s63
    %p77 = scmp.eq.s32.totalorder %s15, 3
    %p78 = por %p76, %p77
    %p80 = scmp.ne.s32.totalorder %s63, %s79
    %p81 = scmp.eq.s32.totalorder %s15, 0
    %p82 = por %p80, %p81
    %s84 = sadd.s32 %s83, 1
    %p87 = scmp.eq.s32.totalorder %s9, 3
    %p88 = scmp.ne.s32.totalorder %s83, %s85
    %p89 = scmp.eq.s32.totalorder %s9, 0
    %p90 = por %p88, %p89
    %p91 = scmp.ne.s32.totalorder %s83, %s85
    %p92 = scmp.eq.s32.totalorder %s14, 3
    %p93 = por %p91, %p92
    %p94 = scmp.ne.s32.totalorder %s85, %s86
    %p95 = scmp.eq.s32.totalorder %s14, 0
    %p96 = por %p94, %p95
    %p97 = scmp.ne.s32.totalorder %s85, %s86
    %p98 = scmp.eq.s32.totalorder %s15, 3
    %p99 = por %p97, %p98
    %p101 = scmp.ne.s32.totalorder %s86, %s100
    %p102 = scmp.eq.s32.totalorder %s15, 0
    %p103 = por %p101, %p102
    %s104 = ssub.s32 %s16, %s28
    %p105 = scmp.eq.s32.totalorder %s104, 0
    %s107 = sadd.s32 %s106, 1
    %s108 = scalar_select %p105, %s106, %s107
    %p111 = pneg %p105
    %p112 = scmp.eq.s32.totalorder %s9, 3
    %p113 = por %p111, %p112
    %p114 = scmp.ne.s32.totalorder %s106, %s109
    %p115 = scmp.eq.s32.totalorder %s9, 0
    %p116 = por %p114, %p115
    %p117 = scmp.ne.s32.totalorder %s106, %s109
    %p118 = scmp.eq.s32.totalorder %s14, 3
    %p119 = por %p117, %p118
    %p120 = scmp.ne.s32.totalorder %s109, %s110
    %p121 = scmp.eq.s32.totalorder %s14, 0
    %p122 = por %p120, %p121
    %p123 = scmp.ne.s32.totalorder %s109, %s110
    %p124 = scmp.eq.s32.totalorder %s15, 3
    %p125 = por %p123, %p124
    %p127 = scmp.ne.s32.totalorder %s110, %s126
    %p128 = scmp.eq.s32.totalorder %s15, 0
    %p129 = por %p127, %p128
    %p130 = scmp.le.s32.totalorder 1, %s9
    %p131 = scmp.lt.s32.totalorder %s9, 5
    %p132 = pnand %p130, %p131
    %p133 = pneg %p132
    // Predicated region
    $region9: #{_forward_nchw.8} parent=5 // pred_check
      _
    $region10: #{_forward_nchw.8} parent=5 // pred_check_branch
      %135 = sbr.rel (%p132) target = $region12
    $region11: #{_forward_nchw.8} parent=5 // pred_region
      %s136 = ssub.s32 %s9, 1
      // Predicated region
      $region13: #{_forward_nchw.8} parent=11 // pred_check
        %p137 = pneg %p75
      $region14: #{_forward_nchw.8} parent=11 // pred_check_branch
        %139 = sbr.rel (%p137) target = $region16
      $region15: #{_forward_nchw.8} parent=11 // pred_region
        %s140 = smul.u32 16, %s19
        %p141 = scmp.lt.s32.totalorder %s140, 15
        %s142 = scalar_select %p141, %s140, 15
        %s143 = smul.addr %s142, 4
        %s144 = scalar_lea.vmem %s1, %s143
        %s145 = smul.u32 16, %s19
      $region16: #{_forward_nchw.8} parent=11 // pred_fallthru
        _
      // Predicated region
      $region17: #{_forward_nchw.8} parent=11 // pred_check
        %p146 = pneg %p96
      $region18: #{_forward_nchw.8} parent=11 // pred_check_branch
        %148 = sbr.rel (%p146) target = $region20
      $region19: #{_forward_nchw.8} parent=11 // pred_region
        _
      $region20: #{_forward_nchw.8} parent=11 // pred_fallthru
        _
    $region12: #{_forward_nchw.8} parent=5 // pred_fallthru
      _
    %p149 = scmp.lt.s32.totalorder %s9, 4
    // Predicated region
    $region21: #{_forward_nchw.8} parent=5 // pred_check
      %p150 = pneg %p149
    $region22: #{_forward_nchw.8} parent=5 // pred_check_branch
      %152 = sbr.rel (%p150) target = $region24
    $region23: #{_forward_nchw.8} parent=5 // pred_region
      // Predicated region
      $region25: #{_forward_nchw.8} parent=23 // pred_check
        %p153 = pneg %p43
      $region26: #{_forward_nchw.8} parent=23 // pred_check_branch
        %155 = sbr.rel (%p153) target = $region28
      $region27: #{_forward_nchw.8} parent=23 // pred_region
        %s156 = smul.u32 32, %s16
        %p157 = scmp.lt.s32.totalorder %s156, 127
        %s158 = scalar_select %p157, %s156, 127
        %p159 = scmp.lt.s32.totalorder %s17, 0
        %s160 = scalar_select %p159, %s17, 0
        %s161 = sadd.s32 %s160, %s158
        %s162 = smul.addr %s161, 4
        %s163 = scalar_lea.vmem %s0, %s162
        %s164 = smul.u32 32, %s16
      $region28: #{_forward_nchw.8} parent=23 // pred_fallthru
        _
    $region24: #{_forward_nchw.8} parent=5 // pred_fallthru
      _
    %p165 = scmp.le.s32.totalorder 1, %s9
    %p166 = scmp.lt.s32.totalorder %s9, 5
    %p167 = pnand %p165, %p166
    %p168 = pneg %p167
    // Predicated region
    $region29: #{_forward_nchw.8} parent=5 // pred_check
      _
    $region30: #{_forward_nchw.8} parent=5 // pred_check_branch
      %170 = sbr.rel (%p167) target = $region32
    $region31: #{_forward_nchw.8} parent=5 // pred_region
      %s171 = ssub.s32 %s9, 1
      %s172 = smul.u32 32, %s18
      %p173 = scmp.lt.s32.totalorder %s172, 127
      %s174 = scalar_select %p173, %s172, 127
      %p175 = scmp.lt.s32.totalorder %s19, 0
      %s176 = scalar_select %p175, %s19, 0
      %s177 = sadd.s32 %s176, %s174
      %s178 = smul.addr %s177, 4
      %s179 = scalar_lea.vmem %s0, %s178
      %p180 = pneg %p49
      %p181 = pneg %p46
      %s182 = smul.u32 16, %s19
      %p183 = scmp.lt.s32.totalorder %s182, 15
      %s184 = scalar_select %p183, %s182, 15
      %s185 = smul.addr %s184, 4
      %s186 = scalar_lea.vmem %s1, %s185
      %p187 = pneg %p75
      %p188 = pneg %p72
      %p189 = pneg %p96
      %p190 = pneg %p93
      %p191 = pneg %p122
      %p192 = pneg %p119
      %s193 = smul.u32 32, %s18
      %p194 = scmp.lt.s32.totalorder %s193, 127
      %s195 = scalar_select %p194, %s193, 127
      %s196 = smul.addr %s195, 4
      %s197 = scalar_lea.vmem %s3, %s196
      %s198 = smul.u32 32, %s18
      %p199 = scmp.lt.s32.totalorder %s198, 127
      %s200 = scalar_select %p199, %s198, 127
      %p201 = scmp.lt.s32.totalorder %s19, 0
      %s202 = scalar_select %p201, %s19, 0
      %s203 = sadd.s32 %s202, %s200
      %s204 = smul.addr %s203, 4
      %s205 = scalar_lea.vmem %s0, %s204
      %s206 = smul.u32 32, %s18
      %s207 = smul.u32 16, %s19
      %p208 = scmp.lt.s32.totalorder %s207, 15
      %s209 = scalar_select %p208, %s207, 15
      %s210 = smul.addr %s209, 4
      %s211 = scalar_lea.vmem %s1, %s210
      %s212 = smul.u32 16, %s19
      %s213 = smul.u32 32, %s18
      %p214 = scmp.lt.s32.totalorder %s213, 127
      %s215 = scalar_select %p214, %s213, 127
      %s216 = smul.addr %s215, 4
      %s217 = scalar_lea.vmem %s3, %s216
      %s218 = smul.u32 32, %s18
      %p219 = scmp.eq.s32.totalorder %s19, 0
      // Predicated region
      $region33: #{_forward_nchw.8} parent=31 // pred_check
        %p220 = pneg %p219
      $region34: #{_forward_nchw.8} parent=31 // pred_check_branch
        %222 = sbr.rel (%p220) target = $region36
      $region35: #{_forward_nchw.8} parent=31 // pred_region
        %223 = vst [vmem:[#allocation2] sm:$0xff] 0.0
        %224 = vst [vmem:[#allocation2 + $0x8] sm:$0xff] 0.0
        %225 = vst [vmem:[#allocation2 + $0x10] sm:$0xff] 0.0
        %226 = vst [vmem:[#allocation2 + $0x18] sm:$0xff] 0.0
        %227 = vst [vmem:[#allocation2 + $0x20] sm:$0xff] 0.0
        %228 = vst [vmem:[#allocation2 + $0x28] sm:$0xff] 0.0
        %229 = vst [vmem:[#allocation2 + $0x30] sm:$0xff] 0.0
        %230 = vst [vmem:[#allocation2 + $0x38] sm:$0xff] 0.0
        %231 = vst [vmem:[#allocation2 + $0x40] sm:$0xff] 0.0
        %232 = vst [vmem:[#allocation2 + $0x48] sm:$0xff] 0.0
        %233 = vst [vmem:[#allocation2 + $0x50] sm:$0xff] 0.0
        %234 = vst [vmem:[#allocation2 + $0x58] sm:$0xff] 0.0
        %235 = vst [vmem:[#allocation2 + $0x60] sm:$0xff] 0.0
        %236 = vst [vmem:[#allocation2 + $0x68] sm:$0xff] 0.0
        %237 = vst [vmem:[#allocation2 + $0x70] sm:$0xff] 0.0
        %238 = vst [vmem:[#allocation2 + $0x78] sm:$0xff] 0.0
        %239 = vst [vmem:[#allocation2 + $0x80] sm:$0xff] 0.0
        %240 = vst [vmem:[#allocation2 + $0x88] sm:$0xff] 0.0
        %241 = vst [vmem:[#allocation2 + $0x90] sm:$0xff] 0.0
        %242 = vst [vmem:[#allocation2 + $0x98] sm:$0xff] 0.0
        %243 = vst [vmem:[#allocation2 + $0xa0] sm:$0xff] 0.0
        %244 = vst [vmem:[#allocation2 + $0xa8] sm:$0xff] 0.0
        %245 = vst [vmem:[#allocation2 + $0xb0] sm:$0xff] 0.0
        %246 = vst [vmem:[#allocation2 + $0xb8] sm:$0xff] 0.0
        %247 = vst [vmem:[#allocation2 + $0xc0] sm:$0xff] 0.0
        %248 = vst [vmem:[#allocation2 + $0xc8] sm:$0xff] 0.0
        %249 = vst [vmem:[#allocation2 + $0xd0] sm:$0xff] 0.0
        %250 = vst [vmem:[#allocation2 + $0xd8] sm:$0xff] 0.0
        %251 = vst [vmem:[#allocation2 + $0xe0] sm:$0xff] 0.0
        %252 = vst [vmem:[#allocation2 + $0xe8] sm:$0xff] 0.0
        %253 = vst [vmem:[#allocation2 + $0xf0] sm:$0xff] 0.0
        %254 = vst [vmem:[#allocation2 + $0xf8] sm:$0xff] 0.0
      $region36: #{_forward_nchw.8} parent=31 // pred_fallthru
        _
      %v255 = vld [vmem:[#allocation2] sm:$0xff]
      %v256 = vld [vmem:[#allocation2 + $0x8] sm:$0xff]
      %v257 = vld [vmem:[#allocation2 + $0x10] sm:$0xff]
      %v258 = vld [vmem:[#allocation2 + $0x18] sm:$0xff]
      %v259 = vld [vmem:[#allocation2 + $0x20] sm:$0xff]
      %v260 = vld [vmem:[#allocation2 + $0x28] sm:$0xff]
      %v261 = vld [vmem:[#allocation2 + $0x30] sm:$0xff]
      %v262 = vld [vmem:[#allocation2 + $0x38] sm:$0xff]
      %v263 = vld [vmem:[#allocation2 + $0x40] sm:$0xff]
      %v264 = vld [vmem:[#allocation2 + $0x48] sm:$0xff]
      %v265 = vld [vmem:[#allocation2 + $0x50] sm:$0xff]
      %v266 = vld [vmem:[#allocation2 + $0x58] sm:$0xff]
      %v267 = vld [vmem:[#allocation2 + $0x60] sm:$0xff]
      %v268 = vld [vmem:[#allocation2 + $0x68] sm:$0xff]
      %v269 = vld [vmem:[#allocation2 + $0x70] sm:$0xff]
      %v270 = vld [vmem:[#allocation2 + $0x78] sm:$0xff]
      %v271 = vld [vmem:[#allocation2 + $0x80] sm:$0xff]
      %v272 = vld [vmem:[#allocation2 + $0x88] sm:$0xff]
      %v273 = vld [vmem:[#allocation2 + $0x90] sm:$0xff]
      %v274 = vld [vmem:[#allocation2 + $0x98] sm:$0xff]
      %v275 = vld [vmem:[#allocation2 + $0xa0] sm:$0xff]
      %v276 = vld [vmem:[#allocation2 + $0xa8] sm:$0xff]
      %v277 = vld [vmem:[#allocation2 + $0xb0] sm:$0xff]
      %v278 = vld [vmem:[#allocation2 + $0xb8] sm:$0xff]
      %v279 = vld [vmem:[#allocation2 + $0xc0] sm:$0xff]
      %v280 = vld [vmem:[#allocation2 + $0xc8] sm:$0xff]
      %v281 = vld [vmem:[#allocation2 + $0xd0] sm:$0xff]
      %v282 = vld [vmem:[#allocation2 + $0xd8] sm:$0xff]
      %v283 = vld [vmem:[#allocation2 + $0xe0] sm:$0xff]
      %v284 = vld [vmem:[#allocation2 + $0xe8] sm:$0xff]
      %v285 = vld [vmem:[#allocation2 + $0xf0] sm:$0xff]
      %v286 = vld [vmem:[#allocation2 + $0xf8] sm:$0xff]
      %v287 = vld [vmem:[%s205] sm:$0xf]
      %v288 = vld [vmem:[%s205 + $0x4] sm:$0xf]
      %v289 = vld [vmem:[%s205 + $0x8] sm:$0xf]
      %v290 = vld [vmem:[%s205 + $0xc] sm:$0xf]
      %v291 = vld [vmem:[%s205 + $0x10] sm:$0xf]
      %v292 = vld [vmem:[%s205 + $0x14] sm:$0xf]
      %v293 = vld [vmem:[%s205 + $0x18] sm:$0xf]
      %v294 = vld [vmem:[%s205 + $0x1c] sm:$0xf]
      %v295 = vld [vmem:[%s205 + $0x20] sm:$0xf]
      %v296 = vld [vmem:[%s205 + $0x24] sm:$0xf]
      %v297 = vld [vmem:[%s205 + $0x28] sm:$0xf]
      %v298 = vld [vmem:[%s205 + $0x2c] sm:$0xf]
      %v299 = vld [vmem:[%s205 + $0x30] sm:$0xf]
      %v300 = vld [vmem:[%s205 + $0x34] sm:$0xf]
      %v301 = vld [vmem:[%s205 + $0x38] sm:$0xf]
      %v302 = vld [vmem:[%s205 + $0x3c] sm:$0xf]
      %v303 = vld [vmem:[%s205 + $0x40] sm:$0xf]
      %v304 = vld [vmem:[%s205 + $0x44] sm:$0xf]
      %v305 = vld [vmem:[%s205 + $0x48] sm:$0xf]
      %v306 = vld [vmem:[%s205 + $0x4c] sm:$0xf]
      %v307 = vld [vmem:[%s205 + $0x50] sm:$0xf]
      %v308 = vld [vmem:[%s205 + $0x54] sm:$0xf]
      %v309 = vld [vmem:[%s205 + $0x58] sm:$0xf]
      %v310 = vld [vmem:[%s205 + $0x5c] sm:$0xf]
      %v311 = vld [vmem:[%s205 + $0x60] sm:$0xf]
      %v312 = vld [vmem:[%s205 + $0x64] sm:$0xf]
      %v313 = vld [vmem:[%s205 + $0x68] sm:$0xf]
      %v314 = vld [vmem:[%s205 + $0x6c] sm:$0xf]
      %v315 = vld [vmem:[%s205 + $0x70] sm:$0xf]
      %v316 = vld [vmem:[%s205 + $0x74] sm:$0xf]
      %v317 = vld [vmem:[%s205 + $0x78] sm:$0xf]
      %v318 = vld [vmem:[%s205 + $0x7c] sm:$0xf]
      %v319 = vld [vmem:[%s211] sm:$0xf]
      %v320 = vld [vmem:[%s211 + $0x4] sm:$0xf]
      %v321 = vld [vmem:[%s211 + $0x8] sm:$0xf]
      %v322 = vld [vmem:[%s211 + $0xc] sm:$0xf]
      %v323 = vld [vmem:[%s211 + $0x10] sm:$0xf]
      %v324 = vld [vmem:[%s211 + $0x14] sm:$0xf]
      %v325 = vld [vmem:[%s211 + $0x18] sm:$0xf]
      %v326 = vld [vmem:[%s211 + $0x1c] sm:$0xf]
      %v327 = vld [vmem:[%s211 + $0x20] sm:$0xf]
      %v328 = vld [vmem:[%s211 + $0x24] sm:$0xf]
      %v329 = vld [vmem:[%s211 + $0x28] sm:$0xf]
      %v330 = vld [vmem:[%s211 + $0x2c] sm:$0xf]
      %v331 = vld [vmem:[%s211 + $0x30] sm:$0xf]
      %v332 = vld [vmem:[%s211 + $0x34] sm:$0xf]
      %v333 = vld [vmem:[%s211 + $0x38] sm:$0xf]
      %v334 = vld [vmem:[%s211 + $0x3c] sm:$0xf]
      %v367 = vunpack.c.l.b16 %v287
      %v368 = vunpack.c.l.b16 %v288
      %v369 = vunpack.c.l.b16 %v289
      %v370 = vunpack.c.l.b16 %v290
      %v371 = vunpack.c.l.b16 %v291
      %v372 = vunpack.c.l.b16 %v292
      %v373 = vunpack.c.l.b16 %v293
      %v374 = vunpack.c.l.b16 %v294
      %v375 = vunpack.c.l.b16 %v295
      %v376 = vunpack.c.l.b16 %v296
      %v377 = vunpack.c.l.b16 %v297
      %v378 = vunpack.c.l.b16 %v298
      %v379 = vunpack.c.l.b16 %v299
      %v380 = vunpack.c.l.b16 %v300
      %v381 = vunpack.c.l.b16 %v301
      %v382 = vunpack.c.l.b16 %v302
      %v383 = vunpack.c.l.b16 %v303
      %v384 = vunpack.c.l.b16 %v304
      %v385 = vunpack.c.l.b16 %v305
      %v386 = vunpack.c.l.b16 %v306
      %v387 = vunpack.c.l.b16 %v307
      %v388 = vunpack.c.l.b16 %v308
      %v389 = vunpack.c.l.b16 %v309
      %v390 = vunpack.c.l.b16 %v310
      %v391 = vunpack.c.l.b16 %v311
      %v392 = vunpack.c.l.b16 %v312
      %v393 = vunpack.c.l.b16 %v313
      %v394 = vunpack.c.l.b16 %v314
      %v395 = vunpack.c.l.b16 %v315
      %v396 = vunpack.c.l.b16 %v316
      %v397 = vunpack.c.l.b16 %v317
      %v398 = vunpack.c.l.b16 %v318
      %v399 = vpack.c.b16 %v368, %v367
      %v400 = vpack.c.b16 %v370, %v369
      %v401 = vpack.c.b16 %v372, %v371
      %v402 = vpack.c.b16 %v374, %v373
      %v403 = vpack.c.b16 %v376, %v375
      %v404 = vpack.c.b16 %v378, %v377
      %v405 = vpack.c.b16 %v380, %v379
      %v406 = vpack.c.b16 %v382, %v381
      %v407 = vpack.c.b16 %v384, %v383
      %v408 = vpack.c.b16 %v386, %v385
      %v409 = vpack.c.b16 %v388, %v387
      %v410 = vpack.c.b16 %v390, %v389
      %v411 = vpack.c.b16 %v392, %v391
      %v412 = vpack.c.b16 %v394, %v393
      %v413 = vpack.c.b16 %v396, %v395
      %v414 = vpack.c.b16 %v398, %v397
      %v447 = vunpack.c.l.b16 %v319
      %v448 = vunpack.c.l.b16 %v320
      %v449 = vunpack.c.l.b16 %v321
      %v450 = vunpack.c.l.b16 %v322
      %v451 = vunpack.c.l.b16 %v323
      %v452 = vunpack.c.l.b16 %v324
      %v453 = vunpack.c.l.b16 %v325
      %v454 = vunpack.c.l.b16 %v326
      %v455 = vunpack.c.l.b16 %v327
      %v456 = vunpack.c.l.b16 %v328
      %v457 = vunpack.c.l.b16 %v329
      %v458 = vunpack.c.l.b16 %v330
      %v459 = vunpack.c.l.b16 %v331
      %v460 = vunpack.c.l.b16 %v332
      %v461 = vunpack.c.l.b16 %v333
      %v462 = vunpack.c.l.b16 %v334
      %v463 = vpack.c.b16 %v448, %v447
      %v464 = vpack.c.b16 %v450, %v449
      %v465 = vpack.c.b16 %v452, %v451
      %v466 = vpack.c.b16 %v454, %v453
      %v467 = vpack.c.b16 %v456, %v455
      %v468 = vpack.c.b16 %v458, %v457
      %v469 = vpack.c.b16 %v460, %v459
      %v470 = vpack.c.b16 %v462, %v461
      %479 = vmatpush.bf16.msra.mxu0 %v470
      %480 = vmatpush.bf16.msra.mxu0 %v469
      %481 = vmatpush.bf16.msra.mxu0 %v468
      %482 = vmatpush.bf16.msra.mxu0 %v467
      %483 = vmatpush.bf16.msra.mxu0 %v466
      %484 = vmatpush.bf16.msra.mxu0 %v465
      %485 = vmatpush.bf16.msra.mxu0 %v464
      %486 = vmatpush.bf16.msra.mxu0 %v463
      %487 = vmatmul.bf16.gmra.mxu0 %v399
      %v488 = vpop.f32.mrf.mxu0
      %v489 = vadd.f32 0.0, %v488
      %v490 = vpop.f32.mrf.mxu0
      %v491 = vadd.f32 0.0, %v490
      %492 = vmatmul.bf16.gmra.mxu0 %v400
      %v493 = vpop.f32.mrf.mxu0
      %v494 = vadd.f32 0.0, %v493
      %v495 = vpop.f32.mrf.mxu0
      %v496 = vadd.f32 0.0, %v495
      %497 = vmatmul.bf16.gmra.mxu0 %v401
      %v498 = vpop.f32.mrf.mxu0
      %v499 = vadd.f32 0.0, %v498
      %v500 = vpop.f32.mrf.mxu0
      %v501 = vadd.f32 0.0, %v500
      %502 = vmatmul.bf16.gmra.mxu0 %v402
      %v503 = vpop.f32.mrf.mxu0
      %v504 = vadd.f32 0.0, %v503
      %v505 = vpop.f32.mrf.mxu0
      %v506 = vadd.f32 0.0, %v505
      %507 = vmatmul.bf16.gmra.mxu0 %v403
      %v508 = vpop.f32.mrf.mxu0
      %v509 = vadd.f32 0.0, %v508
      %v510 = vpop.f32.mrf.mxu0
      %v511 = vadd.f32 0.0, %v510
      %512 = vmatmul.bf16.gmra.mxu0 %v404
      %v513 = vpop.f32.mrf.mxu0
      %v514 = vadd.f32 0.0, %v513
      %v515 = vpop.f32.mrf.mxu0
      %v516 = vadd.f32 0.0, %v515
      %517 = vmatmul.bf16.gmra.mxu0 %v405
      %v518 = vpop.f32.mrf.mxu0
      %v519 = vadd.f32 0.0, %v518
      %v520 = vpop.f32.mrf.mxu0
      %v521 = vadd.f32 0.0, %v520
      %522 = vmatmul.bf16.gmra.mxu0 %v406
      %v523 = vpop.f32.mrf.mxu0
      %v524 = vadd.f32 0.0, %v523
      %v525 = vpop.f32.mrf.mxu0
      %v526 = vadd.f32 0.0, %v525
      %527 = vmatmul.bf16.gmra.mxu0 %v407
      %v528 = vpop.f32.mrf.mxu0
      %v529 = vadd.f32 0.0, %v528
      %v530 = vpop.f32.mrf.mxu0
      %v531 = vadd.f32 0.0, %v530
      %532 = vmatmul.bf16.gmra.mxu0 %v408
      %v533 = vpop.f32.mrf.mxu0
      %v534 = vadd.f32 0.0, %v533
      %v535 = vpop.f32.mrf.mxu0
      %v536 = vadd.f32 0.0, %v535
      %537 = vmatmul.bf16.gmra.mxu0 %v409
      %v538 = vpop.f32.mrf.mxu0
      %v539 = vadd.f32 0.0, %v538
      %v540 = vpop.f32.mrf.mxu0
      %v541 = vadd.f32 0.0, %v540
      %542 = vmatmul.bf16.gmra.mxu0 %v410
      %v543 = vpop.f32.mrf.mxu0
      %v544 = vadd.f32 0.0, %v543
      %v545 = vpop.f32.mrf.mxu0
      %v546 = vadd.f32 0.0, %v545
      %547 = vmatmul.bf16.gmra.mxu0 %v411
      %v548 = vpop.f32.mrf.mxu0
      %v549 = vadd.f32 0.0, %v548
      %v550 = vpop.f32.mrf.mxu0
      %v551 = vadd.f32 0.0, %v550
      %552 = vmatmul.bf16.gmra.mxu0 %v412
      %v553 = vpop.f32.mrf.mxu0
      %v554 = vadd.f32 0.0, %v553
      %v555 = vpop.f32.mrf.mxu0
      %v556 = vadd.f32 0.0, %v555
      %557 = vmatmul.bf16.gmra.mxu0 %v413
      %v558 = vpop.f32.mrf.mxu0
      %v559 = vadd.f32 0.0, %v558
      %v560 = vpop.f32.mrf.mxu0
      %v561 = vadd.f32 0.0, %v560
      %562 = vmatmul.bf16.gmra.mxu0 %v414
      %v563 = vpop.f32.mrf.mxu0
      %v564 = vadd.f32 0.0, %v563
      %v565 = vpop.f32.mrf.mxu0
      %v566 = vadd.f32 0.0, %v565
      %567 = vdwg.mxu0
      %v568 = vadd.f32 %v255, %v489
      %v569 = vadd.f32 %v256, %v491
      %v570 = vadd.f32 %v257, %v494
      %v571 = vadd.f32 %v258, %v496
      %v572 = vadd.f32 %v259, %v499
      %v573 = vadd.f32 %v260, %v501
      %v574 = vadd.f32 %v261, %v504
      %v575 = vadd.f32 %v262, %v506
      %v576 = vadd.f32 %v263, %v509
      %v577 = vadd.f32 %v264, %v511
      %v578 = vadd.f32 %v265, %v514
      %v579 = vadd.f32 %v266, %v516
      %v580 = vadd.f32 %v267, %v519
      %v581 = vadd.f32 %v268, %v521
      %v582 = vadd.f32 %v269, %v524
      %v583 = vadd.f32 %v270, %v526
      %v584 = vadd.f32 %v271, %v529
      %v585 = vadd.f32 %v272, %v531
      %v586 = vadd.f32 %v273, %v534
      %v587 = vadd.f32 %v274, %v536
      %v588 = vadd.f32 %v275, %v539
      %v589 = vadd.f32 %v276, %v541
      %v590 = vadd.f32 %v277, %v544
      %v591 = vadd.f32 %v278, %v546
      %v592 = vadd.f32 %v279, %v549
      %v593 = vadd.f32 %v280, %v551
      %v594 = vadd.f32 %v281, %v554
      %v595 = vadd.f32 %v282, %v556
      %v596 = vadd.f32 %v283, %v559
      %v597 = vadd.f32 %v284, %v561
      %v598 = vadd.f32 %v285, %v564
      %v599 = vadd.f32 %v286, %v566
      %600 = vst [vmem:[#allocation2] sm:$0xff] %v568
      %601 = vst [vmem:[#allocation2 + $0x8] sm:$0xff] %v569
      %602 = vst [vmem:[#allocation2 + $0x10] sm:$0xff] %v570
      %603 = vst [vmem:[#allocation2 + $0x18] sm:$0xff] %v571
      %604 = vst [vmem:[#allocation2 + $0x20] sm:$0xff] %v572
      %605 = vst [vmem:[#allocation2 + $0x28] sm:$0xff] %v573
      %606 = vst [vmem:[#allocation2 + $0x30] sm:$0xff] %v574
      %607 = vst [vmem:[#allocation2 + $0x38] sm:$0xff] %v575
      %608 = vst [vmem:[#allocation2 + $0x40] sm:$0xff] %v576
      %609 = vst [vmem:[#allocation2 + $0x48] sm:$0xff] %v577
      %610 = vst [vmem:[#allocation2 + $0x50] sm:$0xff] %v578
      %611 = vst [vmem:[#allocation2 + $0x58] sm:$0xff] %v579
      %612 = vst [vmem:[#allocation2 + $0x60] sm:$0xff] %v580
      %613 = vst [vmem:[#allocation2 + $0x68] sm:$0xff] %v581
      %614 = vst [vmem:[#allocation2 + $0x70] sm:$0xff] %v582
      %615 = vst [vmem:[#allocation2 + $0x78] sm:$0xff] %v583
      %616 = vst [vmem:[#allocation2 + $0x80] sm:$0xff] %v584
      %617 = vst [vmem:[#allocation2 + $0x88] sm:$0xff] %v585
      %618 = vst [vmem:[#allocation2 + $0x90] sm:$0xff] %v586
      %619 = vst [vmem:[#allocation2 + $0x98] sm:$0xff] %v587
      %620 = vst [vmem:[#allocation2 + $0xa0] sm:$0xff] %v588
      %621 = vst [vmem:[#allocation2 + $0xa8] sm:$0xff] %v589
      %622 = vst [vmem:[#allocation2 + $0xb0] sm:$0xff] %v590
      %623 = vst [vmem:[#allocation2 + $0xb8] sm:$0xff] %v591
      %624 = vst [vmem:[#allocation2 + $0xc0] sm:$0xff] %v592
      %625 = vst [vmem:[#allocation2 + $0xc8] sm:$0xff] %v593
      %626 = vst [vmem:[#allocation2 + $0xd0] sm:$0xff] %v594
      %627 = vst [vmem:[#allocation2 + $0xd8] sm:$0xff] %v595
      %628 = vst [vmem:[#allocation2 + $0xe0] sm:$0xff] %v596
      %629 = vst [vmem:[#allocation2 + $0xe8] sm:$0xff] %v597
      %630 = vst [vmem:[#allocation2 + $0xf0] sm:$0xff] %v598
      %631 = vst [vmem:[#allocation2 + $0xf8] sm:$0xff] %v599
      // Predicated region
      $region37: #{_forward_nchw.8} parent=31 // pred_check
        %p632 = pneg %p219
      $region38: #{_forward_nchw.8} parent=31 // pred_check_branch
        %634 = sbr.rel (%p632) target = $region40
      $region39: #{_forward_nchw.8} parent=31 // pred_region
        %v635 = vld [vmem:[#allocation2] sm:$0xff]
        %v636 = vld [vmem:[#allocation2 + $0x8] sm:$0xff]
        %v637 = vld [vmem:[#allocation2 + $0x10] sm:$0xff]
        %v638 = vld [vmem:[#allocation2 + $0x18] sm:$0xff]
        %v639 = vld [vmem:[#allocation2 + $0x20] sm:$0xff]
        %v640 = vld [vmem:[#allocation2 + $0x28] sm:$0xff]
        %v641 = vld [vmem:[#allocation2 + $0x30] sm:$0xff]
        %v642 = vld [vmem:[#allocation2 + $0x38] sm:$0xff]
        %v643 = vld [vmem:[#allocation2 + $0x40] sm:$0xff]
        %v644 = vld [vmem:[#allocation2 + $0x48] sm:$0xff]
        %v645 = vld [vmem:[#allocation2 + $0x50] sm:$0xff]
        %v646 = vld [vmem:[#allocation2 + $0x58] sm:$0xff]
        %v647 = vld [vmem:[#allocation2 + $0x60] sm:$0xff]
        %v648 = vld [vmem:[#allocation2 + $0x68] sm:$0xff]
        %v649 = vld [vmem:[#allocation2 + $0x70] sm:$0xff]
        %v650 = vld [vmem:[#allocation2 + $0x78] sm:$0xff]
        %v651 = vld [vmem:[#allocation2 + $0x80] sm:$0xff]
        %v652 = vld [vmem:[#allocation2 + $0x88] sm:$0xff]
        %v653 = vld [vmem:[#allocation2 + $0x90] sm:$0xff]
        %v654 = vld [vmem:[#allocation2 + $0x98] sm:$0xff]
        %v655 = vld [vmem:[#allocation2 + $0xa0] sm:$0xff]
        %v656 = vld [vmem:[#allocation2 + $0xa8] sm:$0xff]
        %v657 = vld [vmem:[#allocation2 + $0xb0] sm:$0xff]
        %v658 = vld [vmem:[#allocation2 + $0xb8] sm:$0xff]
        %v659 = vld [vmem:[#allocation2 + $0xc0] sm:$0xff]
        %v660 = vld [vmem:[#allocation2 + $0xc8] sm:$0xff]
        %v661 = vld [vmem:[#allocation2 + $0xd0] sm:$0xff]
        %v662 = vld [vmem:[#allocation2 + $0xd8] sm:$0xff]
        %v663 = vld [vmem:[#allocation2 + $0xe0] sm:$0xff]
        %v664 = vld [vmem:[#allocation2 + $0xe8] sm:$0xff]
        %v665 = vld [vmem:[#allocation2 + $0xf0] sm:$0xff]
        %v666 = vld [vmem:[#allocation2 + $0xf8] sm:$0xff]
        %v667 = vld [vmem:[%s2] sm:$0x1]
        %v669 = vperm.slane %v667, 0
        %v671 = vadd.f32 %v635, %v669
        %v672 = vadd.f32 %v636, %v669
        %v673 = vadd.f32 %v637, %v669
        %v674 = vadd.f32 %v638, %v669
        %v675 = vadd.f32 %v639, %v669
        %v676 = vadd.f32 %v640, %v669
        %v677 = vadd.f32 %v641, %v669
        %v678 = vadd.f32 %v642, %v669
        %v679 = vadd.f32 %v643, %v669
        %v680 = vadd.f32 %v644, %v669
        %v681 = vadd.f32 %v645, %v669
        %v682 = vadd.f32 %v646, %v669
        %v683 = vadd.f32 %v647, %v669
        %v684 = vadd.f32 %v648, %v669
        %v685 = vadd.f32 %v649, %v669
        %v686 = vadd.f32 %v650, %v669
        %v687 = vadd.f32 %v651, %v669
        %v688 = vadd.f32 %v652, %v669
        %v689 = vadd.f32 %v653, %v669
        %v690 = vadd.f32 %v654, %v669
        %v691 = vadd.f32 %v655, %v669
        %v692 = vadd.f32 %v656, %v669
        %v693 = vadd.f32 %v657, %v669
        %v694 = vadd.f32 %v658, %v669
        %v695 = vadd.f32 %v659, %v669
        %v696 = vadd.f32 %v660, %v669
        %v697 = vadd.f32 %v661, %v669
        %v698 = vadd.f32 %v662, %v669
        %v699 = vadd.f32 %v663, %v669
        %v700 = vadd.f32 %v664, %v669
        %v701 = vadd.f32 %v665, %v669
        %v702 = vadd.f32 %v666, %v669
        %v703 = vmax.f32 %v671, 0.0
        %v704 = vmax.f32 %v672, 0.0
        %v705 = vmax.f32 %v673, 0.0
        %v706 = vmax.f32 %v674, 0.0
        %v707 = vmax.f32 %v675, 0.0
        %v708 = vmax.f32 %v676, 0.0
        %v709 = vmax.f32 %v677, 0.0
        %v710 = vmax.f32 %v678, 0.0
        %v711 = vmax.f32 %v679, 0.0
        %v712 = vmax.f32 %v680, 0.0
        %v713 = vmax.f32 %v681, 0.0
        %v714 = vmax.f32 %v682, 0.0
        %v715 = vmax.f32 %v683, 0.0
        %v716 = vmax.f32 %v684, 0.0
        %v717 = vmax.f32 %v685, 0.0
        %v718 = vmax.f32 %v686, 0.0
        %v719 = vmax.f32 %v687, 0.0
        %v720 = vmax.f32 %v688, 0.0
        %v721 = vmax.f32 %v689, 0.0
        %v722 = vmax.f32 %v690, 0.0
        %v723 = vmax.f32 %v691, 0.0
        %v724 = vmax.f32 %v692, 0.0
        %v725 = vmax.f32 %v693, 0.0
        %v726 = vmax.f32 %v694, 0.0
        %v727 = vmax.f32 %v695, 0.0
        %v728 = vmax.f32 %v696, 0.0
        %v729 = vmax.f32 %v697, 0.0
        %v730 = vmax.f32 %v698, 0.0
        %v731 = vmax.f32 %v699, 0.0
        %v732 = vmax.f32 %v700, 0.0
        %v733 = vmax.f32 %v701, 0.0
        %v734 = vmax.f32 %v702, 0.0
        %v735 = vpack.c.bf16 %v703, %v703
        %v736 = vpack.c.bf16 %v704, %v704
        %v737 = vpack.c.bf16 %v705, %v705
        %v738 = vpack.c.bf16 %v706, %v706
        %v739 = vpack.c.bf16 %v707, %v707
        %v740 = vpack.c.bf16 %v708, %v708
        %v741 = vpack.c.bf16 %v709, %v709
        %v742 = vpack.c.bf16 %v710, %v710
        %v743 = vpack.c.bf16 %v711, %v711
        %v744 = vpack.c.bf16 %v712, %v712
        %v745 = vpack.c.bf16 %v713, %v713
        %v746 = vpack.c.bf16 %v714, %v714
        %v747 = vpack.c.bf16 %v715, %v715
        %v748 = vpack.c.bf16 %v716, %v716
        %v749 = vpack.c.bf16 %v717, %v717
        %v750 = vpack.c.bf16 %v718, %v718
        %v751 = vpack.c.bf16 %v719, %v719
        %v752 = vpack.c.bf16 %v720, %v720
        %v753 = vpack.c.bf16 %v721, %v721
        %v754 = vpack.c.bf16 %v722, %v722
        %v755 = vpack.c.bf16 %v723, %v723
        %v756 = vpack.c.bf16 %v724, %v724
        %v757 = vpack.c.bf16 %v725, %v725
        %v758 = vpack.c.bf16 %v726, %v726
        %v759 = vpack.c.bf16 %v727, %v727
        %v760 = vpack.c.bf16 %v728, %v728
        %v761 = vpack.c.bf16 %v729, %v729
        %v762 = vpack.c.bf16 %v730, %v730
        %v763 = vpack.c.bf16 %v731, %v731
        %v764 = vpack.c.bf16 %v732, %v732
        %v765 = vpack.c.bf16 %v733, %v733
        %v766 = vpack.c.bf16 %v734, %v734
        %767 = vst [vmem:[%s217] sm:$0xf] %v735
        %768 = vst [vmem:[%s217 + $0x4] sm:$0xf] %v736
        %769 = vst [vmem:[%s217 + $0x8] sm:$0xf] %v737
        %770 = vst [vmem:[%s217 + $0xc] sm:$0xf] %v738
        %771 = vst [vmem:[%s217 + $0x10] sm:$0xf] %v739
        %772 = vst [vmem:[%s217 + $0x14] sm:$0xf] %v740
        %773 = vst [vmem:[%s217 + $0x18] sm:$0xf] %v741
        %774 = vst [vmem:[%s217 + $0x1c] sm:$0xf] %v742
        %775 = vst [vmem:[%s217 + $0x20] sm:$0xf] %v743
        %776 = vst [vmem:[%s217 + $0x24] sm:$0xf] %v744
        %777 = vst [vmem:[%s217 + $0x28] sm:$0xf] %v745
        %778 = vst [vmem:[%s217 + $0x2c] sm:$0xf] %v746
        %779 = vst [vmem:[%s217 + $0x30] sm:$0xf] %v747
        %780 = vst [vmem:[%s217 + $0x34] sm:$0xf] %v748
        %781 = vst [vmem:[%s217 + $0x38] sm:$0xf] %v749
        %782 = vst [vmem:[%s217 + $0x3c] sm:$0xf] %v750
        %783 = vst [vmem:[%s217 + $0x40] sm:$0xf] %v751
        %784 = vst [vmem:[%s217 + $0x44] sm:$0xf] %v752
        %785 = vst [vmem:[%s217 + $0x48] sm:$0xf] %v753
        %786 = vst [vmem:[%s217 + $0x4c] sm:$0xf] %v754
        %787 = vst [vmem:[%s217 + $0x50] sm:$0xf] %v755
        %788 = vst [vmem:[%s217 + $0x54] sm:$0xf] %v756
        %789 = vst [vmem:[%s217 + $0x58] sm:$0xf] %v757
        %790 = vst [vmem:[%s217 + $0x5c] sm:$0xf] %v758
        %791 = vst [vmem:[%s217 + $0x60] sm:$0xf] %v759
        %792 = vst [vmem:[%s217 + $0x64] sm:$0xf] %v760
        %793 = vst [vmem:[%s217 + $0x68] sm:$0xf] %v761
        %794 = vst [vmem:[%s217 + $0x6c] sm:$0xf] %v762
        %795 = vst [vmem:[%s217 + $0x70] sm:$0xf] %v763
        %796 = vst [vmem:[%s217 + $0x74] sm:$0xf] %v764
        %797 = vst [vmem:[%s217 + $0x78] sm:$0xf] %v765
        %798 = vst [vmem:[%s217 + $0x7c] sm:$0xf] %v766
      $region40: #{_forward_nchw.8} parent=31 // pred_fallthru
        _
      %s799 = smul.u32 32, %s18
      %p800 = scmp.lt.s32.totalorder %s799, 127
      %s801 = scalar_select %p800, %s799, 127
      %s802 = smul.addr %s801, 4
      %s803 = scalar_lea.vmem %s3, %s802
      // Predicated region
      $region41: #{_forward_nchw.8} parent=31 // pred_check
        %p804 = pneg %p119
      $region42: #{_forward_nchw.8} parent=31 // pred_check_branch
        %806 = sbr.rel (%p804) target = $region44
      $region43: #{_forward_nchw.8} parent=31 // pred_region
        %s807 = smul.u32 32, %s18
      $region44: #{_forward_nchw.8} parent=31 // pred_fallthru
        _
    $region32: #{_forward_nchw.8} parent=5 // pred_fallthru
      _
    %p808 = scmp.le.s32.totalorder 2, %s9
    // Predicated region
    $region45: #{_forward_nchw.8} parent=5 // pred_check
      %p809 = pneg %p808
    $region46: #{_forward_nchw.8} parent=5 // pred_check_branch
      %811 = sbr.rel (%p809) target = $region48
    $region47: #{_forward_nchw.8} parent=5 // pred_region
      %s812 = ssub.s32 %s9, 2
      // Predicated region
      $region49: #{_forward_nchw.8} parent=47 // pred_check
        %p813 = pneg %p125
      $region50: #{_forward_nchw.8} parent=47 // pred_check_branch
        %815 = sbr.rel (%p813) target = $region52
      $region51: #{_forward_nchw.8} parent=47 // pred_region
        %s816 = smul.u32 32, %s20
        %p817 = scmp.lt.s32.totalorder %s816, 127
        %s818 = scalar_select %p817, %s816, 127
        %s819 = smul.addr %s818, 4
        %s820 = scalar_lea.vmem %s3, %s819
      $region52: #{_forward_nchw.8} parent=47 // pred_fallthru
        _
    $region48: #{_forward_nchw.8} parent=5 // pred_fallthru
      _
  $region6: #{_forward_nchw.8} parent=0 // loop_footer
    %s13 = sadd.s32 1, %s9
  $region7: #{_forward_nchw.8} parent=0 // loop_footer_branch
    %8 = sbr.rel target = $region3
  $region8: #{_forward_nchw.8} parent=0 // loop_exit
    _

// kernel: _forward_nchw.9
$region0: #{_forward_nchw.9}
  #allocation0 [shape = 'u32[]', space=smem, size = 0x4, offset = 0x4, fixed_abs, tag = 'smem constant byte address 0x4 - core index']
  #allocation1 [shape = 'u32[72,128]{1,0:T(1,128)}', space=vmem, size = 0x9000, scoped, tag = 'internal scratch']
  #allocation2 [shape = 'f32[256,128]{1,0:T(8,128)}', space=vmem, size = 0x20000, scoped, tag = 'scratch operand']
  %s0 = inlined_call_operand.vmem [shape: bf16[256,256], index: 0, kind: input, shape index: {}]
  %s1 = inlined_call_operand.vmem [shape: bf16[256,128], index: 1, kind: input, shape index: {}]
  %s2 = inlined_call_operand.vmem [shape: f32[1,128], index: 2, kind: input, shape index: {}]
  %s3 = inlined_call_operand.vmem [shape: bf16[256,128], index: 3, kind: output, shape index: {}]
  %s4 = sld [smem:[#allocation0]]
  $region30: #{_forward_nchw.9} parent=0
    _
  %s6 = ssub.s32 1, %s4
  %s7 = scalar_select 0, %s6, %s4
  // Predicated region
  $region2: #{_forward_nchw.9} parent=0 // pred_check
    _
  $region3: #{_forward_nchw.9} parent=0 // pred_check_branch
    %9 = sbr.rel (0) target = $region5
  $region4: #{_forward_nchw.9} parent=0 // pred_region
    _
  $region5: #{_forward_nchw.9} parent=0 // pred_fallthru
    _
  // Predicated region
  $region6: #{_forward_nchw.9} parent=0 // pred_check
    _
  $region7: #{_forward_nchw.9} parent=0 // pred_check_branch
    %11 = sbr.rel (0) target = $region9
  $region8: #{_forward_nchw.9} parent=0 // pred_region
    _
  $region9: #{_forward_nchw.9} parent=0 // pred_fallthru
    _
  // Predicated region
  $region10: #{_forward_nchw.9} parent=0 // pred_check
    _
  $region11: #{_forward_nchw.9} parent=0 // pred_check_branch
    %13 = sbr.rel (0) target = $region13
  $region12: #{_forward_nchw.9} parent=0 // pred_region
    _
  $region13: #{_forward_nchw.9} parent=0 // pred_fallthru
    _
  %p14 = scmp.eq.s32.totalorder 0, 0
  // Predicated region
  $region14: #{_forward_nchw.9} parent=0 // pred_check
    %p15 = pneg %p14
  $region15: #{_forward_nchw.9} parent=0 // pred_check_branch
    %17 = sbr.rel (%p15) target = $region17
  $region16: #{_forward_nchw.9} parent=0 // pred_region
    %18 = vst [vmem:[#allocation2] sm:$0xff] 0.0
    %19 = vst [vmem:[#allocation2 + $0x8] sm:$0xff] 0.0
    %20 = vst [vmem:[#allocation2 + $0x10] sm:$0xff] 0.0
    %21 = vst [vmem:[#allocation2 + $0x18] sm:$0xff] 0.0
    %22 = vst [vmem:[#allocation2 + $0x20] sm:$0xff] 0.0
    %23 = vst [vmem:[#allocation2 + $0x28] sm:$0xff] 0.0
    %24 = vst [vmem:[#allocation2 + $0x30] sm:$0xff] 0.0
    %25 = vst [vmem:[#allocation2 + $0x38] sm:$0xff] 0.0
    %26 = vst [vmem:[#allocation2 + $0x40] sm:$0xff] 0.0
    %27 = vst [vmem:[#allocation2 + $0x48] sm:$0xff] 0.0
    %28 = vst [vmem:[#allocation2 + $0x50] sm:$0xff] 0.0
    %29 = vst [vmem:[#allocation2 + $0x58] sm:$0xff] 0.0
    %30 = vst [vmem:[#allocation2 + $0x60] sm:$0xff] 0.0
    %31 = vst [vmem:[#allocation2 + $0x68] sm:$0xff] 0.0
    %32 = vst [vmem:[#allocation2 + $0x70] sm:$0xff] 0.0
    %33 = vst [vmem:[#allocation2 + $0x78] sm:$0xff] 0.0
    %34 = vst [vmem:[#allocation2 + $0x80] sm:$0xff] 0.0
    %35 = vst [vmem:[#allocation2 + $0x88] sm:$0xff] 0.0
    %36 = vst [vmem:[#allocation2 + $0x90] sm:$0xff] 0.0
    %37 = vst [vmem:[#allocation2 + $0x98] sm:$0xff] 0.0
    %38 = vst [vmem:[#allocation2 + $0xa0] sm:$0xff] 0.0
    %39 = vst [vmem:[#allocation2 + $0xa8] sm:$0xff] 0.0
    %40 = vst [vmem:[#allocation2 + $0xb0] sm:$0xff] 0.0
    %41 = vst [vmem:[#allocation2 + $0xb8] sm:$0xff] 0.0
    %42 = vst [vmem:[#allocation2 + $0xc0] sm:$0xff] 0.0
    %43 = vst [vmem:[#allocation2 + $0xc8] sm:$0xff] 0.0
    %44 = vst [vmem:[#allocation2 + $0xd0] sm:$0xff] 0.0
    %45 = vst [vmem:[#allocation2 + $0xd8] sm:$0xff] 0.0
    %46 = vst [vmem:[#allocation2 + $0xe0] sm:$0xff] 0.0
    %47 = vst [vmem:[#allocation2 + $0xe8] sm:$0xff] 0.0
    %48 = vst [vmem:[#allocation2 + $0xf0] sm:$0xff] 0.0
    %49 = vst [vmem:[#allocation2 + $0xf8] sm:$0xff] 0.0
  $region17: #{_forward_nchw.9} parent=0 // pred_fallthru
    _
  %v50 = vld [vmem:[#allocation2] sm:$0xff]
  %v51 = vld [vmem:[#allocation2 + $0x8] sm:$0xff]
  %v52 = vld [vmem:[#allocation2 + $0x10] sm:$0xff]
  %v53 = vld [vmem:[#allocation2 + $0x18] sm:$0xff]
  %v54 = vld [vmem:[#allocation2 + $0x20] sm:$0xff]
  %v55 = vld [vmem:[#allocation2 + $0x28] sm:$0xff]
  %v56 = vld [vmem:[#allocation2 + $0x30] sm:$0xff]
  %v57 = vld [vmem:[#allocation2 + $0x38] sm:$0xff]
  %v58 = vld [vmem:[#allocation2 + $0x40] sm:$0xff]
  %v59 = vld [vmem:[#allocation2 + $0x48] sm:$0xff]
  %v60 = vld [vmem:[#allocation2 + $0x50] sm:$0xff]
  %v61 = vld [vmem:[#allocation2 + $0x58] sm:$0xff]
  %v62 = vld [vmem:[#allocation2 + $0x60] sm:$0xff]
  %v63 = vld [vmem:[#allocation2 + $0x68] sm:$0xff]
  %v64 = vld [vmem:[#allocation2 + $0x70] sm:$0xff]
  %v65 = vld [vmem:[#allocation2 + $0x78] sm:$0xff]
  %v66 = vld [vmem:[#allocation2 + $0x80] sm:$0xff]
  %v67 = vld [vmem:[#allocation2 + $0x88] sm:$0xff]
  %v68 = vld [vmem:[#allocation2 + $0x90] sm:$0xff]
  %v69 = vld [vmem:[#allocation2 + $0x98] sm:$0xff]
  %v70 = vld [vmem:[#allocation2 + $0xa0] sm:$0xff]
  %v71 = vld [vmem:[#allocation2 + $0xa8] sm:$0xff]
  %v72 = vld [vmem:[#allocation2 + $0xb0] sm:$0xff]
  %v73 = vld [vmem:[#allocation2 + $0xb8] sm:$0xff]
  %v74 = vld [vmem:[#allocation2 + $0xc0] sm:$0xff]
  %v75 = vld [vmem:[#allocation2 + $0xc8] sm:$0xff]
  %v76 = vld [vmem:[#allocation2 + $0xd0] sm:$0xff]
  %v77 = vld [vmem:[#allocation2 + $0xd8] sm:$0xff]
  %v78 = vld [vmem:[#allocation2 + $0xe0] sm:$0xff]
  %v79 = vld [vmem:[#allocation2 + $0xe8] sm:$0xff]
  %v80 = vld [vmem:[#allocation2 + $0xf0] sm:$0xff]
  %v81 = vld [vmem:[#allocation2 + $0xf8] sm:$0xff]
  %v82 = vld [vmem:[%s0] sm:$0xff]
  %v83 = vld [vmem:[%s0 + $0x8] sm:$0xff]
  %v84 = vld [vmem:[%s0 + $0x10] sm:$0xff]
  %v85 = vld [vmem:[%s0 + $0x18] sm:$0xff]
  %v86 = vld [vmem:[%s0 + $0x20] sm:$0xff]
  %v87 = vld [vmem:[%s0 + $0x28] sm:$0xff]
  %v88 = vld [vmem:[%s0 + $0x30] sm:$0xff]
  %v89 = vld [vmem:[%s0 + $0x38] sm:$0xff]
  %v90 = vld [vmem:[%s0 + $0x40] sm:$0xff]
  %v91 = vld [vmem:[%s0 + $0x48] sm:$0xff]
  %v92 = vld [vmem:[%s0 + $0x50] sm:$0xff]
  %v93 = vld [vmem:[%s0 + $0x58] sm:$0xff]
  %v94 = vld [vmem:[%s0 + $0x60] sm:$0xff]
  %v95 = vld [vmem:[%s0 + $0x68] sm:$0xff]
  %v96 = vld [vmem:[%s0 + $0x70] sm:$0xff]
  %v97 = vld [vmem:[%s0 + $0x78] sm:$0xff]
  %v98 = vld [vmem:[%s0 + $0x80] sm:$0xff]
  %v99 = vld [vmem:[%s0 + $0x88] sm:$0xff]
  %v100 = vld [vmem:[%s0 + $0x90] sm:$0xff]
  %v101 = vld [vmem:[%s0 + $0x98] sm:$0xff]
  %v102 = vld [vmem:[%s0 + $0xa0] sm:$0xff]
  %v103 = vld [vmem:[%s0 + $0xa8] sm:$0xff]
  %v104 = vld [vmem:[%s0 + $0xb0] sm:$0xff]
  %v105 = vld [vmem:[%s0 + $0xb8] sm:$0xff]
  %v106 = vld [vmem:[%s0 + $0xc0] sm:$0xff]
  %v107 = vld [vmem:[%s0 + $0xc8] sm:$0xff]
  %v108 = vld [vmem:[%s0 + $0xd0] sm:$0xff]
  %v109 = vld [vmem:[%s0 + $0xd8] sm:$0xff]
  %v110 = vld [vmem:[%s0 + $0xe0] sm:$0xff]
  %v111 = vld [vmem:[%s0 + $0xe8] sm:$0xff]
  %v112 = vld [vmem:[%s0 + $0xf0] sm:$0xff]
  %v113 = vld [vmem:[%s0 + $0xf8] sm:$0xff]
  %v114 = vld [vmem:[%s1] sm:$0xf]
  %v115 = vld [vmem:[%s1 + $0x4] sm:$0xf]
  %v116 = vld [vmem:[%s1 + $0x8] sm:$0xf]
  %v117 = vld [vmem:[%s1 + $0xc] sm:$0xf]
  %v118 = vld [vmem:[%s1 + $0x10] sm:$0xf]
  %v119 = vld [vmem:[%s1 + $0x14] sm:$0xf]
  %v120 = vld [vmem:[%s1 + $0x18] sm:$0xf]
  %v121 = vld [vmem:[%s1 + $0x1c] sm:$0xf]
  %v122 = vld [vmem:[%s1 + $0x20] sm:$0xf]
  %v123 = vld [vmem:[%s1 + $0x24] sm:$0xf]
  %v124 = vld [vmem:[%s1 + $0x28] sm:$0xf]
  %v125 = vld [vmem:[%s1 + $0x2c] sm:$0xf]
  %v126 = vld [vmem:[%s1 + $0x30] sm:$0xf]
  %v127 = vld [vmem:[%s1 + $0x34] sm:$0xf]
  %v128 = vld [vmem:[%s1 + $0x38] sm:$0xf]
  %v129 = vld [vmem:[%s1 + $0x3c] sm:$0xf]
  %v130 = vld [vmem:[%s1 + $0x40] sm:$0xf]
  %v131 = vld [vmem:[%s1 + $0x44] sm:$0xf]
  %v132 = vld [vmem:[%s1 + $0x48] sm:$0xf]
  %v133 = vld [vmem:[%s1 + $0x4c] sm:$0xf]
  %v134 = vld [vmem:[%s1 + $0x50] sm:$0xf]
  %v135 = vld [vmem:[%s1 + $0x54] sm:$0xf]
  %v136 = vld [vmem:[%s1 + $0x58] sm:$0xf]
  %v137 = vld [vmem:[%s1 + $0x5c] sm:$0xf]
  %v138 = vld [vmem:[%s1 + $0x60] sm:$0xf]
  %v139 = vld [vmem:[%s1 + $0x64] sm:$0xf]
  %v140 = vld [vmem:[%s1 + $0x68] sm:$0xf]
  %v141 = vld [vmem:[%s1 + $0x6c] sm:$0xf]
  %v142 = vld [vmem:[%s1 + $0x70] sm:$0xf]
  %v143 = vld [vmem:[%s1 + $0x74] sm:$0xf]
  %v144 = vld [vmem:[%s1 + $0x78] sm:$0xf]
  %v145 = vld [vmem:[%s1 + $0x7c] sm:$0xf]
  %v178 = vunpack.c.l.b16 %v82
  %v179 = vunpack.c.h.b16 %v82
  %v180 = vunpack.c.l.b16 %v83
  %v181 = vunpack.c.h.b16 %v83
  %v182 = vunpack.c.l.b16 %v84
  %v183 = vunpack.c.h.b16 %v84
  %v184 = vunpack.c.l.b16 %v85
  %v185 = vunpack.c.h.b16 %v85
  %v186 = vunpack.c.l.b16 %v86
  %v187 = vunpack.c.h.b16 %v86
  %v188 = vunpack.c.l.b16 %v87
  %v189 = vunpack.c.h.b16 %v87
  %v190 = vunpack.c.l.b16 %v88
  %v191 = vunpack.c.h.b16 %v88
  %v192 = vunpack.c.l.b16 %v89
  %v193 = vunpack.c.h.b16 %v89
  %v194 = vunpack.c.l.b16 %v90
  %v195 = vunpack.c.h.b16 %v90
  %v196 = vunpack.c.l.b16 %v91
  %v197 = vunpack.c.h.b16 %v91
  %v198 = vunpack.c.l.b16 %v92
  %v199 = vunpack.c.h.b16 %v92
  %v200 = vunpack.c.l.b16 %v93
  %v201 = vunpack.c.h.b16 %v93
  %v202 = vunpack.c.l.b16 %v94
  %v203 = vunpack.c.h.b16 %v94
  %v204 = vunpack.c.l.b16 %v95
  %v205 = vunpack.c.h.b16 %v95
  %v206 = vunpack.c.l.b16 %v96
  %v207 = vunpack.c.h.b16 %v96
  %v208 = vunpack.c.l.b16 %v97
  %v209 = vunpack.c.h.b16 %v97
  %v210 = vunpack.c.l.b16 %v98
  %v211 = vunpack.c.h.b16 %v98
  %v212 = vunpack.c.l.b16 %v99
  %v213 = vunpack.c.h.b16 %v99
  %v214 = vunpack.c.l.b16 %v100
  %v215 = vunpack.c.h.b16 %v100
  %v216 = vunpack.c.l.b16 %v101
  %v217 = vunpack.c.h.b16 %v101
  %v218 = vunpack.c.l.b16 %v102
  %v219 = vunpack.c.h.b16 %v102
  %v220 = vunpack.c.l.b16 %v103
  %v221 = vunpack.c.h.b16 %v103
  %v222 = vunpack.c.l.b16 %v104
  %v223 = vunpack.c.h.b16 %v104
  %v224 = vunpack.c.l.b16 %v105
  %v225 = vunpack.c.h.b16 %v105
  %v226 = vunpack.c.l.b16 %v106
  %v227 = vunpack.c.h.b16 %v106
  %v228 = vunpack.c.l.b16 %v107
  %v229 = vunpack.c.h.b16 %v107
  %v230 = vunpack.c.l.b16 %v108
  %v231 = vunpack.c.h.b16 %v108
  %v232 = vunpack.c.l.b16 %v109
  %v233 = vunpack.c.h.b16 %v109
  %v234 = vunpack.c.l.b16 %v110
  %v235 = vunpack.c.h.b16 %v110
  %v236 = vunpack.c.l.b16 %v111
  %v237 = vunpack.c.h.b16 %v111
  %v238 = vunpack.c.l.b16 %v112
  %v239 = vunpack.c.h.b16 %v112
  %v240 = vunpack.c.l.b16 %v113
  %v241 = vunpack.c.h.b16 %v113
  %v242 = vpack.c.b16 %v180, %v178
  %v243 = vpack.c.b16 %v181, %v179
  %v244 = vpack.c.b16 %v184, %v182
  %v245 = vpack.c.b16 %v185, %v183
  %v246 = vpack.c.b16 %v188, %v186
  %v247 = vpack.c.b16 %v189, %v187
  %v248 = vpack.c.b16 %v192, %v190
  %v249 = vpack.c.b16 %v193, %v191
  %v250 = vpack.c.b16 %v196, %v194
  %v251 = vpack.c.b16 %v197, %v195
  %v252 = vpack.c.b16 %v200, %v198
  %v253 = vpack.c.b16 %v201, %v199
  %v254 = vpack.c.b16 %v204, %v202
  %v255 = vpack.c.b16 %v205, %v203
  %v256 = vpack.c.b16 %v208, %v206
  %v257 = vpack.c.b16 %v209, %v207
  %v258 = vpack.c.b16 %v212, %v210
  %v259 = vpack.c.b16 %v213, %v211
  %v260 = vpack.c.b16 %v216, %v214
  %v261 = vpack.c.b16 %v217, %v215
  %v262 = vpack.c.b16 %v220, %v218
  %v263 = vpack.c.b16 %v221, %v219
  %v264 = vpack.c.b16 %v224, %v222
  %v265 = vpack.c.b16 %v225, %v223
  %v266 = vpack.c.b16 %v228, %v226
  %v267 = vpack.c.b16 %v229, %v227
  %v268 = vpack.c.b16 %v232, %v230
  %v269 = vpack.c.b16 %v233, %v231
  %v270 = vpack.c.b16 %v236, %v234
  %v271 = vpack.c.b16 %v237, %v235
  %v272 = vpack.c.b16 %v240, %v238
  %v273 = vpack.c.b16 %v241, %v239
  %v338 = vunpack.c.l.b16 %v114
  %v339 = vunpack.c.l.b16 %v115
  %v340 = vunpack.c.l.b16 %v116
  %v341 = vunpack.c.l.b16 %v117
  %v342 = vunpack.c.l.b16 %v118
  %v343 = vunpack.c.l.b16 %v119
  %v344 = vunpack.c.l.b16 %v120
  %v345 = vunpack.c.l.b16 %v121
  %v346 = vunpack.c.l.b16 %v122
  %v347 = vunpack.c.l.b16 %v123
  %v348 = vunpack.c.l.b16 %v124
  %v349 = vunpack.c.l.b16 %v125
  %v350 = vunpack.c.l.b16 %v126
  %v351 = vunpack.c.l.b16 %v127
  %v352 = vunpack.c.l.b16 %v128
  %v353 = vunpack.c.l.b16 %v129
  %v354 = vunpack.c.l.b16 %v130
  %v355 = vunpack.c.l.b16 %v131
  %v356 = vunpack.c.l.b16 %v132
  %v357 = vunpack.c.l.b16 %v133
  %v358 = vunpack.c.l.b16 %v134
  %v359 = vunpack.c.l.b16 %v135
  %v360 = vunpack.c.l.b16 %v136
  %v361 = vunpack.c.l.b16 %v137
  %v362 = vunpack.c.l.b16 %v138
  %v363 = vunpack.c.l.b16 %v139
  %v364 = vunpack.c.l.b16 %v140
  %v365 = vunpack.c.l.b16 %v141
  %v366 = vunpack.c.l.b16 %v142
  %v367 = vunpack.c.l.b16 %v143
  %v368 = vunpack.c.l.b16 %v144
  %v369 = vunpack.c.l.b16 %v145
  %v370 = vpack.c.b16 %v339, %v338
  %v371 = vpack.c.b16 %v341, %v340
  %v372 = vpack.c.b16 %v343, %v342
  %v373 = vpack.c.b16 %v345, %v344
  %v374 = vpack.c.b16 %v347, %v346
  %v375 = vpack.c.b16 %v349, %v348
  %v376 = vpack.c.b16 %v351, %v350
  %v377 = vpack.c.b16 %v353, %v352
  %v378 = vpack.c.b16 %v355, %v354
  %v379 = vpack.c.b16 %v357, %v356
  %v380 = vpack.c.b16 %v359, %v358
  %v381 = vpack.c.b16 %v361, %v360
  %v382 = vpack.c.b16 %v363, %v362
  %v383 = vpack.c.b16 %v365, %v364
  %v384 = vpack.c.b16 %v367, %v366
  %v385 = vpack.c.b16 %v369, %v368
  %402 = vmatpush.bf16.msra.mxu0 %v377
  %403 = vmatpush.bf16.msra.mxu0 %v376
  %404 = vmatpush.bf16.msra.mxu0 %v375
  %405 = vmatpush.bf16.msra.mxu0 %v374
  %406 = vmatpush.bf16.msra.mxu0 %v373
  %407 = vmatpush.bf16.msra.mxu0 %v372
  %408 = vmatpush.bf16.msra.mxu0 %v371
  %409 = vmatpush.bf16.msra.mxu0 %v370
  %410 = vmatmul.bf16.gmra.mxu0 %v242
  %v411 = vpop.f32.mrf.mxu0
  %v412 = vadd.f32 0.0, %v411
  %v413 = vpop.f32.mrf.mxu0
  %v414 = vadd.f32 0.0, %v413
  %415 = vmatmul.bf16.gmra.mxu0 %v244
  %v416 = vpop.f32.mrf.mxu0
  %v417 = vadd.f32 0.0, %v416
  %v418 = vpop.f32.mrf.mxu0
  %v419 = vadd.f32 0.0, %v418
  %420 = vmatmul.bf16.gmra.mxu0 %v246
  %v421 = vpop.f32.mrf.mxu0
  %v422 = vadd.f32 0.0, %v421
  %v423 = vpop.f32.mrf.mxu0
  %v424 = vadd.f32 0.0, %v423
  %425 = vmatmul.bf16.gmra.mxu0 %v248
  %v426 = vpop.f32.mrf.mxu0
  %v427 = vadd.f32 0.0, %v426
  %v428 = vpop.f32.mrf.mxu0
  %v429 = vadd.f32 0.0, %v428
  %430 = vmatmul.bf16.gmra.mxu0 %v250
  %v431 = vpop.f32.mrf.mxu0
  %v432 = vadd.f32 0.0, %v431
  %v433 = vpop.f32.mrf.mxu0
  %v434 = vadd.f32 0.0, %v433
  %435 = vmatmul.bf16.gmra.mxu0 %v252
  %v436 = vpop.f32.mrf.mxu0
  %v437 = vadd.f32 0.0, %v436
  %v438 = vpop.f32.mrf.mxu0
  %v439 = vadd.f32 0.0, %v438
  %440 = vmatmul.bf16.gmra.mxu0 %v254
  %v441 = vpop.f32.mrf.mxu0
  %v442 = vadd.f32 0.0, %v441
  %v443 = vpop.f32.mrf.mxu0
  %v444 = vadd.f32 0.0, %v443
  %445 = vmatmul.bf16.gmra.mxu0 %v256
  %v446 = vpop.f32.mrf.mxu0
  %v447 = vadd.f32 0.0, %v446
  %v448 = vpop.f32.mrf.mxu0
  %v449 = vadd.f32 0.0, %v448
  %450 = vmatmul.bf16.gmra.mxu0 %v258
  %v451 = vpop.f32.mrf.mxu0
  %v452 = vadd.f32 0.0, %v451
  %v453 = vpop.f32.mrf.mxu0
  %v454 = vadd.f32 0.0, %v453
  %455 = vmatmul.bf16.gmra.mxu0 %v260
  %v456 = vpop.f32.mrf.mxu0
  %v457 = vadd.f32 0.0, %v456
  %v458 = vpop.f32.mrf.mxu0
  %v459 = vadd.f32 0.0, %v458
  %460 = vmatmul.bf16.gmra.mxu0 %v262
  %v461 = vpop.f32.mrf.mxu0
  %v462 = vadd.f32 0.0, %v461
  %v463 = vpop.f32.mrf.mxu0
  %v464 = vadd.f32 0.0, %v463
  %465 = vmatmul.bf16.gmra.mxu0 %v264
  %v466 = vpop.f32.mrf.mxu0
  %v467 = vadd.f32 0.0, %v466
  %v468 = vpop.f32.mrf.mxu0
  %v469 = vadd.f32 0.0, %v468
  %470 = vmatmul.bf16.gmra.mxu0 %v266
  %v471 = vpop.f32.mrf.mxu0
  %v472 = vadd.f32 0.0, %v471
  %v473 = vpop.f32.mrf.mxu0
  %v474 = vadd.f32 0.0, %v473
  %475 = vmatmul.bf16.gmra.mxu0 %v268
  %v476 = vpop.f32.mrf.mxu0
  %v477 = vadd.f32 0.0, %v476
  %v478 = vpop.f32.mrf.mxu0
  %v479 = vadd.f32 0.0, %v478
  %480 = vmatmul.bf16.gmra.mxu0 %v270
  %v481 = vpop.f32.mrf.mxu0
  %v482 = vadd.f32 0.0, %v481
  %v483 = vpop.f32.mrf.mxu0
  %v484 = vadd.f32 0.0, %v483
  %485 = vmatmul.bf16.gmra.mxu0 %v272
  %v486 = vpop.f32.mrf.mxu0
  %v487 = vadd.f32 0.0, %v486
  %v488 = vpop.f32.mrf.mxu0
  %v489 = vadd.f32 0.0, %v488
  %490 = vdwg.mxu0
  %491 = vmatpush.bf16.msra.mxu0 %v385
  %492 = vmatpush.bf16.msra.mxu0 %v384
  %493 = vmatpush.bf16.msra.mxu0 %v383
  %494 = vmatpush.bf16.msra.mxu0 %v382
  %495 = vmatpush.bf16.msra.mxu0 %v381
  %496 = vmatpush.bf16.msra.mxu0 %v380
  %497 = vmatpush.bf16.msra.mxu0 %v379
  %498 = vmatpush.bf16.msra.mxu0 %v378
  %499 = vmatmul.bf16.gmra.mxu0 %v243
  %v500 = vpop.f32.mrf.mxu0
  %v501 = vadd.f32 %v412, %v500
  %v502 = vpop.f32.mrf.mxu0
  %v503 = vadd.f32 %v414, %v502
  %504 = vmatmul.bf16.gmra.mxu0 %v245
  %v505 = vpop.f32.mrf.mxu0
  %v506 = vadd.f32 %v417, %v505
  %v507 = vpop.f32.mrf.mxu0
  %v508 = vadd.f32 %v419, %v507
  %509 = vmatmul.bf16.gmra.mxu0 %v247
  %v510 = vpop.f32.mrf.mxu0
  %v511 = vadd.f32 %v422, %v510
  %v512 = vpop.f32.mrf.mxu0
  %v513 = vadd.f32 %v424, %v512
  %514 = vmatmul.bf16.gmra.mxu0 %v249
  %v515 = vpop.f32.mrf.mxu0
  %v516 = vadd.f32 %v427, %v515
  %v517 = vpop.f32.mrf.mxu0
  %v518 = vadd.f32 %v429, %v517
  %519 = vmatmul.bf16.gmra.mxu0 %v251
  %v520 = vpop.f32.mrf.mxu0
  %v521 = vadd.f32 %v432, %v520
  %v522 = vpop.f32.mrf.mxu0
  %v523 = vadd.f32 %v434, %v522
  %524 = vmatmul.bf16.gmra.mxu0 %v253
  %v525 = vpop.f32.mrf.mxu0
  %v526 = vadd.f32 %v437, %v525
  %v527 = vpop.f32.mrf.mxu0
  %v528 = vadd.f32 %v439, %v527
  %529 = vmatmul.bf16.gmra.mxu0 %v255
  %v530 = vpop.f32.mrf.mxu0
  %v531 = vadd.f32 %v442, %v530
  %v532 = vpop.f32.mrf.mxu0
  %v533 = vadd.f32 %v444, %v532
  %534 = vmatmul.bf16.gmra.mxu0 %v257
  %v535 = vpop.f32.mrf.mxu0
  %v536 = vadd.f32 %v447, %v535
  %v537 = vpop.f32.mrf.mxu0
  %v538 = vadd.f32 %v449, %v537
  %539 = vmatmul.bf16.gmra.mxu0 %v259
  %v540 = vpop.f32.mrf.mxu0
  %v541 = vadd.f32 %v452, %v540
  %v542 = vpop.f32.mrf.mxu0
  %v543 = vadd.f32 %v454, %v542
  %544 = vmatmul.bf16.gmra.mxu0 %v261
  %v545 = vpop.f32.mrf.mxu0
  %v546 = vadd.f32 %v457, %v545
  %v547 = vpop.f32.mrf.mxu0
  %v548 = vadd.f32 %v459, %v547
  %549 = vmatmul.bf16.gmra.mxu0 %v263
  %v550 = vpop.f32.mrf.mxu0
  %v551 = vadd.f32 %v462, %v550
  %v552 = vpop.f32.mrf.mxu0
  %v553 = vadd.f32 %v464, %v552
  %554 = vmatmul.bf16.gmra.mxu0 %v265
  %v555 = vpop.f32.mrf.mxu0
  %v556 = vadd.f32 %v467, %v555
  %v557 = vpop.f32.mrf.mxu0
  %v558 = vadd.f32 %v469, %v557
  %559 = vmatmul.bf16.gmra.mxu0 %v267
  %v560 = vpop.f32.mrf.mxu0
  %v561 = vadd.f32 %v472, %v560
  %v562 = vpop.f32.mrf.mxu0
  %v563 = vadd.f32 %v474, %v562
  %564 = vmatmul.bf16.gmra.mxu0 %v269
  %v565 = vpop.f32.mrf.mxu0
  %v566 = vadd.f32 %v477, %v565
  %v567 = vpop.f32.mrf.mxu0
  %v568 = vadd.f32 %v479, %v567
  %569 = vmatmul.bf16.gmra.mxu0 %v271
  %v570 = vpop.f32.mrf.mxu0
  %v571 = vadd.f32 %v482, %v570
  %v572 = vpop.f32.mrf.mxu0
  %v573 = vadd.f32 %v484, %v572
  %574 = vmatmul.bf16.gmra.mxu0 %v273
  %v575 = vpop.f32.mrf.mxu0
  %v576 = vadd.f32 %v487, %v575
  %v577 = vpop.f32.mrf.mxu0
  %v578 = vadd.f32 %v489, %v577
  %579 = vdwg.mxu0
  %v580 = vadd.f32 %v50, %v501
  %v581 = vadd.f32 %v51, %v503
  %v582 = vadd.f32 %v52, %v506
  %v583 = vadd.f32 %v53, %v508
  %v584 = vadd.f32 %v54, %v511
  %v585 = vadd.f32 %v55, %v513
  %v586 = vadd.f32 %v56, %v516
  %v587 = vadd.f32 %v57, %v518
  %v588 = vadd.f32 %v58, %v521
  %v589 = vadd.f32 %v59, %v523
  %v590 = vadd.f32 %v60, %v526
  %v591 = vadd.f32 %v61, %v528
  %v592 = vadd.f32 %v62, %v531
  %v593 = vadd.f32 %v63, %v533
  %v594 = vadd.f32 %v64, %v536
  %v595 = vadd.f32 %v65, %v538
  %v596 = vadd.f32 %v66, %v541
  %v597 = vadd.f32 %v67, %v543
  %v598 = vadd.f32 %v68, %v546
  %v599 = vadd.f32 %v69, %v548
  %v600 = vadd.f32 %v70, %v551
  %v601 = vadd.f32 %v71, %v553
  %v602 = vadd.f32 %v72, %v556
  %v603 = vadd.f32 %v73, %v558
  %v604 = vadd.f32 %v74, %v561
  %v605 = vadd.f32 %v75, %v563
  %v606 = vadd.f32 %v76, %v566
  %v607 = vadd.f32 %v77, %v568
  %v608 = vadd.f32 %v78, %v571
  %v609 = vadd.f32 %v79, %v573
  %v610 = vadd.f32 %v80, %v576
  %v611 = vadd.f32 %v81, %v578
  %612 = vst [vmem:[#allocation2] sm:$0xff] %v580
  %613 = vst [vmem:[#allocation2 + $0x8] sm:$0xff] %v581
  %614 = vst [vmem:[#allocation2 + $0x10] sm:$0xff] %v582
  %615 = vst [vmem:[#allocation2 + $0x18] sm:$0xff] %v583
  %616 = vst [vmem:[#allocation2 + $0x20] sm:$0xff] %v584
  %617 = vst [vmem:[#allocation2 + $0x28] sm:$0xff] %v585
  %618 = vst [vmem:[#allocation2 + $0x30] sm:$0xff] %v586
  %619 = vst [vmem:[#allocation2 + $0x38] sm:$0xff] %v587
  %620 = vst [vmem:[#allocation2 + $0x40] sm:$0xff] %v588
  %621 = vst [vmem:[#allocation2 + $0x48] sm:$0xff] %v589
  %622 = vst [vmem:[#allocation2 + $0x50] sm:$0xff] %v590
  %623 = vst [vmem:[#allocation2 + $0x58] sm:$0xff] %v591
  %624 = vst [vmem:[#allocation2 + $0x60] sm:$0xff] %v592
  %625 = vst [vmem:[#allocation2 + $0x68] sm:$0xff] %v593
  %626 = vst [vmem:[#allocation2 + $0x70] sm:$0xff] %v594
  %627 = vst [vmem:[#allocation2 + $0x78] sm:$0xff] %v595
  %628 = vst [vmem:[#allocation2 + $0x80] sm:$0xff] %v596
  %629 = vst [vmem:[#allocation2 + $0x88] sm:$0xff] %v597
  %630 = vst [vmem:[#allocation2 + $0x90] sm:$0xff] %v598
  %631 = vst [vmem:[#allocation2 + $0x98] sm:$0xff] %v599
  %632 = vst [vmem:[#allocation2 + $0xa0] sm:$0xff] %v600
  %633 = vst [vmem:[#allocation2 + $0xa8] sm:$0xff] %v601
  %634 = vst [vmem:[#allocation2 + $0xb0] sm:$0xff] %v602
  %635 = vst [vmem:[#allocation2 + $0xb8] sm:$0xff] %v603
  %636 = vst [vmem:[#allocation2 + $0xc0] sm:$0xff] %v604
  %637 = vst [vmem:[#allocation2 + $0xc8] sm:$0xff] %v605
  %638 = vst [vmem:[#allocation2 + $0xd0] sm:$0xff] %v606
  %639 = vst [vmem:[#allocation2 + $0xd8] sm:$0xff] %v607
  %640 = vst [vmem:[#allocation2 + $0xe0] sm:$0xff] %v608
  %641 = vst [vmem:[#allocation2 + $0xe8] sm:$0xff] %v609
  %642 = vst [vmem:[#allocation2 + $0xf0] sm:$0xff] %v610
  %643 = vst [vmem:[#allocation2 + $0xf8] sm:$0xff] %v611
  // Predicated region
  $region18: #{_forward_nchw.9} parent=0 // pred_check
    %p644 = pneg %p14
  $region19: #{_forward_nchw.9} parent=0 // pred_check_branch
    %646 = sbr.rel (%p644) target = $region21
  $region20: #{_forward_nchw.9} parent=0 // pred_region
    %v647 = vld [vmem:[#allocation2] sm:$0xff]
    %v648 = vld [vmem:[#allocation2 + $0x8] sm:$0xff]
    %v649 = vld [vmem:[#allocation2 + $0x10] sm:$0xff]
    %v650 = vld [vmem:[#allocation2 + $0x18] sm:$0xff]
    %v651 = vld [vmem:[#allocation2 + $0x20] sm:$0xff]
    %v652 = vld [vmem:[#allocation2 + $0x28] sm:$0xff]
    %v653 = vld [vmem:[#allocation2 + $0x30] sm:$0xff]
    %v654 = vld [vmem:[#allocation2 + $0x38] sm:$0xff]
    %v655 = vld [vmem:[#allocation2 + $0x40] sm:$0xff]
    %v656 = vld [vmem:[#allocation2 + $0x48] sm:$0xff]
    %v657 = vld [vmem:[#allocation2 + $0x50] sm:$0xff]
    %v658 = vld [vmem:[#allocation2 + $0x58] sm:$0xff]
    %v659 = vld [vmem:[#allocation2 + $0x60] sm:$0xff]
    %v660 = vld [vmem:[#allocation2 + $0x68] sm:$0xff]
    %v661 = vld [vmem:[#allocation2 + $0x70] sm:$0xff]
    %v662 = vld [vmem:[#allocation2 + $0x78] sm:$0xff]
    %v663 = vld [vmem:[#allocation2 + $0x80] sm:$0xff]
    %v664 = vld [vmem:[#allocation2 + $0x88] sm:$0xff]
    %v665 = vld [vmem:[#allocation2 + $0x90] sm:$0xff]
    %v666 = vld [vmem:[#allocation2 + $0x98] sm:$0xff]
    %v667 = vld [vmem:[#allocation2 + $0xa0] sm:$0xff]
    %v668 = vld [vmem:[#allocation2 + $0xa8] sm:$0xff]
    %v669 = vld [vmem:[#allocation2 + $0xb0] sm:$0xff]
    %v670 = vld [vmem:[#allocation2 + $0xb8] sm:$0xff]
    %v671 = vld [vmem:[#allocation2 + $0xc0] sm:$0xff]
    %v672 = vld [vmem:[#allocation2 + $0xc8] sm:$0xff]
    %v673 = vld [vmem:[#allocation2 + $0xd0] sm:$0xff]
    %v674 = vld [vmem:[#allocation2 + $0xd8] sm:$0xff]
    %v675 = vld [vmem:[#allocation2 + $0xe0] sm:$0xff]
    %v676 = vld [vmem:[#allocation2 + $0xe8] sm:$0xff]
    %v677 = vld [vmem:[#allocation2 + $0xf0] sm:$0xff]
    %v678 = vld [vmem:[#allocation2 + $0xf8] sm:$0xff]
    %v679 = vld [vmem:[%s2] sm:$0x1]
    %v681 = vperm.slane %v679, 0
    %v683 = vadd.f32 %v647, %v681
    %v684 = vadd.f32 %v648, %v681
    %v685 = vadd.f32 %v649, %v681
    %v686 = vadd.f32 %v650, %v681
    %v687 = vadd.f32 %v651, %v681
    %v688 = vadd.f32 %v652, %v681
    %v689 = vadd.f32 %v653, %v681
    %v690 = vadd.f32 %v654, %v681
    %v691 = vadd.f32 %v655, %v681
    %v692 = vadd.f32 %v656, %v681
    %v693 = vadd.f32 %v657, %v681
    %v694 = vadd.f32 %v658, %v681
    %v695 = vadd.f32 %v659, %v681
    %v696 = vadd.f32 %v660, %v681
    %v697 = vadd.f32 %v661, %v681
    %v698 = vadd.f32 %v662, %v681
    %v699 = vadd.f32 %v663, %v681
    %v700 = vadd.f32 %v664, %v681
    %v701 = vadd.f32 %v665, %v681
    %v702 = vadd.f32 %v666, %v681
    %v703 = vadd.f32 %v667, %v681
    %v704 = vadd.f32 %v668, %v681
    %v705 = vadd.f32 %v669, %v681
    %v706 = vadd.f32 %v670, %v681
    %v707 = vadd.f32 %v671, %v681
    %v708 = vadd.f32 %v672, %v681
    %v709 = vadd.f32 %v673, %v681
    %v710 = vadd.f32 %v674, %v681
    %v711 = vadd.f32 %v675, %v681
    %v712 = vadd.f32 %v676, %v681
    %v713 = vadd.f32 %v677, %v681
    %v714 = vadd.f32 %v678, %v681
    %v715 = vmax.f32 %v683, 0.0
    %v716 = vmax.f32 %v684, 0.0
    %v717 = vmax.f32 %v685, 0.0
    %v718 = vmax.f32 %v686, 0.0
    %v719 = vmax.f32 %v687, 0.0
    %v720 = vmax.f32 %v688, 0.0
    %v721 = vmax.f32 %v689, 0.0
    %v722 = vmax.f32 %v690, 0.0
    %v723 = vmax.f32 %v691, 0.0
    %v724 = vmax.f32 %v692, 0.0
    %v725 = vmax.f32 %v693, 0.0
    %v726 = vmax.f32 %v694, 0.0
    %v727 = vmax.f32 %v695, 0.0
    %v728 = vmax.f32 %v696, 0.0
    %v729 = vmax.f32 %v697, 0.0
    %v730 = vmax.f32 %v698, 0.0
    %v731 = vmax.f32 %v699, 0.0
    %v732 = vmax.f32 %v700, 0.0
    %v733 = vmax.f32 %v701, 0.0
    %v734 = vmax.f32 %v702, 0.0
    %v735 = vmax.f32 %v703, 0.0
    %v736 = vmax.f32 %v704, 0.0
    %v737 = vmax.f32 %v705, 0.0
    %v738 = vmax.f32 %v706, 0.0
    %v739 = vmax.f32 %v707, 0.0
    %v740 = vmax.f32 %v708, 0.0
    %v741 = vmax.f32 %v709, 0.0
    %v742 = vmax.f32 %v710, 0.0
    %v743 = vmax.f32 %v711, 0.0
    %v744 = vmax.f32 %v712, 0.0
    %v745 = vmax.f32 %v713, 0.0
    %v746 = vmax.f32 %v714, 0.0
    %v747 = vpack.c.bf16 %v715, %v715
    %v748 = vpack.c.bf16 %v716, %v716
    %v749 = vpack.c.bf16 %v717, %v717
    %v750 = vpack.c.bf16 %v718, %v718
    %v751 = vpack.c.bf16 %v719, %v719
    %v752 = vpack.c.bf16 %v720, %v720
    %v753 = vpack.c.bf16 %v721, %v721
    %v754 = vpack.c.bf16 %v722, %v722
    %v755 = vpack.c.bf16 %v723, %v723
    %v756 = vpack.c.bf16 %v724, %v724
    %v757 = vpack.c.bf16 %v725, %v725
    %v758 = vpack.c.bf16 %v726, %v726
    %v759 = vpack.c.bf16 %v727, %v727
    %v760 = vpack.c.bf16 %v728, %v728
    %v761 = vpack.c.bf16 %v729, %v729
    %v762 = vpack.c.bf16 %v730, %v730
    %v763 = vpack.c.bf16 %v731, %v731
    %v764 = vpack.c.bf16 %v732, %v732
    %v765 = vpack.c.bf16 %v733, %v733
    %v766 = vpack.c.bf16 %v734, %v734
    %v767 = vpack.c.bf16 %v735, %v735
    %v768 = vpack.c.bf16 %v736, %v736
    %v769 = vpack.c.bf16 %v737, %v737
    %v770 = vpack.c.bf16 %v738, %v738
    %v771 = vpack.c.bf16 %v739, %v739
    %v772 = vpack.c.bf16 %v740, %v740
    %v773 = vpack.c.bf16 %v741, %v741
    %v774 = vpack.c.bf16 %v742, %v742
    %v775 = vpack.c.bf16 %v743, %v743
    %v776 = vpack.c.bf16 %v744, %v744
    %v777 = vpack.c.bf16 %v745, %v745
    %v778 = vpack.c.bf16 %v746, %v746
    %779 = vst [vmem:[%s3] sm:$0xf] %v747
    %780 = vst [vmem:[%s3 + $0x4] sm:$0xf] %v748
    %781 = vst [vmem:[%s3 + $0x8] sm:$0xf] %v749
    %782 = vst [vmem:[%s3 + $0xc] sm:$0xf] %v750
    %783 = vst [vmem:[%s3 + $0x10] sm:$0xf] %v751
    %784 = vst [vmem:[%s3 + $0x14] sm:$0xf] %v752
    %785 = vst [vmem:[%s3 + $0x18] sm:$0xf] %v753
    %786 = vst [vmem:[%s3 + $0x1c] sm:$0xf] %v754
    %787 = vst [vmem:[%s3 + $0x20] sm:$0xf] %v755
    %788 = vst [vmem:[%s3 + $0x24] sm:$0xf] %v756
    %789 = vst [vmem:[%s3 + $0x28] sm:$0xf] %v757
    %790 = vst [vmem:[%s3 + $0x2c] sm:$0xf] %v758
    %791 = vst [vmem:[%s3 + $0x30] sm:$0xf] %v759
    %792 = vst [vmem:[%s3 + $0x34] sm:$0xf] %v760
    %793 = vst [vmem:[%s3 + $0x38] sm:$0xf] %v761
    %794 = vst [vmem:[%s3 + $0x3c] sm:$0xf] %v762
    %795 = vst [vmem:[%s3 + $0x40] sm:$0xf] %v763
    %796 = vst [vmem:[%s3 + $0x44] sm:$0xf] %v764
    %797 = vst [vmem:[%s3 + $0x48] sm:$0xf] %v765
    %798 = vst [vmem:[%s3 + $0x4c] sm:$0xf] %v766
    %799 = vst [vmem:[%s3 + $0x50] sm:$0xf] %v767
    %800 = vst [vmem:[%s3 + $0x54] sm:$0xf] %v768
    %801 = vst [vmem:[%s3 + $0x58] sm:$0xf] %v769
    %802 = vst [vmem:[%s3 + $0x5c] sm:$0xf] %v770
    %803 = vst [vmem:[%s3 + $0x60] sm:$0xf] %v771
    %804 = vst [vmem:[%s3 + $0x64] sm:$0xf] %v772
    %805 = vst [vmem:[%s3 + $0x68] sm:$0xf] %v773
    %806 = vst [vmem:[%s3 + $0x6c] sm:$0xf] %v774
    %807 = vst [vmem:[%s3 + $0x70] sm:$0xf] %v775
    %808 = vst [vmem:[%s3 + $0x74] sm:$0xf] %v776
    %809 = vst [vmem:[%s3 + $0x78] sm:$0xf] %v777
    %810 = vst [vmem:[%s3 + $0x7c] sm:$0xf] %v778
  $region21: #{_forward_nchw.9} parent=0 // pred_fallthru
    _
  // Predicated region
  $region22: #{_forward_nchw.9} parent=0 // pred_check
    _
  $region23: #{_forward_nchw.9} parent=0 // pred_check_branch
    %812 = sbr.rel (0) target = $region25
  $region24: #{_forward_nchw.9} parent=0 // pred_region
    _
  $region25: #{_forward_nchw.9} parent=0 // pred_fallthru
    _
  // Predicated region
  $region26: #{_forward_nchw.9} parent=0 // pred_check
    _
  $region27: #{_forward_nchw.9} parent=0 // pred_check_branch
    %814 = sbr.rel (0) target = $region29
  $region28: #{_forward_nchw.9} parent=0 // pred_region
    _
  $region29: #{_forward_nchw.9} parent=0 // pred_fallthru
    _

// kernel: _forward_nchw.10
$region0: #{_forward_nchw.10}
  #allocation0 [shape = 'u32[]', space=smem, size = 0x4, offset = 0x4, fixed_abs, tag = 'smem constant byte address 0x4 - core index']
  #allocation1 [shape = 'u32[72,128]{1,0:T(1,128)}', space=vmem, size = 0x9000, scoped, tag = 'internal scratch']
  #allocation2 [shape = 'f32[64,128]{1,0:T(8,128)}', space=vmem, size = 0x8000, scoped, tag = 'scratch operand']
  %s0 = inlined_call_operand.vmem [shape: bf16[64,384], index: 0, kind: input, shape index: {}]
  %s1 = inlined_call_operand.vmem [shape: bf16[384,128], index: 1, kind: input, shape index: {}]
  %s2 = inlined_call_operand.vmem [shape: f32[1,128], index: 2, kind: input, shape index: {}]
  %s3 = inlined_call_operand.vmem [shape: bf16[64,128], index: 3, kind: output, shape index: {}]
  %s4 = sld [smem:[#allocation0]]
  $region30: #{_forward_nchw.10} parent=0
    _
  %s6 = ssub.s32 1, %s4
  %s7 = scalar_select 0, %s6, %s4
  // Predicated region
  $region2: #{_forward_nchw.10} parent=0 // pred_check
    _
  $region3: #{_forward_nchw.10} parent=0 // pred_check_branch
    %9 = sbr.rel (0) target = $region5
  $region4: #{_forward_nchw.10} parent=0 // pred_region
    _
  $region5: #{_forward_nchw.10} parent=0 // pred_fallthru
    _
  // Predicated region
  $region6: #{_forward_nchw.10} parent=0 // pred_check
    _
  $region7: #{_forward_nchw.10} parent=0 // pred_check_branch
    %11 = sbr.rel (0) target = $region9
  $region8: #{_forward_nchw.10} parent=0 // pred_region
    _
  $region9: #{_forward_nchw.10} parent=0 // pred_fallthru
    _
  // Predicated region
  $region10: #{_forward_nchw.10} parent=0 // pred_check
    _
  $region11: #{_forward_nchw.10} parent=0 // pred_check_branch
    %13 = sbr.rel (0) target = $region13
  $region12: #{_forward_nchw.10} parent=0 // pred_region
    _
  $region13: #{_forward_nchw.10} parent=0 // pred_fallthru
    _
  %p14 = scmp.eq.s32.totalorder 0, 0
  // Predicated region
  $region14: #{_forward_nchw.10} parent=0 // pred_check
    %p15 = pneg %p14
  $region15: #{_forward_nchw.10} parent=0 // pred_check_branch
    %17 = sbr.rel (%p15) target = $region17
  $region16: #{_forward_nchw.10} parent=0 // pred_region
    %18 = vst [vmem:[#allocation2] sm:$0xff] 0.0
    %19 = vst [vmem:[#allocation2 + $0x8] sm:$0xff] 0.0
    %20 = vst [vmem:[#allocation2 + $0x10] sm:$0xff] 0.0
    %21 = vst [vmem:[#allocation2 + $0x18] sm:$0xff] 0.0
    %22 = vst [vmem:[#allocation2 + $0x20] sm:$0xff] 0.0
    %23 = vst [vmem:[#allocation2 + $0x28] sm:$0xff] 0.0
    %24 = vst [vmem:[#allocation2 + $0x30] sm:$0xff] 0.0
    %25 = vst [vmem:[#allocation2 + $0x38] sm:$0xff] 0.0
  $region17: #{_forward_nchw.10} parent=0 // pred_fallthru
    _
  %v26 = vld [vmem:[#allocation2] sm:$0xff]
  %v27 = vld [vmem:[#allocation2 + $0x8] sm:$0xff]
  %v28 = vld [vmem:[#allocation2 + $0x10] sm:$0xff]
  %v29 = vld [vmem:[#allocation2 + $0x18] sm:$0xff]
  %v30 = vld [vmem:[#allocation2 + $0x20] sm:$0xff]
  %v31 = vld [vmem:[#allocation2 + $0x28] sm:$0xff]
  %v32 = vld [vmem:[#allocation2 + $0x30] sm:$0xff]
  %v33 = vld [vmem:[#allocation2 + $0x38] sm:$0xff]
  %v34 = vld [vmem:[%s0] sm:$0xff]
  %v35 = vld [vmem:[%s0 + $0x8] sm:$0xf]
  %v36 = vld [vmem:[%s0 + $0xc] sm:$0xff]
  %v37 = vld [vmem:[%s0 + $0x14] sm:$0xf]
  %v38 = vld [vmem:[%s0 + $0x18] sm:$0xff]
  %v39 = vld [vmem:[%s0 + $0x20] sm:$0xf]
  %v40 = vld [vmem:[%s0 + $0x24] sm:$0xff]
  %v41 = vld [vmem:[%s0 + $0x2c] sm:$0xf]
  %v42 = vld [vmem:[%s0 + $0x30] sm:$0xff]
  %v43 = vld [vmem:[%s0 + $0x38] sm:$0xf]
  %v44 = vld [vmem:[%s0 + $0x3c] sm:$0xff]
  %v45 = vld [vmem:[%s0 + $0x44] sm:$0xf]
  %v46 = vld [vmem:[%s0 + $0x48] sm:$0xff]
  %v47 = vld [vmem:[%s0 + $0x50] sm:$0xf]
  %v48 = vld [vmem:[%s0 + $0x54] sm:$0xff]
  %v49 = vld [vmem:[%s0 + $0x5c] sm:$0xf]
  %v50 = vld [vmem:[%s1] sm:$0xf]
  %v51 = vld [vmem:[%s1 + $0x4] sm:$0xf]
  %v52 = vld [vmem:[%s1 + $0x8] sm:$0xf]
  %v53 = vld [vmem:[%s1 + $0xc] sm:$0xf]
  %v54 = vld [vmem:[%s1 + $0x10] sm:$0xf]
  %v55 = vld [vmem:[%s1 + $0x14] sm:$0xf]
  %v56 = vld [vmem:[%s1 + $0x18] sm:$0xf]
  %v57 = vld [vmem:[%s1 + $0x1c] sm:$0xf]
  %v58 = vld [vmem:[%s1 + $0x20] sm:$0xf]
  %v59 = vld [vmem:[%s1 + $0x24] sm:$0xf]
  %v60 = vld [vmem:[%s1 + $0x28] sm:$0xf]
  %v61 = vld [vmem:[%s1 + $0x2c] sm:$0xf]
  %v62 = vld [vmem:[%s1 + $0x30] sm:$0xf]
  %v63 = vld [vmem:[%s1 + $0x34] sm:$0xf]
  %v64 = vld [vmem:[%s1 + $0x38] sm:$0xf]
  %v65 = vld [vmem:[%s1 + $0x3c] sm:$0xf]
  %v66 = vld [vmem:[%s1 + $0x40] sm:$0xf]
  %v67 = vld [vmem:[%s1 + $0x44] sm:$0xf]
  %v68 = vld [vmem:[%s1 + $0x48] sm:$0xf]
  %v69 = vld [vmem:[%s1 + $0x4c] sm:$0xf]
  %v70 = vld [vmem:[%s1 + $0x50] sm:$0xf]
  %v71 = vld [vmem:[%s1 + $0x54] sm:$0xf]
  %v72 = vld [vmem:[%s1 + $0x58] sm:$0xf]
  %v73 = vld [vmem:[%s1 + $0x5c] sm:$0xf]
  %v74 = vld [vmem:[%s1 + $0x60] sm:$0xf]
  %v75 = vld [vmem:[%s1 + $0x64] sm:$0xf]
  %v76 = vld [vmem:[%s1 + $0x68] sm:$0xf]
  %v77 = vld [vmem:[%s1 + $0x6c] sm:$0xf]
  %v78 = vld [vmem:[%s1 + $0x70] sm:$0xf]
  %v79 = vld [vmem:[%s1 + $0x74] sm:$0xf]
  %v80 = vld [vmem:[%s1 + $0x78] sm:$0xf]
  %v81 = vld [vmem:[%s1 + $0x7c] sm:$0xf]
  %v82 = vld [vmem:[%s1 + $0x80] sm:$0xf]
  %v83 = vld [vmem:[%s1 + $0x84] sm:$0xf]
  %v84 = vld [vmem:[%s1 + $0x88] sm:$0xf]
  %v85 = vld [vmem:[%s1 + $0x8c] sm:$0xf]
  %v86 = vld [vmem:[%s1 + $0x90] sm:$0xf]
  %v87 = vld [vmem:[%s1 + $0x94] sm:$0xf]
  %v88 = vld [vmem:[%s1 + $0x98] sm:$0xf]
  %v89 = vld [vmem:[%s1 + $0x9c] sm:$0xf]
  %v90 = vld [vmem:[%s1 + $0xa0] sm:$0xf]
  %v91 = vld [vmem:[%s1 + $0xa4] sm:$0xf]
  %v92 = vld [vmem:[%s1 + $0xa8] sm:$0xf]
  %v93 = vld [vmem:[%s1 + $0xac] sm:$0xf]
  %v94 = vld [vmem:[%s1 + $0xb0] sm:$0xf]
  %v95 = vld [vmem:[%s1 + $0xb4] sm:$0xf]
  %v96 = vld [vmem:[%s1 + $0xb8] sm:$0xf]
  %v97 = vld [vmem:[%s1 + $0xbc] sm:$0xf]
  %v114 = vunpack.c.l.b16 %v34
  %v115 = vunpack.c.h.b16 %v34
  %v116 = vunpack.c.l.b16 %v35
  %v117 = vunpack.c.l.b16 %v36
  %v118 = vunpack.c.h.b16 %v36
  %v119 = vunpack.c.l.b16 %v37
  %v120 = vunpack.c.l.b16 %v38
  %v121 = vunpack.c.h.b16 %v38
  %v122 = vunpack.c.l.b16 %v39
  %v123 = vunpack.c.l.b16 %v40
  %v124 = vunpack.c.h.b16 %v40
  %v125 = vunpack.c.l.b16 %v41
  %v126 = vunpack.c.l.b16 %v42
  %v127 = vunpack.c.h.b16 %v42
  %v128 = vunpack.c.l.b16 %v43
  %v129 = vunpack.c.l.b16 %v44
  %v130 = vunpack.c.h.b16 %v44
  %v131 = vunpack.c.l.b16 %v45
  %v132 = vunpack.c.l.b16 %v46
  %v133 = vunpack.c.h.b16 %v46
  %v134 = vunpack.c.l.b16 %v47
  %v135 = vunpack.c.l.b16 %v48
  %v136 = vunpack.c.h.b16 %v48
  %v137 = vunpack.c.l.b16 %v49
  %v138 = vpack.c.b16 %v117, %v114
  %v139 = vpack.c.b16 %v118, %v115
  %v140 = vpack.c.b16 %v119, %v116
  %v141 = vpack.c.b16 %v123, %v120
  %v142 = vpack.c.b16 %v124, %v121
  %v143 = vpack.c.b16 %v125, %v122
  %v144 = vpack.c.b16 %v129, %v126
  %v145 = vpack.c.b16 %v130, %v127
  %v146 = vpack.c.b16 %v131, %v128
  %v147 = vpack.c.b16 %v135, %v132
  %v148 = vpack.c.b16 %v136, %v133
  %v149 = vpack.c.b16 %v137, %v134
  %v210 = vunpack.c.l.b16 %v50
  %v211 = vunpack.c.l.b16 %v51
  %v212 = vunpack.c.l.b16 %v52
  %v213 = vunpack.c.l.b16 %v53
  %v214 = vunpack.c.l.b16 %v54
  %v215 = vunpack.c.l.b16 %v55
  %v216 = vunpack.c.l.b16 %v56
  %v217 = vunpack.c.l.b16 %v57
  %v218 = vunpack.c.l.b16 %v58
  %v219 = vunpack.c.l.b16 %v59
  %v220 = vunpack.c.l.b16 %v60
  %v221 = vunpack.c.l.b16 %v61
  %v222 = vunpack.c.l.b16 %v62
  %v223 = vunpack.c.l.b16 %v63
  %v224 = vunpack.c.l.b16 %v64
  %v225 = vunpack.c.l.b16 %v65
  %v226 = vunpack.c.l.b16 %v66
  %v227 = vunpack.c.l.b16 %v67
  %v228 = vunpack.c.l.b16 %v68
  %v229 = vunpack.c.l.b16 %v69
  %v230 = vunpack.c.l.b16 %v70
  %v231 = vunpack.c.l.b16 %v71
  %v232 = vunpack.c.l.b16 %v72
  %v233 = vunpack.c.l.b16 %v73
  %v234 = vunpack.c.l.b16 %v74
  %v235 = vunpack.c.l.b16 %v75
  %v236 = vunpack.c.l.b16 %v76
  %v237 = vunpack.c.l.b16 %v77
  %v238 = vunpack.c.l.b16 %v78
  %v239 = vunpack.c.l.b16 %v79
  %v240 = vunpack.c.l.b16 %v80
  %v241 = vunpack.c.l.b16 %v81
  %v242 = vunpack.c.l.b16 %v82
  %v243 = vunpack.c.l.b16 %v83
  %v244 = vunpack.c.l.b16 %v84
  %v245 = vunpack.c.l.b16 %v85
  %v246 = vunpack.c.l.b16 %v86
  %v247 = vunpack.c.l.b16 %v87
  %v248 = vunpack.c.l.b16 %v88
  %v249 = vunpack.c.l.b16 %v89
  %v250 = vunpack.c.l.b16 %v90
  %v251 = vunpack.c.l.b16 %v91
  %v252 = vunpack.c.l.b16 %v92
  %v253 = vunpack.c.l.b16 %v93
  %v254 = vunpack.c.l.b16 %v94
  %v255 = vunpack.c.l.b16 %v95
  %v256 = vunpack.c.l.b16 %v96
  %v257 = vunpack.c.l.b16 %v97
  %v258 = vpack.c.b16 %v211, %v210
  %v259 = vpack.c.b16 %v213, %v212
  %v260 = vpack.c.b16 %v215, %v214
  %v261 = vpack.c.b16 %v217, %v216
  %v262 = vpack.c.b16 %v219, %v218
  %v263 = vpack.c.b16 %v221, %v220
  %v264 = vpack.c.b16 %v223, %v222
  %v265 = vpack.c.b16 %v225, %v224
  %v266 = vpack.c.b16 %v227, %v226
  %v267 = vpack.c.b16 %v229, %v228
  %v268 = vpack.c.b16 %v231, %v230
  %v269 = vpack.c.b16 %v233, %v232
  %v270 = vpack.c.b16 %v235, %v234
  %v271 = vpack.c.b16 %v237, %v236
  %v272 = vpack.c.b16 %v239, %v238
  %v273 = vpack.c.b16 %v241, %v240
  %v274 = vpack.c.b16 %v243, %v242
  %v275 = vpack.c.b16 %v245, %v244
  %v276 = vpack.c.b16 %v247, %v246
  %v277 = vpack.c.b16 %v249, %v248
  %v278 = vpack.c.b16 %v251, %v250
  %v279 = vpack.c.b16 %v253, %v252
  %v280 = vpack.c.b16 %v255, %v254
  %v281 = vpack.c.b16 %v257, %v256
  %306 = vmatpush.bf16.msra.mxu0 %v265
  %307 = vmatpush.bf16.msra.mxu0 %v264
  %308 = vmatpush.bf16.msra.mxu0 %v263
  %309 = vmatpush.bf16.msra.mxu0 %v262
  %310 = vmatpush.bf16.msra.mxu0 %v261
  %311 = vmatpush.bf16.msra.mxu0 %v260
  %312 = vmatpush.bf16.msra.mxu0 %v259
  %313 = vmatpush.bf16.msra.mxu0 %v258
  %314 = vmatmul.bf16.gmra.mxu0 %v138
  %v315 = vpop.f32.mrf.mxu0
  %v316 = vadd.f32 0.0, %v315
  %v317 = vpop.f32.mrf.mxu0
  %v318 = vadd.f32 0.0, %v317
  %319 = vmatmul.bf16.gmra.mxu0 %v141
  %v320 = vpop.f32.mrf.mxu0
  %v321 = vadd.f32 0.0, %v320
  %v322 = vpop.f32.mrf.mxu0
  %v323 = vadd.f32 0.0, %v322
  %324 = vmatmul.bf16.gmra.mxu0 %v144
  %v325 = vpop.f32.mrf.mxu0
  %v326 = vadd.f32 0.0, %v325
  %v327 = vpop.f32.mrf.mxu0
  %v328 = vadd.f32 0.0, %v327
  %329 = vmatmul.bf16.gmra.mxu0 %v147
  %v330 = vpop.f32.mrf.mxu0
  %v331 = vadd.f32 0.0, %v330
  %v332 = vpop.f32.mrf.mxu0
  %v333 = vadd.f32 0.0, %v332
  %334 = vdwg.mxu0
  %335 = vmatpush.bf16.msra.mxu0 %v273
  %336 = vmatpush.bf16.msra.mxu0 %v272
  %337 = vmatpush.bf16.msra.mxu0 %v271
  %338 = vmatpush.bf16.msra.mxu0 %v270
  %339 = vmatpush.bf16.msra.mxu0 %v269
  %340 = vmatpush.bf16.msra.mxu0 %v268
  %341 = vmatpush.bf16.msra.mxu0 %v267
  %342 = vmatpush.bf16.msra.mxu0 %v266
  %343 = vmatmul.bf16.gmra.mxu0 %v139
  %v344 = vpop.f32.mrf.mxu0
  %v345 = vadd.f32 %v316, %v344
  %v346 = vpop.f32.mrf.mxu0
  %v347 = vadd.f32 %v318, %v346
  %348 = vmatmul.bf16.gmra.mxu0 %v142
  %v349 = vpop.f32.mrf.mxu0
  %v350 = vadd.f32 %v321, %v349
  %v351 = vpop.f32.mrf.mxu0
  %v352 = vadd.f32 %v323, %v351
  %353 = vmatmul.bf16.gmra.mxu0 %v145
  %v354 = vpop.f32.mrf.mxu0
  %v355 = vadd.f32 %v326, %v354
  %v356 = vpop.f32.mrf.mxu0
  %v357 = vadd.f32 %v328, %v356
  %358 = vmatmul.bf16.gmra.mxu0 %v148
  %v359 = vpop.f32.mrf.mxu0
  %v360 = vadd.f32 %v331, %v359
  %v361 = vpop.f32.mrf.mxu0
  %v362 = vadd.f32 %v333, %v361
  %363 = vdwg.mxu0
  %364 = vmatpush.bf16.msra.mxu0 %v281
  %365 = vmatpush.bf16.msra.mxu0 %v280
  %366 = vmatpush.bf16.msra.mxu0 %v279
  %367 = vmatpush.bf16.msra.mxu0 %v278
  %368 = vmatpush.bf16.msra.mxu0 %v277
  %369 = vmatpush.bf16.msra.mxu0 %v276
  %370 = vmatpush.bf16.msra.mxu0 %v275
  %371 = vmatpush.bf16.msra.mxu0 %v274
  %372 = vmatmul.bf16.gmra.mxu0 %v140
  %v373 = vpop.f32.mrf.mxu0
  %v374 = vadd.f32 %v345, %v373
  %v375 = vpop.f32.mrf.mxu0
  %v376 = vadd.f32 %v347, %v375
  %377 = vmatmul.bf16.gmra.mxu0 %v143
  %v378 = vpop.f32.mrf.mxu0
  %v379 = vadd.f32 %v350, %v378
  %v380 = vpop.f32.mrf.mxu0
  %v381 = vadd.f32 %v352, %v380
  %382 = vmatmul.bf16.gmra.mxu0 %v146
  %v383 = vpop.f32.mrf.mxu0
  %v384 = vadd.f32 %v355, %v383
  %v385 = vpop.f32.mrf.mxu0
  %v386 = vadd.f32 %v357, %v385
  %387 = vmatmul.bf16.gmra.mxu0 %v149
  %v388 = vpop.f32.mrf.mxu0
  %v389 = vadd.f32 %v360, %v388
  %v390 = vpop.f32.mrf.mxu0
  %v391 = vadd.f32 %v362, %v390
  %392 = vdwg.mxu0
  %v393 = vadd.f32 %v26, %v374
  %v394 = vadd.f32 %v27, %v376
  %v395 = vadd.f32 %v28, %v379
  %v396 = vadd.f32 %v29, %v381
  %v397 = vadd.f32 %v30, %v384
  %v398 = vadd.f32 %v31, %v386
  %v399 = vadd.f32 %v32, %v389
  %v400 = vadd.f32 %v33, %v391
  %401 = vst [vmem:[#allocation2] sm:$0xff] %v393
  %402 = vst [vmem:[#allocation2 + $0x8] sm:$0xff] %v394
  %403 = vst [vmem:[#allocation2 + $0x10] sm:$0xff] %v395
  %404 = vst [vmem:[#allocation2 + $0x18] sm:$0xff] %v396
  %405 = vst [vmem:[#allocation2 + $0x20] sm:$0xff] %v397
  %406 = vst [vmem:[#allocation2 + $0x28] sm:$0xff] %v398
  %407 = vst [vmem:[#allocation2 + $0x30] sm:$0xff] %v399
  %408 = vst [vmem:[#allocation2 + $0x38] sm:$0xff] %v400
  // Predicated region
  $region18: #{_forward_nchw.10} parent=0 // pred_check
    %p409 = pneg %p14
  $region19: #{_forward_nchw.10} parent=0 // pred_check_branch
    %411 = sbr.rel (%p409) target = $region21
  $region20: #{_forward_nchw.10} parent=0 // pred_region
    %v412 = vld [vmem:[#allocation2] sm:$0xff]
    %v413 = vld [vmem:[#allocation2 + $0x8] sm:$0xff]
    %v414 = vld [vmem:[#allocation2 + $0x10] sm:$0xff]
    %v415 = vld [vmem:[#allocation2 + $0x18] sm:$0xff]
    %v416 = vld [vmem:[#allocation2 + $0x20] sm:$0xff]
    %v417 = vld [vmem:[#allocation2 + $0x28] sm:$0xff]
    %v418 = vld [vmem:[#allocation2 + $0x30] sm:$0xff]
    %v419 = vld [vmem:[#allocation2 + $0x38] sm:$0xff]
    %v420 = vld [vmem:[%s2] sm:$0x1]
    %v422 = vperm.slane %v420, 0
    %v424 = vadd.f32 %v412, %v422
    %v425 = vadd.f32 %v413, %v422
    %v426 = vadd.f32 %v414, %v422
    %v427 = vadd.f32 %v415, %v422
    %v428 = vadd.f32 %v416, %v422
    %v429 = vadd.f32 %v417, %v422
    %v430 = vadd.f32 %v418, %v422
    %v431 = vadd.f32 %v419, %v422
    %v432 = vmax.f32 %v424, 0.0
    %v433 = vmax.f32 %v425, 0.0
    %v434 = vmax.f32 %v426, 0.0
    %v435 = vmax.f32 %v427, 0.0
    %v436 = vmax.f32 %v428, 0.0
    %v437 = vmax.f32 %v429, 0.0
    %v438 = vmax.f32 %v430, 0.0
    %v439 = vmax.f32 %v431, 0.0
    %v440 = vpack.c.bf16 %v432, %v432
    %v441 = vpack.c.bf16 %v433, %v433
    %v442 = vpack.c.bf16 %v434, %v434
    %v443 = vpack.c.bf16 %v435, %v435
    %v444 = vpack.c.bf16 %v436, %v436
    %v445 = vpack.c.bf16 %v437, %v437
    %v446 = vpack.c.bf16 %v438, %v438
    %v447 = vpack.c.bf16 %v439, %v439
    %448 = vst [vmem:[%s3] sm:$0xf] %v440
    %449 = vst [vmem:[%s3 + $0x4] sm:$0xf] %v441
    %450 = vst [vmem:[%s3 + $0x8] sm:$0xf] %v442
    %451 = vst [vmem:[%s3 + $0xc] sm:$0xf] %v443
    %452 = vst [vmem:[%s3 + $0x10] sm:$0xf] %v444
    %453 = vst [vmem:[%s3 + $0x14] sm:$0xf] %v445
    %454 = vst [vmem:[%s3 + $0x18] sm:$0xf] %v446
    %455 = vst [vmem:[%s3 + $0x1c] sm:$0xf] %v447
  $region21: #{_forward_nchw.10} parent=0 // pred_fallthru
    _
  // Predicated region
  $region22: #{_forward_nchw.10} parent=0 // pred_check
    _
  $region23: #{_forward_nchw.10} parent=0 // pred_check_branch
    %457 = sbr.rel (0) target = $region25
  $region24: #{_forward_nchw.10} parent=0 // pred_region
    _
  $region25: #{_forward_nchw.10} parent=0 // pred_fallthru
    _
  // Predicated region
  $region26: #{_forward_nchw.10} parent=0 // pred_check
    _
  $region27: #{_forward_nchw.10} parent=0 // pred_check_branch
    %459 = sbr.rel (0) target = $region29
  $region28: #{_forward_nchw.10} parent=0 // pred_region
    _
  $region29: #{_forward_nchw.10} parent=0 // pred_fallthru
    _

// kernel: tile.9
$region0: #{tile.9}
  %s0 = inlined_call_operand.vmem [shape: f32[2,9,4,32], index: 0, kind: input, shape index: {}]
  %s1 = inlined_call_operand.vmem [shape: f32[2,9,128], index: 1, kind: output, shape index: {}]
  $region1: #{tile.9} parent=0
    #allocation0 [shape = 'u8[36864]{0}', space=vmem, size = 0x9000, scoped, tag = 'scoped mem for output reshape']
    #allocation1 [shape = 'u8[73728]{0}', space=vmem, size = 0x12000, scoped, tag = 'scoped mem for input reshape']
    %s3 = ssub.s32 16, 1
    %s4 = scalar_lea.vmem %s0, 68
    %v5 = vld [vmem:[%s4] sm:%s3]
    %s6 = scalar_lea.vmem [#allocation1], 136
    %7 = vst [vmem:[%s6] sm:%s3] %v5
    %s8 = scalar_lea.vmem %s0, 64
    %v9 = vld [vmem:[%s8] sm:%s3]
    %s10 = scalar_lea.vmem [#allocation1], 128
    %11 = vst [vmem:[%s10] sm:%s3] %v9
    %s12 = scalar_lea.vmem %s0, 60
    %v13 = vld [vmem:[%s12] sm:%s3]
    %s14 = scalar_lea.vmem [#allocation1], 120
    %15 = vst [vmem:[%s14] sm:%s3] %v13
    %s16 = scalar_lea.vmem %s0, 56
    %v17 = vld [vmem:[%s16] sm:%s3]
    %s18 = scalar_lea.vmem [#allocation1], 112
    %19 = vst [vmem:[%s18] sm:%s3] %v17
    %s20 = scalar_lea.vmem %s0, 52
    %v21 = vld [vmem:[%s20] sm:%s3]
    %s22 = scalar_lea.vmem [#allocation1], 104
    %23 = vst [vmem:[%s22] sm:%s3] %v21
    %s24 = scalar_lea.vmem %s0, 48
    %v25 = vld [vmem:[%s24] sm:%s3]
    %s26 = scalar_lea.vmem [#allocation1], 96
    %27 = vst [vmem:[%s26] sm:%s3] %v25
    %s28 = scalar_lea.vmem %s0, 44
    %v29 = vld [vmem:[%s28] sm:%s3]
    %s30 = scalar_lea.vmem [#allocation1], 88
    %31 = vst [vmem:[%s30] sm:%s3] %v29
    %s32 = scalar_lea.vmem %s0, 40
    %v33 = vld [vmem:[%s32] sm:%s3]
    %s34 = scalar_lea.vmem [#allocation1], 80
    %35 = vst [vmem:[%s34] sm:%s3] %v33
    %s36 = scalar_lea.vmem %s0, 36
    %v37 = vld [vmem:[%s36] sm:%s3]
    %s38 = scalar_lea.vmem [#allocation1], 72
    %39 = vst [vmem:[%s38] sm:%s3] %v37
    %s40 = scalar_lea.vmem %s0, 32
    %v41 = vld [vmem:[%s40] sm:%s3]
    %s42 = scalar_lea.vmem [#allocation1], 64
    %43 = vst [vmem:[%s42] sm:%s3] %v41
    %s44 = scalar_lea.vmem %s0, 28
    %v45 = vld [vmem:[%s44] sm:%s3]
    %s46 = scalar_lea.vmem [#allocation1], 56
    %47 = vst [vmem:[%s46] sm:%s3] %v45
    %s48 = scalar_lea.vmem %s0, 24
    %v49 = vld [vmem:[%s48] sm:%s3]
    %s50 = scalar_lea.vmem [#allocation1], 48
    %51 = vst [vmem:[%s50] sm:%s3] %v49
    %s52 = scalar_lea.vmem %s0, 20
    %v53 = vld [vmem:[%s52] sm:%s3]
    %s54 = scalar_lea.vmem [#allocation1], 40
    %55 = vst [vmem:[%s54] sm:%s3] %v53
    %s56 = scalar_lea.vmem %s0, 16
    %v57 = vld [vmem:[%s56] sm:%s3]
    %s58 = scalar_lea.vmem [#allocation1], 32
    %59 = vst [vmem:[%s58] sm:%s3] %v57
    %s60 = scalar_lea.vmem %s0, 12
    %v61 = vld [vmem:[%s60] sm:%s3]
    %s62 = scalar_lea.vmem [#allocation1], 24
    %63 = vst [vmem:[%s62] sm:%s3] %v61
    %s64 = scalar_lea.vmem %s0, 8
    %v65 = vld [vmem:[%s64] sm:%s3]
    %s66 = scalar_lea.vmem [#allocation1], 16
    %67 = vst [vmem:[%s66] sm:%s3] %v65
    %s68 = scalar_lea.vmem %s0, 4
    %v69 = vld [vmem:[%s68] sm:%s3]
    %s70 = scalar_lea.vmem [#allocation1], 8
    %71 = vst [vmem:[%s70] sm:%s3] %v69
    %v72 = vld [vmem:[%s0] sm:%s3]
    %73 = vst [vmem:[#allocation1] sm:%s3] %v72
    %v74 = vld [vmem:[#allocation1] ss:$8 sm:$0xf]
    %v75 = vld [vmem:[#allocation1] ss:$8 sm:$0xf0]
    %vm76 = vcmask 1047556
    %v77 = vsel %vm76, %v75, %v74
    %vm78 = vcmask 261120
    %79 = vst.msk [vmem:[#allocation0] sm:$0x3] %vm78, %v77
    %s80 = scalar_lea.vmem [#allocation0], 6
    %81 = vst.msk [vmem:[%s80] sm:$0xc] %vm78, %v77
    %s82 = scalar_lea.vmem [#allocation0], 12
    %83 = vst.msk [vmem:[%s82] sm:$0x30] %vm78, %v77
    %s84 = scalar_lea.vmem [#allocation0], 18
    %85 = vst.msk [vmem:[%s84] sm:$0xc0] %vm78, %v77
    %s86 = scalar_lea.vmem [#allocation1], 64
    %v87 = vld [vmem:[%s86] ss:$8 sm:$0xf]
    %s88 = scalar_lea.vmem [#allocation1], 64
    %v89 = vld [vmem:[%s88] ss:$8 sm:$0xf0]
    %vm90 = vcmask 1047556
    %v91 = vsel %vm90, %v89, %v87
    %vm92 = vcmask 261120
    %s93 = scalar_lea.vmem [#allocation0], 32
    %94 = vst.msk [vmem:[%s93] sm:$0x3] %vm92, %v91
    %s95 = scalar_lea.vmem [#allocation0], 38
    %96 = vst.msk [vmem:[%s95] sm:$0xc] %vm92, %v91
    %s97 = scalar_lea.vmem [#allocation0], 44
    %98 = vst.msk [vmem:[%s97] sm:$0x30] %vm92, %v91
    %s99 = scalar_lea.vmem [#allocation0], 50
    %100 = vst.msk [vmem:[%s99] sm:$0xc0] %vm92, %v91
    %s101 = scalar_lea.vmem [#allocation1], 128
    %s102 = smov 3
    %v103 = vld [vmem:[%s101] ss:$8 sm:%s102]
    %vm104 = vcmask 261120
    %s105 = scalar_lea.vmem [#allocation0], 64
    %106 = vst.msk [vmem:[%s105] sm:$0x3] %vm104, %v103
    %s107 = scalar_lea.vmem [#allocation1], 3
    %v108 = vld [vmem:[%s107] ss:$8 sm:$0xf]
    %s109 = scalar_lea.vmem [#allocation1], 3
    %v110 = vld [vmem:[%s109] ss:$8 sm:$0xf0]
    %vm111 = vcmask 1047556
    %v112 = vsel %vm111, %v110, %v108
    %113 = vrot.lane.b32.xlu0 %v112, 96
    %v114 = vpop.permute.xlu0 %113
    %vm115 = vcmask 1048320
    %116 = vst.msk [vmem:[#allocation0] sm:$0x3] %vm115, %v114
    %s117 = scalar_lea.vmem [#allocation0], 6
    %118 = vst.msk [vmem:[%s117] sm:$0xc] %vm115, %v114
    %s119 = scalar_lea.vmem [#allocation0], 12
    %120 = vst.msk [vmem:[%s119] sm:$0x30] %vm115, %v114
    %s121 = scalar_lea.vmem [#allocation0], 18
    %122 = vst.msk [vmem:[%s121] sm:$0xc0] %vm115, %v114
    %s123 = scalar_lea.vmem [#allocation1], 67
    %v124 = vld [vmem:[%s123] ss:$8 sm:$0xf]
    %s125 = scalar_lea.vmem [#allocation1], 67
    %v126 = vld [vmem:[%s125] ss:$8 sm:$0xf0]
    %vm127 = vcmask 1047556
    %v128 = vsel %vm127, %v126, %v124
    %129 = vrot.lane.b32.xlu0 %v128, 96
    %v130 = vpop.permute.xlu0 %129
    %vm131 = vcmask 1048320
    %s132 = scalar_lea.vmem [#allocation0], 32
    %133 = vst.msk [vmem:[%s132] sm:$0x3] %vm131, %v130
    %s134 = scalar_lea.vmem [#allocation0], 38
    %135 = vst.msk [vmem:[%s134] sm:$0xc] %vm131, %v130
    %s136 = scalar_lea.vmem [#allocation0], 44
    %137 = vst.msk [vmem:[%s136] sm:$0x30] %vm131, %v130
    %s138 = scalar_lea.vmem [#allocation0], 50
    %139 = vst.msk [vmem:[%s138] sm:$0xc0] %vm131, %v130
    %s140 = scalar_lea.vmem [#allocation1], 131
    %s141 = smov 3
    %v142 = vld [vmem:[%s140] ss:$8 sm:%s141]
    %143 = vrot.lane.b32.xlu0 %v142, 96
    %v144 = vpop.permute.xlu0 %143
    %vm145 = vcmask 1048320
    %s146 = scalar_lea.vmem [#allocation0], 64
    %147 = vst.msk [vmem:[%s146] sm:$0x3] %vm145, %v144
    %s148 = scalar_lea.vmem [#allocation1], 2
    %v149 = vld [vmem:[%s148] ss:$8 sm:$0xf]
    %s150 = scalar_lea.vmem [#allocation1], 2
    %v151 = vld [vmem:[%s150] ss:$8 sm:$0xf0]
    %vm152 = vcmask 1047556
    %v153 = vsel %vm152, %v151, %v149
    %154 = vrot.lane.b32.xlu0 %v153, 64
    %v155 = vpop.permute.xlu0 %154
    %vm156 = vcmask 785920
    %157 = vst.msk [vmem:[#allocation0] sm:$0x3] %vm156, %v155
    %s158 = scalar_lea.vmem [#allocation0], 6
    %159 = vst.msk [vmem:[%s158] sm:$0xc] %vm156, %v155
    %s160 = scalar_lea.vmem [#allocation0], 12
    %161 = vst.msk [vmem:[%s160] sm:$0x30] %vm156, %v155
    %s162 = scalar_lea.vmem [#allocation0], 18
    %163 = vst.msk [vmem:[%s162] sm:$0xc0] %vm156, %v155
    %s164 = scalar_lea.vmem [#allocation1], 66
    %v165 = vld [vmem:[%s164] ss:$8 sm:$0xf]
    %s166 = scalar_lea.vmem [#allocation1], 66
    %v167 = vld [vmem:[%s166] ss:$8 sm:$0xf0]
    %vm168 = vcmask 1047556
    %v169 = vsel %vm168, %v167, %v165
    %170 = vrot.lane.b32.xlu0 %v169, 64
    %v171 = vpop.permute.xlu0 %170
    %vm172 = vcmask 785920
    %s173 = scalar_lea.vmem [#allocation0], 32
    %174 = vst.msk [vmem:[%s173] sm:$0x3] %vm172, %v171
    %s175 = scalar_lea.vmem [#allocation0], 38
    %176 = vst.msk [vmem:[%s175] sm:$0xc] %vm172, %v171
    %s177 = scalar_lea.vmem [#allocation0], 44
    %178 = vst.msk [vmem:[%s177] sm:$0x30] %vm172, %v171
    %s179 = scalar_lea.vmem [#allocation0], 50
    %180 = vst.msk [vmem:[%s179] sm:$0xc0] %vm172, %v171
    %s181 = scalar_lea.vmem [#allocation1], 130
    %s182 = smov 3
    %v183 = vld [vmem:[%s181] ss:$8 sm:%s182]
    %184 = vrot.lane.b32.xlu0 %v183, 64
    %v185 = vpop.permute.xlu0 %184
    %vm186 = vcmask 785920
    %s187 = scalar_lea.vmem [#allocation0], 64
    %188 = vst.msk [vmem:[%s187] sm:$0x3] %vm186, %v185
    %s189 = scalar_lea.vmem [#allocation1], 1
    %v190 = vld [vmem:[%s189] ss:$8 sm:$0xf]
    %s191 = scalar_lea.vmem [#allocation1], 1
    %v192 = vld [vmem:[%s191] ss:$8 sm:$0xf0]
    %vm193 = vcmask 1047556
    %v194 = vsel %vm193, %v192, %v190
    %195 = vrot.lane.b32.xlu0 %v194, 32
    %v196 = vpop.permute.xlu0 %195
    %vm197 = vcmask 523520
    %198 = vst.msk [vmem:[#allocation0] sm:$0x3] %vm197, %v196
    %s199 = scalar_lea.vmem [#allocation0], 6
    %200 = vst.msk [vmem:[%s199] sm:$0xc] %vm197, %v196
    %s201 = scalar_lea.vmem [#allocation0], 12
    %202 = vst.msk [vmem:[%s201] sm:$0x30] %vm197, %v196
    %s203 = scalar_lea.vmem [#allocation0], 18
    %204 = vst.msk [vmem:[%s203] sm:$0xc0] %vm197, %v196
    %s205 = scalar_lea.vmem [#allocation1], 65
    %v206 = vld [vmem:[%s205] ss:$8 sm:$0xf]
    %s207 = scalar_lea.vmem [#allocation1], 65
    %v208 = vld [vmem:[%s207] ss:$8 sm:$0xf0]
    %vm209 = vcmask 1047556
    %v210 = vsel %vm209, %v208, %v206
    %211 = vrot.lane.b32.xlu0 %v210, 32
    %v212 = vpop.permute.xlu0 %211
    %vm213 = vcmask 523520
    %s214 = scalar_lea.vmem [#allocation0], 32
    %215 = vst.msk [vmem:[%s214] sm:$0x3] %vm213, %v212
    %s216 = scalar_lea.vmem [#allocation0], 38
    %217 = vst.msk [vmem:[%s216] sm:$0xc] %vm213, %v212
    %s218 = scalar_lea.vmem [#allocation0], 44
    %219 = vst.msk [vmem:[%s218] sm:$0x30] %vm213, %v212
    %s220 = scalar_lea.vmem [#allocation0], 50
    %221 = vst.msk [vmem:[%s220] sm:$0xc0] %vm213, %v212
    %s222 = scalar_lea.vmem [#allocation1], 129
    %s223 = smov 3
    %v224 = vld [vmem:[%s222] ss:$8 sm:%s223]
    %225 = vrot.lane.b32.xlu0 %v224, 32
    %v226 = vpop.permute.xlu0 %225
    %vm227 = vcmask 523520
    %s228 = scalar_lea.vmem [#allocation0], 64
    %229 = vst.msk [vmem:[%s228] sm:$0x3] %vm227, %v226
    %s231 = ssub.s32 4, 1
    %v232 = vld [vmem:[#allocation0] sm:%s231]
    %s234 = ssub.s32 4, 1
    %235 = vst [vmem:[%s1] sm:%s234] %v232
    %s236 = scalar_lea.vmem [#allocation0], 8
    %v237 = vld [vmem:[%s236] sm:%s231]
    %s239 = ssub.s32 4, 1
    %s240 = scalar_lea.vmem %s1, 2
    %241 = vst [vmem:[%s240] sm:%s239] %v237
    %s242 = scalar_lea.vmem [#allocation0], 16
    %v243 = vld [vmem:[%s242] sm:%s231]
    %s245 = ssub.s32 4, 1
    %s246 = scalar_lea.vmem %s1, 4
    %247 = vst [vmem:[%s246] sm:%s245] %v243
    %s248 = scalar_lea.vmem [#allocation0], 24
    %v249 = vld [vmem:[%s248] sm:%s231]
    %s251 = ssub.s32 4, 1
    %s252 = scalar_lea.vmem %s1, 6
    %253 = vst [vmem:[%s252] sm:%s251] %v249
    %s254 = scalar_lea.vmem [#allocation0], 32
    %v255 = vld [vmem:[%s254] sm:%s231]
    %s257 = ssub.s32 4, 1
    %s258 = scalar_lea.vmem %s1, 8
    %259 = vst [vmem:[%s258] sm:%s257] %v255
    %s260 = scalar_lea.vmem [#allocation0], 40
    %v261 = vld [vmem:[%s260] sm:%s231]
    %s263 = ssub.s32 4, 1
    %s264 = scalar_lea.vmem %s1, 10
    %265 = vst [vmem:[%s264] sm:%s263] %v261
    %s266 = scalar_lea.vmem [#allocation0], 48
    %v267 = vld [vmem:[%s266] sm:%s231]
    %s269 = ssub.s32 4, 1
    %s270 = scalar_lea.vmem %s1, 12
    %271 = vst [vmem:[%s270] sm:%s269] %v267
    %s272 = scalar_lea.vmem [#allocation0], 56
    %v273 = vld [vmem:[%s272] sm:%s231]
    %s275 = ssub.s32 4, 1
    %s276 = scalar_lea.vmem %s1, 14
    %277 = vst [vmem:[%s276] sm:%s275] %v273
    %s278 = scalar_lea.vmem [#allocation0], 64
    %v279 = vld [vmem:[%s278] sm:%s231]
    %s281 = ssub.s32 4, 1
    %s282 = scalar_lea.vmem %s1, 16
    %283 = vst [vmem:[%s282] sm:%s281] %v279

// kernel: _forward_nchw.11
$region0: #{_forward_nchw.11}
  #allocation0 [shape = 'u32[]', space=smem, size = 0x4, offset = 0x4, fixed_abs, tag = 'smem constant byte address 0x4 - core index']
  #allocation1 [shape = 'u32[72,128]{1,0:T(1,128)}', space=vmem, size = 0x9000, scoped, tag = 'internal scratch']
  #allocation2 [shape = 'f32[8,384]{1,0:T(8,128)}', space=vmem, size = 0x3000, scoped, tag = 'scratch operand']
  %s0 = inlined_call_operand.vmem [shape: bf16[8,512], index: 0, kind: input, shape index: {}]
  %s1 = inlined_call_operand.vmem [shape: bf16[512,384], index: 1, kind: input, shape index: {}]
  %s2 = inlined_call_operand.vmem [shape: f32[1,384], index: 2, kind: input, shape index: {}]
  %s3 = inlined_call_operand.vmem [shape: f32[8,384], index: 3, kind: output, shape index: {}]
  %s4 = sld [smem:[#allocation0]]
  $region30: #{_forward_nchw.11} parent=0
    _
  %s6 = ssub.s32 1, %s4
  %s7 = scalar_select 0, %s6, %s4
  // Predicated region
  $region2: #{_forward_nchw.11} parent=0 // pred_check
    _
  $region3: #{_forward_nchw.11} parent=0 // pred_check_branch
    %9 = sbr.rel (0) target = $region5
  $region4: #{_forward_nchw.11} parent=0 // pred_region
    _
  $region5: #{_forward_nchw.11} parent=0 // pred_fallthru
    _
  // Predicated region
  $region6: #{_forward_nchw.11} parent=0 // pred_check
    _
  $region7: #{_forward_nchw.11} parent=0 // pred_check_branch
    %11 = sbr.rel (0) target = $region9
  $region8: #{_forward_nchw.11} parent=0 // pred_region
    _
  $region9: #{_forward_nchw.11} parent=0 // pred_fallthru
    _
  // Predicated region
  $region10: #{_forward_nchw.11} parent=0 // pred_check
    _
  $region11: #{_forward_nchw.11} parent=0 // pred_check_branch
    %13 = sbr.rel (0) target = $region13
  $region12: #{_forward_nchw.11} parent=0 // pred_region
    _
  $region13: #{_forward_nchw.11} parent=0 // pred_fallthru
    _
  %p14 = scmp.eq.s32.totalorder 0, 0
  // Predicated region
  $region14: #{_forward_nchw.11} parent=0 // pred_check
    %p15 = pneg %p14
  $region15: #{_forward_nchw.11} parent=0 // pred_check_branch
    %17 = sbr.rel (%p15) target = $region17
  $region16: #{_forward_nchw.11} parent=0 // pred_region
    %18 = vst [vmem:[#allocation2] sm:$0xff] 0.0
    %19 = vst [vmem:[#allocation2 + $0x8] sm:$0xff] 0.0
    %20 = vst [vmem:[#allocation2 + $0x10] sm:$0xff] 0.0
  $region17: #{_forward_nchw.11} parent=0 // pred_fallthru
    _
  %v21 = vld [vmem:[#allocation2] sm:$0xff]
  %v22 = vld [vmem:[#allocation2 + $0x8] sm:$0xff]
  %v23 = vld [vmem:[#allocation2 + $0x10] sm:$0xff]
  %v24 = vld [vmem:[%s0] sm:$0xff]
  %v25 = vld [vmem:[%s0 + $0x8] sm:$0xff]
  %v26 = vld [vmem:[%s1] sm:$0xff]
  %v27 = vld [vmem:[%s1 + $0x8] sm:$0xf]
  %v28 = vld [vmem:[%s1 + $0xc] sm:$0xff]
  %v29 = vld [vmem:[%s1 + $0x14] sm:$0xf]
  %v30 = vld [vmem:[%s1 + $0x18] sm:$0xff]
  %v31 = vld [vmem:[%s1 + $0x20] sm:$0xf]
  %v32 = vld [vmem:[%s1 + $0x24] sm:$0xff]
  %v33 = vld [vmem:[%s1 + $0x2c] sm:$0xf]
  %v34 = vld [vmem:[%s1 + $0x30] sm:$0xff]
  %v35 = vld [vmem:[%s1 + $0x38] sm:$0xf]
  %v36 = vld [vmem:[%s1 + $0x3c] sm:$0xff]
  %v37 = vld [vmem:[%s1 + $0x44] sm:$0xf]
  %v38 = vld [vmem:[%s1 + $0x48] sm:$0xff]
  %v39 = vld [vmem:[%s1 + $0x50] sm:$0xf]
  %v40 = vld [vmem:[%s1 + $0x54] sm:$0xff]
  %v41 = vld [vmem:[%s1 + $0x5c] sm:$0xf]
  %v42 = vld [vmem:[%s1 + $0x60] sm:$0xff]
  %v43 = vld [vmem:[%s1 + $0x68] sm:$0xf]
  %v44 = vld [vmem:[%s1 + $0x6c] sm:$0xff]
  %v45 = vld [vmem:[%s1 + $0x74] sm:$0xf]
  %v46 = vld [vmem:[%s1 + $0x78] sm:$0xff]
  %v47 = vld [vmem:[%s1 + $0x80] sm:$0xf]
  %v48 = vld [vmem:[%s1 + $0x84] sm:$0xff]
  %v49 = vld [vmem:[%s1 + $0x8c] sm:$0xf]
  %v50 = vld [vmem:[%s1 + $0x90] sm:$0xff]
  %v51 = vld [vmem:[%s1 + $0x98] sm:$0xf]
  %v52 = vld [vmem:[%s1 + $0x9c] sm:$0xff]
  %v53 = vld [vmem:[%s1 + $0xa4] sm:$0xf]
  %v54 = vld [vmem:[%s1 + $0xa8] sm:$0xff]
  %v55 = vld [vmem:[%s1 + $0xb0] sm:$0xf]
  %v56 = vld [vmem:[%s1 + $0xb4] sm:$0xff]
  %v57 = vld [vmem:[%s1 + $0xbc] sm:$0xf]
  %v58 = vld [vmem:[%s1 + $0xc0] sm:$0xff]
  %v59 = vld [vmem:[%s1 + $0xc8] sm:$0xf]
  %v60 = vld [vmem:[%s1 + $0xcc] sm:$0xff]
  %v61 = vld [vmem:[%s1 + $0xd4] sm:$0xf]
  %v62 = vld [vmem:[%s1 + $0xd8] sm:$0xff]
  %v63 = vld [vmem:[%s1 + $0xe0] sm:$0xf]
  %v64 = vld [vmem:[%s1 + $0xe4] sm:$0xff]
  %v65 = vld [vmem:[%s1 + $0xec] sm:$0xf]
  %v66 = vld [vmem:[%s1 + $0xf0] sm:$0xff]
  %v67 = vld [vmem:[%s1 + $0xf8] sm:$0xf]
  %v68 = vld [vmem:[%s1 + $0xfc] sm:$0xff]
  %v69 = vld [vmem:[%s1 + $0x104] sm:$0xf]
  %v70 = vld [vmem:[%s1 + $0x108] sm:$0xff]
  %v71 = vld [vmem:[%s1 + $0x110] sm:$0xf]
  %v72 = vld [vmem:[%s1 + $0x114] sm:$0xff]
  %v73 = vld [vmem:[%s1 + $0x11c] sm:$0xf]
  %v74 = vld [vmem:[%s1 + $0x120] sm:$0xff]
  %v75 = vld [vmem:[%s1 + $0x128] sm:$0xf]
  %v76 = vld [vmem:[%s1 + $0x12c] sm:$0xff]
  %v77 = vld [vmem:[%s1 + $0x134] sm:$0xf]
  %v78 = vld [vmem:[%s1 + $0x138] sm:$0xff]
  %v79 = vld [vmem:[%s1 + $0x140] sm:$0xf]
  %v80 = vld [vmem:[%s1 + $0x144] sm:$0xff]
  %v81 = vld [vmem:[%s1 + $0x14c] sm:$0xf]
  %v82 = vld [vmem:[%s1 + $0x150] sm:$0xff]
  %v83 = vld [vmem:[%s1 + $0x158] sm:$0xf]
  %v84 = vld [vmem:[%s1 + $0x15c] sm:$0xff]
  %v85 = vld [vmem:[%s1 + $0x164] sm:$0xf]
  %v86 = vld [vmem:[%s1 + $0x168] sm:$0xff]
  %v87 = vld [vmem:[%s1 + $0x170] sm:$0xf]
  %v88 = vld [vmem:[%s1 + $0x174] sm:$0xff]
  %v89 = vld [vmem:[%s1 + $0x17c] sm:$0xf]
  %v90 = vld [vmem:[%s1 + $0x180] sm:$0xff]
  %v91 = vld [vmem:[%s1 + $0x188] sm:$0xf]
  %v92 = vld [vmem:[%s1 + $0x18c] sm:$0xff]
  %v93 = vld [vmem:[%s1 + $0x194] sm:$0xf]
  %v94 = vld [vmem:[%s1 + $0x198] sm:$0xff]
  %v95 = vld [vmem:[%s1 + $0x1a0] sm:$0xf]
  %v96 = vld [vmem:[%s1 + $0x1a4] sm:$0xff]
  %v97 = vld [vmem:[%s1 + $0x1ac] sm:$0xf]
  %v98 = vld [vmem:[%s1 + $0x1b0] sm:$0xff]
  %v99 = vld [vmem:[%s1 + $0x1b8] sm:$0xf]
  %v100 = vld [vmem:[%s1 + $0x1bc] sm:$0xff]
  %v101 = vld [vmem:[%s1 + $0x1c4] sm:$0xf]
  %v102 = vld [vmem:[%s1 + $0x1c8] sm:$0xff]
  %v103 = vld [vmem:[%s1 + $0x1d0] sm:$0xf]
  %v104 = vld [vmem:[%s1 + $0x1d4] sm:$0xff]
  %v105 = vld [vmem:[%s1 + $0x1dc] sm:$0xf]
  %v106 = vld [vmem:[%s1 + $0x1e0] sm:$0xff]
  %v107 = vld [vmem:[%s1 + $0x1e8] sm:$0xf]
  %v108 = vld [vmem:[%s1 + $0x1ec] sm:$0xff]
  %v109 = vld [vmem:[%s1 + $0x1f4] sm:$0xf]
  %v110 = vld [vmem:[%s1 + $0x1f8] sm:$0xff]
  %v111 = vld [vmem:[%s1 + $0x200] sm:$0xf]
  %v112 = vld [vmem:[%s1 + $0x204] sm:$0xff]
  %v113 = vld [vmem:[%s1 + $0x20c] sm:$0xf]
  %v114 = vld [vmem:[%s1 + $0x210] sm:$0xff]
  %v115 = vld [vmem:[%s1 + $0x218] sm:$0xf]
  %v116 = vld [vmem:[%s1 + $0x21c] sm:$0xff]
  %v117 = vld [vmem:[%s1 + $0x224] sm:$0xf]
  %v118 = vld [vmem:[%s1 + $0x228] sm:$0xff]
  %v119 = vld [vmem:[%s1 + $0x230] sm:$0xf]
  %v120 = vld [vmem:[%s1 + $0x234] sm:$0xff]
  %v121 = vld [vmem:[%s1 + $0x23c] sm:$0xf]
  %v122 = vld [vmem:[%s1 + $0x240] sm:$0xff]
  %v123 = vld [vmem:[%s1 + $0x248] sm:$0xf]
  %v124 = vld [vmem:[%s1 + $0x24c] sm:$0xff]
  %v125 = vld [vmem:[%s1 + $0x254] sm:$0xf]
  %v126 = vld [vmem:[%s1 + $0x258] sm:$0xff]
  %v127 = vld [vmem:[%s1 + $0x260] sm:$0xf]
  %v128 = vld [vmem:[%s1 + $0x264] sm:$0xff]
  %v129 = vld [vmem:[%s1 + $0x26c] sm:$0xf]
  %v130 = vld [vmem:[%s1 + $0x270] sm:$0xff]
  %v131 = vld [vmem:[%s1 + $0x278] sm:$0xf]
  %v132 = vld [vmem:[%s1 + $0x27c] sm:$0xff]
  %v133 = vld [vmem:[%s1 + $0x284] sm:$0xf]
  %v134 = vld [vmem:[%s1 + $0x288] sm:$0xff]
  %v135 = vld [vmem:[%s1 + $0x290] sm:$0xf]
  %v136 = vld [vmem:[%s1 + $0x294] sm:$0xff]
  %v137 = vld [vmem:[%s1 + $0x29c] sm:$0xf]
  %v138 = vld [vmem:[%s1 + $0x2a0] sm:$0xff]
  %v139 = vld [vmem:[%s1 + $0x2a8] sm:$0xf]
  %v140 = vld [vmem:[%s1 + $0x2ac] sm:$0xff]
  %v141 = vld [vmem:[%s1 + $0x2b4] sm:$0xf]
  %v142 = vld [vmem:[%s1 + $0x2b8] sm:$0xff]
  %v143 = vld [vmem:[%s1 + $0x2c0] sm:$0xf]
  %v144 = vld [vmem:[%s1 + $0x2c4] sm:$0xff]
  %v145 = vld [vmem:[%s1 + $0x2cc] sm:$0xf]
  %v146 = vld [vmem:[%s1 + $0x2d0] sm:$0xff]
  %v147 = vld [vmem:[%s1 + $0x2d8] sm:$0xf]
  %v148 = vld [vmem:[%s1 + $0x2dc] sm:$0xff]
  %v149 = vld [vmem:[%s1 + $0x2e4] sm:$0xf]
  %v150 = vld [vmem:[%s1 + $0x2e8] sm:$0xff]
  %v151 = vld [vmem:[%s1 + $0x2f0] sm:$0xf]
  %v152 = vld [vmem:[%s1 + $0x2f4] sm:$0xff]
  %v153 = vld [vmem:[%s1 + $0x2fc] sm:$0xf]
  %v156 = vunpack.c.l.b16 %v24
  %v157 = vunpack.c.h.b16 %v24
  %v158 = vunpack.c.l.b16 %v25
  %v159 = vunpack.c.h.b16 %v25
  %v160 = vpack.c.b16 %v156, %v156
  %v161 = vpack.c.b16 %v157, %v157
  %v162 = vpack.c.b16 %v158, %v158
  %v163 = vpack.c.b16 %v159, %v159
  %v296 = vunpack.c.l.b16 %v26
  %v297 = vunpack.c.h.b16 %v26
  %v298 = vunpack.c.l.b16 %v27
  %v299 = vunpack.c.l.b16 %v28
  %v300 = vunpack.c.h.b16 %v28
  %v301 = vunpack.c.l.b16 %v29
  %v302 = vunpack.c.l.b16 %v30
  %v303 = vunpack.c.h.b16 %v30
  %v304 = vunpack.c.l.b16 %v31
  %v305 = vunpack.c.l.b16 %v32
  %v306 = vunpack.c.h.b16 %v32
  %v307 = vunpack.c.l.b16 %v33
  %v308 = vunpack.c.l.b16 %v34
  %v309 = vunpack.c.h.b16 %v34
  %v310 = vunpack.c.l.b16 %v35
  %v311 = vunpack.c.l.b16 %v36
  %v312 = vunpack.c.h.b16 %v36
  %v313 = vunpack.c.l.b16 %v37
  %v314 = vunpack.c.l.b16 %v38
  %v315 = vunpack.c.h.b16 %v38
  %v316 = vunpack.c.l.b16 %v39
  %v317 = vunpack.c.l.b16 %v40
  %v318 = vunpack.c.h.b16 %v40
  %v319 = vunpack.c.l.b16 %v41
  %v320 = vunpack.c.l.b16 %v42
  %v321 = vunpack.c.h.b16 %v42
  %v322 = vunpack.c.l.b16 %v43
  %v323 = vunpack.c.l.b16 %v44
  %v324 = vunpack.c.h.b16 %v44
  %v325 = vunpack.c.l.b16 %v45
  %v326 = vunpack.c.l.b16 %v46
  %v327 = vunpack.c.h.b16 %v46
  %v328 = vunpack.c.l.b16 %v47
  %v329 = vunpack.c.l.b16 %v48
  %v330 = vunpack.c.h.b16 %v48
  %v331 = vunpack.c.l.b16 %v49
  %v332 = vunpack.c.l.b16 %v50
  %v333 = vunpack.c.h.b16 %v50
  %v334 = vunpack.c.l.b16 %v51
  %v335 = vunpack.c.l.b16 %v52
  %v336 = vunpack.c.h.b16 %v52
  %v337 = vunpack.c.l.b16 %v53
  %v338 = vunpack.c.l.b16 %v54
  %v339 = vunpack.c.h.b16 %v54
  %v340 = vunpack.c.l.b16 %v55
  %v341 = vunpack.c.l.b16 %v56
  %v342 = vunpack.c.h.b16 %v56
  %v343 = vunpack.c.l.b16 %v57
  %v344 = vunpack.c.l.b16 %v58
  %v345 = vunpack.c.h.b16 %v58
  %v346 = vunpack.c.l.b16 %v59
  %v347 = vunpack.c.l.b16 %v60
  %v348 = vunpack.c.h.b16 %v60
  %v349 = vunpack.c.l.b16 %v61
  %v350 = vunpack.c.l.b16 %v62
  %v351 = vunpack.c.h.b16 %v62
  %v352 = vunpack.c.l.b16 %v63
  %v353 = vunpack.c.l.b16 %v64
  %v354 = vunpack.c.h.b16 %v64
  %v355 = vunpack.c.l.b16 %v65
  %v356 = vunpack.c.l.b16 %v66
  %v357 = vunpack.c.h.b16 %v66
  %v358 = vunpack.c.l.b16 %v67
  %v359 = vunpack.c.l.b16 %v68
  %v360 = vunpack.c.h.b16 %v68
  %v361 = vunpack.c.l.b16 %v69
  %v362 = vunpack.c.l.b16 %v70
  %v363 = vunpack.c.h.b16 %v70
  %v364 = vunpack.c.l.b16 %v71
  %v365 = vunpack.c.l.b16 %v72
  %v366 = vunpack.c.h.b16 %v72
  %v367 = vunpack.c.l.b16 %v73
  %v368 = vunpack.c.l.b16 %v74
  %v369 = vunpack.c.h.b16 %v74
  %v370 = vunpack.c.l.b16 %v75
  %v371 = vunpack.c.l.b16 %v76
  %v372 = vunpack.c.h.b16 %v76
  %v373 = vunpack.c.l.b16 %v77
  %v374 = vunpack.c.l.b16 %v78
  %v375 = vunpack.c.h.b16 %v78
  %v376 = vunpack.c.l.b16 %v79
  %v377 = vunpack.c.l.b16 %v80
  %v378 = vunpack.c.h.b16 %v80
  %v379 = vunpack.c.l.b16 %v81
  %v380 = vunpack.c.l.b16 %v82
  %v381 = vunpack.c.h.b16 %v82
  %v382 = vunpack.c.l.b16 %v83
  %v383 = vunpack.c.l.b16 %v84
  %v384 = vunpack.c.h.b16 %v84
  %v385 = vunpack.c.l.b16 %v85
  %v386 = vunpack.c.l.b16 %v86
  %v387 = vunpack.c.h.b16 %v86
  %v388 = vunpack.c.l.b16 %v87
  %v389 = vunpack.c.l.b16 %v88
  %v390 = vunpack.c.h.b16 %v88
  %v391 = vunpack.c.l.b16 %v89
  %v392 = vunpack.c.l.b16 %v90
  %v393 = vunpack.c.h.b16 %v90
  %v394 = vunpack.c.l.b16 %v91
  %v395 = vunpack.c.l.b16 %v92
  %v396 = vunpack.c.h.b16 %v92
  %v397 = vunpack.c.l.b16 %v93
  %v398 = vunpack.c.l.b16 %v94
  %v399 = vunpack.c.h.b16 %v94
  %v400 = vunpack.c.l.b16 %v95
  %v401 = vunpack.c.l.b16 %v96
  %v402 = vunpack.c.h.b16 %v96
  %v403 = vunpack.c.l.b16 %v97
  %v404 = vunpack.c.l.b16 %v98
  %v405 = vunpack.c.h.b16 %v98
  %v406 = vunpack.c.l.b16 %v99
  %v407 = vunpack.c.l.b16 %v100
  %v408 = vunpack.c.h.b16 %v100
  %v409 = vunpack.c.l.b16 %v101
  %v410 = vunpack.c.l.b16 %v102
  %v411 = vunpack.c.h.b16 %v102
  %v412 = vunpack.c.l.b16 %v103
  %v413 = vunpack.c.l.b16 %v104
  %v414 = vunpack.c.h.b16 %v104
  %v415 = vunpack.c.l.b16 %v105
  %v416 = vunpack.c.l.b16 %v106
  %v417 = vunpack.c.h.b16 %v106
  %v418 = vunpack.c.l.b16 %v107
  %v419 = vunpack.c.l.b16 %v108
  %v420 = vunpack.c.h.b16 %v108
  %v421 = vunpack.c.l.b16 %v109
  %v422 = vunpack.c.l.b16 %v110
  %v423 = vunpack.c.h.b16 %v110
  %v424 = vunpack.c.l.b16 %v111
  %v425 = vunpack.c.l.b16 %v112
  %v426 = vunpack.c.h.b16 %v112
  %v427 = vunpack.c.l.b16 %v113
  %v428 = vunpack.c.l.b16 %v114
  %v429 = vunpack.c.h.b16 %v114
  %v430 = vunpack.c.l.b16 %v115
  %v431 = vunpack.c.l.b16 %v116
  %v432 = vunpack.c.h.b16 %v116
  %v433 = vunpack.c.l.b16 %v117
  %v434 = vunpack.c.l.b16 %v118
  %v435 = vunpack.c.h.b16 %v118
  %v436 = vunpack.c.l.b16 %v119
  %v437 = vunpack.c.l.b16 %v120
  %v438 = vunpack.c.h.b16 %v120
  %v439 = vunpack.c.l.b16 %v121
  %v440 = vunpack.c.l.b16 %v122
  %v441 = vunpack.c.h.b16 %v122
  %v442 = vunpack.c.l.b16 %v123
  %v443 = vunpack.c.l.b16 %v124
  %v444 = vunpack.c.h.b16 %v124
  %v445 = vunpack.c.l.b16 %v125
  %v446 = vunpack.c.l.b16 %v126
  %v447 = vunpack.c.h.b16 %v126
  %v448 = vunpack.c.l.b16 %v127
  %v449 = vunpack.c.l.b16 %v128
  %v450 = vunpack.c.h.b16 %v128
  %v451 = vunpack.c.l.b16 %v129
  %v452 = vunpack.c.l.b16 %v130
  %v453 = vunpack.c.h.b16 %v130
  %v454 = vunpack.c.l.b16 %v131
  %v455 = vunpack.c.l.b16 %v132
  %v456 = vunpack.c.h.b16 %v132
  %v457 = vunpack.c.l.b16 %v133
  %v458 = vunpack.c.l.b16 %v134
  %v459 = vunpack.c.h.b16 %v134
  %v460 = vunpack.c.l.b16 %v135
  %v461 = vunpack.c.l.b16 %v136
  %v462 = vunpack.c.h.b16 %v136
  %v463 = vunpack.c.l.b16 %v137
  %v464 = vunpack.c.l.b16 %v138
  %v465 = vunpack.c.h.b16 %v138
  %v466 = vunpack.c.l.b16 %v139
  %v467 = vunpack.c.l.b16 %v140
  %v468 = vunpack.c.h.b16 %v140
  %v469 = vunpack.c.l.b16 %v141
  %v470 = vunpack.c.l.b16 %v142
  %v471 = vunpack.c.h.b16 %v142
  %v472 = vunpack.c.l.b16 %v143
  %v473 = vunpack.c.l.b16 %v144
  %v474 = vunpack.c.h.b16 %v144
  %v475 = vunpack.c.l.b16 %v145
  %v476 = vunpack.c.l.b16 %v146
  %v477 = vunpack.c.h.b16 %v146
  %v478 = vunpack.c.l.b16 %v147
  %v479 = vunpack.c.l.b16 %v148
  %v480 = vunpack.c.h.b16 %v148
  %v481 = vunpack.c.l.b16 %v149
  %v482 = vunpack.c.l.b16 %v150
  %v483 = vunpack.c.h.b16 %v150
  %v484 = vunpack.c.l.b16 %v151
  %v485 = vunpack.c.l.b16 %v152
  %v486 = vunpack.c.h.b16 %v152
  %v487 = vunpack.c.l.b16 %v153
  %v488 = vpack.c.b16 %v299, %v296
  %v489 = vpack.c.b16 %v300, %v297
  %v490 = vpack.c.b16 %v301, %v298
  %v491 = vpack.c.b16 %v305, %v302
  %v492 = vpack.c.b16 %v306, %v303
  %v493 = vpack.c.b16 %v307, %v304
  %v494 = vpack.c.b16 %v311, %v308
  %v495 = vpack.c.b16 %v312, %v309
  %v496 = vpack.c.b16 %v313, %v310
  %v497 = vpack.c.b16 %v317, %v314
  %v498 = vpack.c.b16 %v318, %v315
  %v499 = vpack.c.b16 %v319, %v316
  %v500 = vpack.c.b16 %v323, %v320
  %v501 = vpack.c.b16 %v324, %v321
  %v502 = vpack.c.b16 %v325, %v322
  %v503 = vpack.c.b16 %v329, %v326
  %v504 = vpack.c.b16 %v330, %v327
  %v505 = vpack.c.b16 %v331, %v328
  %v506 = vpack.c.b16 %v335, %v332
  %v507 = vpack.c.b16 %v336, %v333
  %v508 = vpack.c.b16 %v337, %v334
  %v509 = vpack.c.b16 %v341, %v338
  %v510 = vpack.c.b16 %v342, %v339
  %v511 = vpack.c.b16 %v343, %v340
  %v512 = vpack.c.b16 %v347, %v344
  %v513 = vpack.c.b16 %v348, %v345
  %v514 = vpack.c.b16 %v349, %v346
  %v515 = vpack.c.b16 %v353, %v350
  %v516 = vpack.c.b16 %v354, %v351
  %v517 = vpack.c.b16 %v355, %v352
  %v518 = vpack.c.b16 %v359, %v356
  %v519 = vpack.c.b16 %v360, %v357
  %v520 = vpack.c.b16 %v361, %v358
  %v521 = vpack.c.b16 %v365, %v362
  %v522 = vpack.c.b16 %v366, %v363
  %v523 = vpack.c.b16 %v367, %v364
  %v524 = vpack.c.b16 %v371, %v368
  %v525 = vpack.c.b16 %v372, %v369
  %v526 = vpack.c.b16 %v373, %v370
  %v527 = vpack.c.b16 %v377, %v374
  %v528 = vpack.c.b16 %v378, %v375
  %v529 = vpack.c.b16 %v379, %v376
  %v530 = vpack.c.b16 %v383, %v380
  %v531 = vpack.c.b16 %v384, %v381
  %v532 = vpack.c.b16 %v385, %v382
  %v533 = vpack.c.b16 %v389, %v386
  %v534 = vpack.c.b16 %v390, %v387
  %v535 = vpack.c.b16 %v391, %v388
  %v536 = vpack.c.b16 %v395, %v392
  %v537 = vpack.c.b16 %v396, %v393
  %v538 = vpack.c.b16 %v397, %v394
  %v539 = vpack.c.b16 %v401, %v398
  %v540 = vpack.c.b16 %v402, %v399
  %v541 = vpack.c.b16 %v403, %v400
  %v542 = vpack.c.b16 %v407, %v404
  %v543 = vpack.c.b16 %v408, %v405
  %v544 = vpack.c.b16 %v409, %v406
  %v545 = vpack.c.b16 %v413, %v410
  %v546 = vpack.c.b16 %v414, %v411
  %v547 = vpack.c.b16 %v415, %v412
  %v548 = vpack.c.b16 %v419, %v416
  %v549 = vpack.c.b16 %v420, %v417
  %v550 = vpack.c.b16 %v421, %v418
  %v551 = vpack.c.b16 %v425, %v422
  %v552 = vpack.c.b16 %v426, %v423
  %v553 = vpack.c.b16 %v427, %v424
  %v554 = vpack.c.b16 %v431, %v428
  %v555 = vpack.c.b16 %v432, %v429
  %v556 = vpack.c.b16 %v433, %v430
  %v557 = vpack.c.b16 %v437, %v434
  %v558 = vpack.c.b16 %v438, %v435
  %v559 = vpack.c.b16 %v439, %v436
  %v560 = vpack.c.b16 %v443, %v440
  %v561 = vpack.c.b16 %v444, %v441
  %v562 = vpack.c.b16 %v445, %v442
  %v563 = vpack.c.b16 %v449, %v446
  %v564 = vpack.c.b16 %v450, %v447
  %v565 = vpack.c.b16 %v451, %v448
  %v566 = vpack.c.b16 %v455, %v452
  %v567 = vpack.c.b16 %v456, %v453
  %v568 = vpack.c.b16 %v457, %v454
  %v569 = vpack.c.b16 %v461, %v458
  %v570 = vpack.c.b16 %v462, %v459
  %v571 = vpack.c.b16 %v463, %v460
  %v572 = vpack.c.b16 %v467, %v464
  %v573 = vpack.c.b16 %v468, %v465
  %v574 = vpack.c.b16 %v469, %v466
  %v575 = vpack.c.b16 %v473, %v470
  %v576 = vpack.c.b16 %v474, %v471
  %v577 = vpack.c.b16 %v475, %v472
  %v578 = vpack.c.b16 %v479, %v476
  %v579 = vpack.c.b16 %v480, %v477
  %v580 = vpack.c.b16 %v481, %v478
  %v581 = vpack.c.b16 %v485, %v482
  %v582 = vpack.c.b16 %v486, %v483
  %v583 = vpack.c.b16 %v487, %v484
  %680 = vmatpush.bf16.msra.mxu0 %v509
  %681 = vmatpush.bf16.msra.mxu0 %v506
  %682 = vmatpush.bf16.msra.mxu0 %v503
  %683 = vmatpush.bf16.msra.mxu0 %v500
  %684 = vmatpush.bf16.msra.mxu0 %v497
  %685 = vmatpush.bf16.msra.mxu0 %v494
  %686 = vmatpush.bf16.msra.mxu0 %v491
  %687 = vmatpush.bf16.msra.mxu0 %v488
  %688 = vmatmul.bf16.gmra.mxu0 %v160
  %v689 = vpop.f32.mrf.mxu0
  %v690 = vadd.f32 0.0, %v689
  %v691 = vpop.f32.mrf.mxu0
  %692 = vdwg.mxu0
  %693 = vmatpush.bf16.msra.mxu0 %v533
  %694 = vmatpush.bf16.msra.mxu0 %v530
  %695 = vmatpush.bf16.msra.mxu0 %v527
  %696 = vmatpush.bf16.msra.mxu0 %v524
  %697 = vmatpush.bf16.msra.mxu0 %v521
  %698 = vmatpush.bf16.msra.mxu0 %v518
  %699 = vmatpush.bf16.msra.mxu0 %v515
  %700 = vmatpush.bf16.msra.mxu0 %v512
  %701 = vmatmul.bf16.gmra.mxu0 %v161
  %v702 = vpop.f32.mrf.mxu0
  %v703 = vadd.f32 %v690, %v702
  %v704 = vpop.f32.mrf.mxu0
  %705 = vdwg.mxu0
  %706 = vmatpush.bf16.msra.mxu0 %v557
  %707 = vmatpush.bf16.msra.mxu0 %v554
  %708 = vmatpush.bf16.msra.mxu0 %v551
  %709 = vmatpush.bf16.msra.mxu0 %v548
  %710 = vmatpush.bf16.msra.mxu0 %v545
  %711 = vmatpush.bf16.msra.mxu0 %v542
  %712 = vmatpush.bf16.msra.mxu0 %v539
  %713 = vmatpush.bf16.msra.mxu0 %v536
  %714 = vmatmul.bf16.gmra.mxu0 %v162
  %v715 = vpop.f32.mrf.mxu0
  %v716 = vadd.f32 %v703, %v715
  %v717 = vpop.f32.mrf.mxu0
  %718 = vdwg.mxu0
  %719 = vmatpush.bf16.msra.mxu0 %v581
  %720 = vmatpush.bf16.msra.mxu0 %v578
  %721 = vmatpush.bf16.msra.mxu0 %v575
  %722 = vmatpush.bf16.msra.mxu0 %v572
  %723 = vmatpush.bf16.msra.mxu0 %v569
  %724 = vmatpush.bf16.msra.mxu0 %v566
  %725 = vmatpush.bf16.msra.mxu0 %v563
  %726 = vmatpush.bf16.msra.mxu0 %v560
  %727 = vmatmul.bf16.gmra.mxu0 %v163
  %v728 = vpop.f32.mrf.mxu0
  %v729 = vadd.f32 %v716, %v728
  %v730 = vpop.f32.mrf.mxu0
  %731 = vdwg.mxu0
  %732 = vmatpush.bf16.msra.mxu0 %v510
  %733 = vmatpush.bf16.msra.mxu0 %v507
  %734 = vmatpush.bf16.msra.mxu0 %v504
  %735 = vmatpush.bf16.msra.mxu0 %v501
  %736 = vmatpush.bf16.msra.mxu0 %v498
  %737 = vmatpush.bf16.msra.mxu0 %v495
  %738 = vmatpush.bf16.msra.mxu0 %v492
  %739 = vmatpush.bf16.msra.mxu0 %v489
  %740 = vmatmul.bf16.gmra.mxu0 %v160
  %v741 = vpop.f32.mrf.mxu0
  %v742 = vadd.f32 0.0, %v741
  %v743 = vpop.f32.mrf.mxu0
  %744 = vdwg.mxu0
  %745 = vmatpush.bf16.msra.mxu0 %v534
  %746 = vmatpush.bf16.msra.mxu0 %v531
  %747 = vmatpush.bf16.msra.mxu0 %v528
  %748 = vmatpush.bf16.msra.mxu0 %v525
  %749 = vmatpush.bf16.msra.mxu0 %v522
  %750 = vmatpush.bf16.msra.mxu0 %v519
  %751 = vmatpush.bf16.msra.mxu0 %v516
  %752 = vmatpush.bf16.msra.mxu0 %v513
  %753 = vmatmul.bf16.gmra.mxu0 %v161
  %v754 = vpop.f32.mrf.mxu0
  %v755 = vadd.f32 %v742, %v754
  %v756 = vpop.f32.mrf.mxu0
  %757 = vdwg.mxu0
  %758 = vmatpush.bf16.msra.mxu0 %v558
  %759 = vmatpush.bf16.msra.mxu0 %v555
  %760 = vmatpush.bf16.msra.mxu0 %v552
  %761 = vmatpush.bf16.msra.mxu0 %v549
  %762 = vmatpush.bf16.msra.mxu0 %v546
  %763 = vmatpush.bf16.msra.mxu0 %v543
  %764 = vmatpush.bf16.msra.mxu0 %v540
  %765 = vmatpush.bf16.msra.mxu0 %v537
  %766 = vmatmul.bf16.gmra.mxu0 %v162
  %v767 = vpop.f32.mrf.mxu0
  %v768 = vadd.f32 %v755, %v767
  %v769 = vpop.f32.mrf.mxu0
  %770 = vdwg.mxu0
  %771 = vmatpush.bf16.msra.mxu0 %v582
  %772 = vmatpush.bf16.msra.mxu0 %v579
  %773 = vmatpush.bf16.msra.mxu0 %v576
  %774 = vmatpush.bf16.msra.mxu0 %v573
  %775 = vmatpush.bf16.msra.mxu0 %v570
  %776 = vmatpush.bf16.msra.mxu0 %v567
  %777 = vmatpush.bf16.msra.mxu0 %v564
  %778 = vmatpush.bf16.msra.mxu0 %v561
  %779 = vmatmul.bf16.gmra.mxu0 %v163
  %v780 = vpop.f32.mrf.mxu0
  %v781 = vadd.f32 %v768, %v780
  %v782 = vpop.f32.mrf.mxu0
  %783 = vdwg.mxu0
  %784 = vmatpush.bf16.msra.mxu0 %v511
  %785 = vmatpush.bf16.msra.mxu0 %v508
  %786 = vmatpush.bf16.msra.mxu0 %v505
  %787 = vmatpush.bf16.msra.mxu0 %v502
  %788 = vmatpush.bf16.msra.mxu0 %v499
  %789 = vmatpush.bf16.msra.mxu0 %v496
  %790 = vmatpush.bf16.msra.mxu0 %v493
  %791 = vmatpush.bf16.msra.mxu0 %v490
  %792 = vmatmul.bf16.gmra.mxu0 %v160
  %v793 = vpop.f32.mrf.mxu0
  %v794 = vadd.f32 0.0, %v793
  %v795 = vpop.f32.mrf.mxu0
  %796 = vdwg.mxu0
  %797 = vmatpush.bf16.msra.mxu0 %v535
  %798 = vmatpush.bf16.msra.mxu0 %v532
  %799 = vmatpush.bf16.msra.mxu0 %v529
  %800 = vmatpush.bf16.msra.mxu0 %v526
  %801 = vmatpush.bf16.msra.mxu0 %v523
  %802 = vmatpush.bf16.msra.mxu0 %v520
  %803 = vmatpush.bf16.msra.mxu0 %v517
  %804 = vmatpush.bf16.msra.mxu0 %v514
  %805 = vmatmul.bf16.gmra.mxu0 %v161
  %v806 = vpop.f32.mrf.mxu0
  %v807 = vadd.f32 %v794, %v806
  %v808 = vpop.f32.mrf.mxu0
  %809 = vdwg.mxu0
  %810 = vmatpush.bf16.msra.mxu0 %v559
  %811 = vmatpush.bf16.msra.mxu0 %v556
  %812 = vmatpush.bf16.msra.mxu0 %v553
  %813 = vmatpush.bf16.msra.mxu0 %v550
  %814 = vmatpush.bf16.msra.mxu0 %v547
  %815 = vmatpush.bf16.msra.mxu0 %v544
  %816 = vmatpush.bf16.msra.mxu0 %v541
  %817 = vmatpush.bf16.msra.mxu0 %v538
  %818 = vmatmul.bf16.gmra.mxu0 %v162
  %v819 = vpop.f32.mrf.mxu0
  %v820 = vadd.f32 %v807, %v819
  %v821 = vpop.f32.mrf.mxu0
  %822 = vdwg.mxu0
  %823 = vmatpush.bf16.msra.mxu0 %v583
  %824 = vmatpush.bf16.msra.mxu0 %v580
  %825 = vmatpush.bf16.msra.mxu0 %v577
  %826 = vmatpush.bf16.msra.mxu0 %v574
  %827 = vmatpush.bf16.msra.mxu0 %v571
  %828 = vmatpush.bf16.msra.mxu0 %v568
  %829 = vmatpush.bf16.msra.mxu0 %v565
  %830 = vmatpush.bf16.msra.mxu0 %v562
  %831 = vmatmul.bf16.gmra.mxu0 %v163
  %v832 = vpop.f32.mrf.mxu0
  %v833 = vadd.f32 %v820, %v832
  %v834 = vpop.f32.mrf.mxu0
  %835 = vdwg.mxu0
  %v836 = vadd.f32 %v21, %v729
  %v837 = vadd.f32 %v22, %v781
  %v838 = vadd.f32 %v23, %v833
  %839 = vst [vmem:[#allocation2] sm:$0xff] %v836
  %840 = vst [vmem:[#allocation2 + $0x8] sm:$0xff] %v837
  %841 = vst [vmem:[#allocation2 + $0x10] sm:$0xff] %v838
  // Predicated region
  $region18: #{_forward_nchw.11} parent=0 // pred_check
    %p842 = pneg %p14
  $region19: #{_forward_nchw.11} parent=0 // pred_check_branch
    %844 = sbr.rel (%p842) target = $region21
  $region20: #{_forward_nchw.11} parent=0 // pred_region
    %v845 = vld [vmem:[#allocation2] sm:$0xff]
    %v846 = vld [vmem:[#allocation2 + $0x8] sm:$0xff]
    %v847 = vld [vmem:[#allocation2 + $0x10] sm:$0xff]
    %v848 = vld [vmem:[%s2] sm:$0x7]
    %v850 = vperm.slane %v848, 0
    %v851 = vperm.slane %v848, 1
    %v852 = vperm.slane %v848, 2
    %v856 = vadd.f32 %v845, %v850
    %v857 = vadd.f32 %v846, %v851
    %v858 = vadd.f32 %v847, %v852
    %859 = vst [vmem:[%s3] sm:$0xff] %v856
    %860 = vst [vmem:[%s3 + $0x8] sm:$0xff] %v857
    %861 = vst [vmem:[%s3 + $0x10] sm:$0xff] %v858
  $region21: #{_forward_nchw.11} parent=0 // pred_fallthru
    _
  // Predicated region
  $region22: #{_forward_nchw.11} parent=0 // pred_check
    _
  $region23: #{_forward_nchw.11} parent=0 // pred_check_branch
    %863 = sbr.rel (0) target = $region25
  $region24: #{_forward_nchw.11} parent=0 // pred_region
    _
  $region25: #{_forward_nchw.11} parent=0 // pred_fallthru
    _
  // Predicated region
  $region26: #{_forward_nchw.11} parent=0 // pred_check
    _
  $region27: #{_forward_nchw.11} parent=0 // pred_check_branch
    %865 = sbr.rel (0) target = $region29
  $region28: #{_forward_nchw.11} parent=0 // pred_region
    _
  $region29: #{_forward_nchw.11} parent=0 // pred_fallthru
    _

// kernel: _forward_nchw.12
$region0: #{_forward_nchw.12}
  #allocation0 [shape = 'u32[]', space=smem, size = 0x4, offset = 0x4, fixed_abs, tag = 'smem constant byte address 0x4 - core index']
  #allocation1 [shape = 'u32[72,128]{1,0:T(1,128)}', space=vmem, size = 0x9000, scoped, tag = 'internal scratch']
  %s0 = inlined_call_operand.vmem [shape: bf16[2,9,4,128], index: 0, kind: input, shape index: {}]
  %s1 = inlined_call_operand.vmem [shape: f32[2,9,128], index: 1, kind: input, shape index: {}]
  %s2 = inlined_call_operand.vmem [shape: bf16[2,4,128], index: 2, kind: output, shape index: {}]
  %s3 = sld [smem:[#allocation0]]
  $region41: #{_forward_nchw.12} parent=0
    _
  %s5 = ssub.s32 1, %s3
  %s6 = scalar_select 0, %s5, %s3
  loop: start=0, step=1, limit=4
  $region2: #{_forward_nchw.12} parent=0 // loop_pre_header
    _
  $region3: #{_forward_nchw.12} parent=0 // loop_header
    %s8 = sphi 0, %s12
    %p9 = scmp.ge.s32.totalorder %s8, 4
    %s15 = sphi 0, %s27
    %s16 = sphi 0, %s23
    %s17 = sphi 0, %s15
    %s18 = sphi 0, %s16
    %s19 = sphi 0, %s17
    %s20 = sphi 0, %s18
    %s32 = sphi 0, %s34
    %s35 = sphi 0, %s32
    %s36 = sphi 0, %s35
    %s52 = sphi 0, %s36
    %s58 = sphi 0, %s60
    %s61 = sphi 0, %s58
    %s62 = sphi 0, %s61
    %s78 = sphi 0, %s62
    %s86 = sphi 0, %s88
    %s89 = sphi 0, %s86
    %s90 = sphi 0, %s89
    %s106 = sphi 0, %s90
  $region4: #{_forward_nchw.12} parent=0 // loop_header_branch
    %11 = sbr.rel (%p9) target = $region8
  $region5: #{_forward_nchw.12} parent=0 // loop_body
    %s13 = ssub.s32 %s8, 1
    %s14 = ssub.s32 %s8, 2
    %s21 = sadd.s32 1, %s16
    %p22 = scmp.ge.s32.totalorder %s21, 1
    %s23 = scalar_select %p22, 0, %s21
    %s24 = sadd.s32 1, %s15
    %s25 = scalar_select %p22, %s24, %s15
    %p26 = scmp.ge.s32.totalorder %s25, 2
    %s27 = scalar_select %p26, 0, %s25
    %s28 = ssub.s32 %s15, %s27
    %s29 = ssub.s32 %s16, %s23
    %s30 = sor.u32 %s28, %s29
    %p31 = scmp.eq.s32.totalorder %s30, 0
    %s33 = sadd.s32 %s32, 1
    %s34 = scalar_select %p31, %s32, %s33
    %p37 = pneg %p31
    %p38 = scmp.eq.s32.totalorder %s8, 1
    %p39 = por %p37, %p38
    %p40 = scmp.ne.s32.totalorder %s32, %s35
    %p41 = scmp.eq.s32.totalorder %s8, 0
    %p42 = por %p40, %p41
    %p43 = scmp.ne.s32.totalorder %s32, %s35
    %p44 = scmp.eq.s32.totalorder %s13, 1
    %p45 = por %p43, %p44
    %p46 = scmp.ne.s32.totalorder %s35, %s36
    %p47 = scmp.eq.s32.totalorder %s13, 0
    %p48 = por %p46, %p47
    %p49 = scmp.ne.s32.totalorder %s35, %s36
    %p50 = scmp.eq.s32.totalorder %s14, 1
    %p51 = por %p49, %p50
    %p53 = scmp.ne.s32.totalorder %s36, %s52
    %p54 = scmp.eq.s32.totalorder %s14, 0
    %p55 = por %p53, %p54
    %s56 = ssub.s32 %s15, %s27
    %p57 = scmp.eq.s32.totalorder %s56, 0
    %s59 = sadd.s32 %s58, 1
    %s60 = scalar_select %p57, %s58, %s59
    %p63 = pneg %p57
    %p64 = scmp.eq.s32.totalorder %s8, 1
    %p65 = por %p63, %p64
    %p66 = scmp.ne.s32.totalorder %s58, %s61
    %p67 = scmp.eq.s32.totalorder %s8, 0
    %p68 = por %p66, %p67
    %p69 = scmp.ne.s32.totalorder %s58, %s61
    %p70 = scmp.eq.s32.totalorder %s13, 1
    %p71 = por %p69, %p70
    %p72 = scmp.ne.s32.totalorder %s61, %s62
    %p73 = scmp.eq.s32.totalorder %s13, 0
    %p74 = por %p72, %p73
    %p75 = scmp.ne.s32.totalorder %s61, %s62
    %p76 = scmp.eq.s32.totalorder %s14, 1
    %p77 = por %p75, %p76
    %p79 = scmp.ne.s32.totalorder %s62, %s78
    %p80 = scmp.eq.s32.totalorder %s14, 0
    %p81 = por %p79, %p80
    %s82 = ssub.s32 %s15, %s27
    %s83 = ssub.s32 %s16, %s23
    %s84 = sor.u32 %s82, %s83
    %p85 = scmp.eq.s32.totalorder %s84, 0
    %s87 = sadd.s32 %s86, 1
    %s88 = scalar_select %p85, %s86, %s87
    %p91 = pneg %p85
    %p92 = scmp.eq.s32.totalorder %s8, 1
    %p93 = por %p91, %p92
    %p94 = scmp.ne.s32.totalorder %s86, %s89
    %p95 = scmp.eq.s32.totalorder %s8, 0
    %p96 = por %p94, %p95
    %p97 = scmp.ne.s32.totalorder %s86, %s89
    %p98 = scmp.eq.s32.totalorder %s13, 1
    %p99 = por %p97, %p98
    %p100 = scmp.ne.s32.totalorder %s89, %s90
    %p101 = scmp.eq.s32.totalorder %s13, 0
    %p102 = por %p100, %p101
    %p103 = scmp.ne.s32.totalorder %s89, %s90
    %p104 = scmp.eq.s32.totalorder %s14, 1
    %p105 = por %p103, %p104
    %p107 = scmp.ne.s32.totalorder %s90, %s106
    %p108 = scmp.eq.s32.totalorder %s14, 0
    %p109 = por %p107, %p108
    %p110 = scmp.le.s32.totalorder 1, %s8
    %p111 = scmp.lt.s32.totalorder %s8, 3
    %p112 = pnand %p110, %p111
    %p113 = pneg %p112
    // Predicated region
    $region9: #{_forward_nchw.12} parent=5 // pred_check
      _
    $region10: #{_forward_nchw.12} parent=5 // pred_check_branch
      %115 = sbr.rel (%p112) target = $region12
    $region11: #{_forward_nchw.12} parent=5 // pred_region
      %s116 = ssub.s32 %s8, 1
    $region12: #{_forward_nchw.12} parent=5 // pred_fallthru
      _
    %p117 = scmp.lt.s32.totalorder %s8, 2
    // Predicated region
    $region13: #{_forward_nchw.12} parent=5 // pred_check
      %p118 = pneg %p117
    $region14: #{_forward_nchw.12} parent=5 // pred_check_branch
      %120 = sbr.rel (%p118) target = $region16
    $region15: #{_forward_nchw.12} parent=5 // pred_region
      // Predicated region
      $region17: #{_forward_nchw.12} parent=15 // pred_check
        %p121 = pneg %p42
      $region18: #{_forward_nchw.12} parent=15 // pred_check_branch
        %123 = sbr.rel (%p121) target = $region20
      $region19: #{_forward_nchw.12} parent=15 // pred_region
        %p124 = scmp.lt.s32.totalorder %s15, 1
        %s125 = scalar_select %p124, %s15, 1
        %p126 = scmp.lt.s32.totalorder %s16, 0
        %s127 = scalar_select %p126, %s16, 0
        %s128 = smul.addr %s125, 9
        %s129 = sadd.s32 %s127, %s128
        %s130 = smul.addr %s129, 2
        %s131 = scalar_lea.vmem %s0, %s130
      $region20: #{_forward_nchw.12} parent=15 // pred_fallthru
        _
      // Predicated region
      $region21: #{_forward_nchw.12} parent=15 // pred_check
        %p132 = pneg %p68
      $region22: #{_forward_nchw.12} parent=15 // pred_check_branch
        %134 = sbr.rel (%p132) target = $region24
      $region23: #{_forward_nchw.12} parent=15 // pred_region
        %p135 = scmp.lt.s32.totalorder %s15, 1
        %s136 = scalar_select %p135, %s15, 1
        %s137 = smul.addr %s136, 2
        %s138 = smul.addr %s137, 8
        %s139 = scalar_lea.vmem %s1, %s138
      $region24: #{_forward_nchw.12} parent=15 // pred_fallthru
        _
    $region16: #{_forward_nchw.12} parent=5 // pred_fallthru
      _
    %p140 = scmp.le.s32.totalorder 1, %s8
    %p141 = scmp.lt.s32.totalorder %s8, 3
    %p142 = pnand %p140, %p141
    %p143 = pneg %p142
    // Predicated region
    $region25: #{_forward_nchw.12} parent=5 // pred_check
      _
    $region26: #{_forward_nchw.12} parent=5 // pred_check_branch
      %145 = sbr.rel (%p142) target = $region28
    $region27: #{_forward_nchw.12} parent=5 // pred_region
      %s146 = ssub.s32 %s8, 1
      %p147 = scmp.lt.s32.totalorder %s17, 1
      %s148 = scalar_select %p147, %s17, 1
      %p149 = scmp.lt.s32.totalorder %s18, 0
      %s150 = scalar_select %p149, %s18, 0
      %s151 = smul.addr %s148, 9
      %s152 = sadd.s32 %s150, %s151
      %s153 = smul.addr %s152, 2
      %s154 = scalar_lea.vmem %s0, %s153
      %p155 = pneg %p48
      %p156 = pneg %p45
      %p157 = scmp.lt.s32.totalorder %s17, 1
      %s158 = scalar_select %p157, %s17, 1
      %s159 = smul.addr %s158, 2
      %s160 = smul.addr %s159, 8
      %s161 = scalar_lea.vmem %s1, %s160
      %p162 = pneg %p74
      %p163 = pneg %p71
      %p164 = pneg %p102
      %p165 = pneg %p99
      %p166 = scmp.lt.s32.totalorder %s17, 1
      %s167 = scalar_select %p166, %s17, 1
      %p168 = scmp.lt.s32.totalorder %s18, 0
      %s169 = scalar_select %p168, %s18, 0
      %s170 = sadd.s32 %s169, %s167
      %s171 = smul.addr %s170, 2
      %s172 = scalar_lea.vmem %s2, %s171
      %p173 = scmp.lt.s32.totalorder %s17, 1
      %s174 = scalar_select %p173, %s17, 1
      %p175 = scmp.lt.s32.totalorder %s18, 0
      %s176 = scalar_select %p175, %s18, 0
      %s177 = smul.addr %s174, 9
      %s178 = sadd.s32 %s176, %s177
      %s179 = smul.addr %s178, 2
      %s180 = scalar_lea.vmem %s0, %s179
      %p181 = scmp.lt.s32.totalorder %s17, 1
      %s182 = scalar_select %p181, %s17, 1
      %s183 = smul.addr %s182, 2
      %s184 = smul.addr %s183, 8
      %s185 = scalar_lea.vmem %s1, %s184
      %p186 = scmp.lt.s32.totalorder %s17, 1
      %s187 = scalar_select %p186, %s17, 1
      %p188 = scmp.lt.s32.totalorder %s18, 0
      %s189 = scalar_select %p188, %s18, 0
      %s190 = sadd.s32 %s189, %s187
      %s191 = smul.addr %s190, 2
      %s192 = scalar_lea.vmem %s2, %s191
      %v193 = vld [vmem:[%s180] sm:$0x3]
      %v194 = vunpack.c.l.bf16 %v193
      %v195 = vld [vmem:[%s185] sm:$0x1]
      %v196 = vperm.slane %v195, 0
      %v197 = vmul.f32 %v194, %v196
      %s198 = scalar_lea.vmem %s180, 2
      %v199 = vld [vmem:[%s198] sm:$0x3]
      %v200 = vunpack.c.l.bf16 %v199
      %v201 = vld [vmem:[%s185 + $0x1] sm:$0x1]
      %v202 = vperm.slane %v201, 0
      %v203 = vmul.f32 %v200, %v202
      %v204 = vadd.f32 %v197, %v203
      %s205 = scalar_lea.vmem %s180, 4
      %v206 = vld [vmem:[%s205] sm:$0x3]
      %v207 = vunpack.c.l.bf16 %v206
      %v208 = vld [vmem:[%s185 + $0x2] sm:$0x1]
      %v209 = vperm.slane %v208, 0
      %v210 = vmul.f32 %v207, %v209
      %v211 = vadd.f32 %v204, %v210
      %s212 = scalar_lea.vmem %s180, 6
      %v213 = vld [vmem:[%s212] sm:$0x3]
      %v214 = vunpack.c.l.bf16 %v213
      %v215 = vld [vmem:[%s185 + $0x3] sm:$0x1]
      %v216 = vperm.slane %v215, 0
      %v217 = vmul.f32 %v214, %v216
      %v218 = vadd.f32 %v211, %v217
      %s219 = scalar_lea.vmem %s180, 8
      %v220 = vld [vmem:[%s219] sm:$0x3]
      %v221 = vunpack.c.l.bf16 %v220
      %v222 = vld [vmem:[%s185 + $0x4] sm:$0x1]
      %v223 = vperm.slane %v222, 0
      %v224 = vmul.f32 %v221, %v223
      %v225 = vadd.f32 %v218, %v224
      %s226 = scalar_lea.vmem %s180, 10
      %v227 = vld [vmem:[%s226] sm:$0x3]
      %v228 = vunpack.c.l.bf16 %v227
      %v229 = vld [vmem:[%s185 + $0x5] sm:$0x1]
      %v230 = vperm.slane %v229, 0
      %v231 = vmul.f32 %v228, %v230
      %v232 = vadd.f32 %v225, %v231
      %s233 = scalar_lea.vmem %s180, 12
      %v234 = vld [vmem:[%s233] sm:$0x3]
      %v235 = vunpack.c.l.bf16 %v234
      %v236 = vld [vmem:[%s185 + $0x6] sm:$0x1]
      %v237 = vperm.slane %v236, 0
      %v238 = vmul.f32 %v235, %v237
      %v239 = vadd.f32 %v232, %v238
      %s240 = scalar_lea.vmem %s180, 14
      %v241 = vld [vmem:[%s240] sm:$0x3]
      %v242 = vunpack.c.l.bf16 %v241
      %v243 = vld [vmem:[%s185 + $0x7] sm:$0x1]
      %v244 = vperm.slane %v243, 0
      %v245 = vmul.f32 %v242, %v244
      %v246 = vadd.f32 %v239, %v245
      %s247 = scalar_lea.vmem %s180, 16
      %v248 = vld [vmem:[%s247] sm:$0x3]
      %v249 = vunpack.c.l.bf16 %v248
      %v250 = vld [vmem:[%s185 + $0x8] sm:$0x1]
      %v251 = vperm.slane %v250, 0
      %v252 = vmul.f32 %v249, %v251
      %v253 = vadd.f32 %v246, %v252
      %v254 = vmax.f32 %v253, 0.0
      %v255 = vpack.c.bf16 %v254, %v254
      %256 = vst [vmem:[%s192] sm:$0x3] %v255
      %p257 = scmp.lt.s32.totalorder %s17, 1
      %s258 = scalar_select %p257, %s17, 1
      %p259 = scmp.lt.s32.totalorder %s18, 0
      %s260 = scalar_select %p259, %s18, 0
      %s261 = sadd.s32 %s260, %s258
      %s262 = smul.addr %s261, 2
      %s263 = scalar_lea.vmem %s2, %s262
      // Predicated region
      $region29: #{_forward_nchw.12} parent=27 // pred_check
        %p264 = pneg %p99
      $region30: #{_forward_nchw.12} parent=27 // pred_check_branch
        %266 = sbr.rel (%p264) target = $region32
      $region31: #{_forward_nchw.12} parent=27 // pred_region
        _
      $region32: #{_forward_nchw.12} parent=27 // pred_fallthru
        _
    $region28: #{_forward_nchw.12} parent=5 // pred_fallthru
      _
    %p267 = scmp.le.s32.totalorder 2, %s8
    // Predicated region
    $region33: #{_forward_nchw.12} parent=5 // pred_check
      %p268 = pneg %p267
    $region34: #{_forward_nchw.12} parent=5 // pred_check_branch
      %270 = sbr.rel (%p268) target = $region36
    $region35: #{_forward_nchw.12} parent=5 // pred_region
      %s271 = ssub.s32 %s8, 2
      // Predicated region
      $region37: #{_forward_nchw.12} parent=35 // pred_check
        %p272 = pneg %p105
      $region38: #{_forward_nchw.12} parent=35 // pred_check_branch
        %274 = sbr.rel (%p272) target = $region40
      $region39: #{_forward_nchw.12} parent=35 // pred_region
        %p275 = scmp.lt.s32.totalorder %s19, 1
        %s276 = scalar_select %p275, %s19, 1
        %p277 = scmp.lt.s32.totalorder %s20, 0
        %s278 = scalar_select %p277, %s20, 0
        %s279 = sadd.s32 %s278, %s276
        %s280 = smul.addr %s279, 2
        %s281 = scalar_lea.vmem %s2, %s280
      $region40: #{_forward_nchw.12} parent=35 // pred_fallthru
        _
    $region36: #{_forward_nchw.12} parent=5 // pred_fallthru
      _
  $region6: #{_forward_nchw.12} parent=0 // loop_footer
    %s12 = sadd.s32 1, %s8
  $region7: #{_forward_nchw.12} parent=0 // loop_footer_branch
    %7 = sbr.rel target = $region3
  $region8: #{_forward_nchw.12} parent=0 // loop_exit
    _

// kernel: _forward_nchw.13
$region0: #{_forward_nchw.13}
  #allocation0 [shape = 'u32[]', space=smem, size = 0x4, offset = 0x4, fixed_abs, tag = 'smem constant byte address 0x4 - core index']
  #allocation1 [shape = 'u32[72,128]{1,0:T(1,128)}', space=vmem, size = 0x9000, scoped, tag = 'internal scratch']
  #allocation2 [shape = 'f32[32,128]{1,0:T(8,128)}', space=vmem, size = 0x4000, scoped, tag = 'scratch operand']
  %s0 = inlined_call_operand.vmem [shape: bf16[32,384], index: 0, kind: input, shape index: {}]
  %s1 = inlined_call_operand.vmem [shape: bf16[384,128], index: 1, kind: input, shape index: {}]
  %s2 = inlined_call_operand.vmem [shape: f32[1,128], index: 2, kind: input, shape index: {}]
  %s3 = inlined_call_operand.vmem [shape: bf16[32,128], index: 3, kind: output, shape index: {}]
  %s4 = sld [smem:[#allocation0]]
  $region30: #{_forward_nchw.13} parent=0
    _
  %s6 = ssub.s32 1, %s4
  %s7 = scalar_select 0, %s6, %s4
  // Predicated region
  $region2: #{_forward_nchw.13} parent=0 // pred_check
    _
  $region3: #{_forward_nchw.13} parent=0 // pred_check_branch
    %9 = sbr.rel (0) target = $region5
  $region4: #{_forward_nchw.13} parent=0 // pred_region
    _
  $region5: #{_forward_nchw.13} parent=0 // pred_fallthru
    _
  // Predicated region
  $region6: #{_forward_nchw.13} parent=0 // pred_check
    _
  $region7: #{_forward_nchw.13} parent=0 // pred_check_branch
    %11 = sbr.rel (0) target = $region9
  $region8: #{_forward_nchw.13} parent=0 // pred_region
    _
  $region9: #{_forward_nchw.13} parent=0 // pred_fallthru
    _
  // Predicated region
  $region10: #{_forward_nchw.13} parent=0 // pred_check
    _
  $region11: #{_forward_nchw.13} parent=0 // pred_check_branch
    %13 = sbr.rel (0) target = $region13
  $region12: #{_forward_nchw.13} parent=0 // pred_region
    _
  $region13: #{_forward_nchw.13} parent=0 // pred_fallthru
    _
  %p14 = scmp.eq.s32.totalorder 0, 0
  // Predicated region
  $region14: #{_forward_nchw.13} parent=0 // pred_check
    %p15 = pneg %p14
  $region15: #{_forward_nchw.13} parent=0 // pred_check_branch
    %17 = sbr.rel (%p15) target = $region17
  $region16: #{_forward_nchw.13} parent=0 // pred_region
    %18 = vst [vmem:[#allocation2] sm:$0xff] 0.0
    %19 = vst [vmem:[#allocation2 + $0x8] sm:$0xff] 0.0
    %20 = vst [vmem:[#allocation2 + $0x10] sm:$0xff] 0.0
    %21 = vst [vmem:[#allocation2 + $0x18] sm:$0xff] 0.0
  $region17: #{_forward_nchw.13} parent=0 // pred_fallthru
    _
  %v22 = vld [vmem:[#allocation2] sm:$0xff]
  %v23 = vld [vmem:[#allocation2 + $0x8] sm:$0xff]
  %v24 = vld [vmem:[#allocation2 + $0x10] sm:$0xff]
  %v25 = vld [vmem:[#allocation2 + $0x18] sm:$0xff]
  %v26 = vld [vmem:[%s0] sm:$0xff]
  %v27 = vld [vmem:[%s0 + $0x8] sm:$0xf]
  %v28 = vld [vmem:[%s0 + $0xc] sm:$0xff]
  %v29 = vld [vmem:[%s0 + $0x14] sm:$0xf]
  %v30 = vld [vmem:[%s0 + $0x18] sm:$0xff]
  %v31 = vld [vmem:[%s0 + $0x20] sm:$0xf]
  %v32 = vld [vmem:[%s0 + $0x24] sm:$0xff]
  %v33 = vld [vmem:[%s0 + $0x2c] sm:$0xf]
  %v34 = vld [vmem:[%s1] sm:$0xf]
  %v35 = vld [vmem:[%s1 + $0x4] sm:$0xf]
  %v36 = vld [vmem:[%s1 + $0x8] sm:$0xf]
  %v37 = vld [vmem:[%s1 + $0xc] sm:$0xf]
  %v38 = vld [vmem:[%s1 + $0x10] sm:$0xf]
  %v39 = vld [vmem:[%s1 + $0x14] sm:$0xf]
  %v40 = vld [vmem:[%s1 + $0x18] sm:$0xf]
  %v41 = vld [vmem:[%s1 + $0x1c] sm:$0xf]
  %v42 = vld [vmem:[%s1 + $0x20] sm:$0xf]
  %v43 = vld [vmem:[%s1 + $0x24] sm:$0xf]
  %v44 = vld [vmem:[%s1 + $0x28] sm:$0xf]
  %v45 = vld [vmem:[%s1 + $0x2c] sm:$0xf]
  %v46 = vld [vmem:[%s1 + $0x30] sm:$0xf]
  %v47 = vld [vmem:[%s1 + $0x34] sm:$0xf]
  %v48 = vld [vmem:[%s1 + $0x38] sm:$0xf]
  %v49 = vld [vmem:[%s1 + $0x3c] sm:$0xf]
  %v50 = vld [vmem:[%s1 + $0x40] sm:$0xf]
  %v51 = vld [vmem:[%s1 + $0x44] sm:$0xf]
  %v52 = vld [vmem:[%s1 + $0x48] sm:$0xf]
  %v53 = vld [vmem:[%s1 + $0x4c] sm:$0xf]
  %v54 = vld [vmem:[%s1 + $0x50] sm:$0xf]
  %v55 = vld [vmem:[%s1 + $0x54] sm:$0xf]
  %v56 = vld [vmem:[%s1 + $0x58] sm:$0xf]
  %v57 = vld [vmem:[%s1 + $0x5c] sm:$0xf]
  %v58 = vld [vmem:[%s1 + $0x60] sm:$0xf]
  %v59 = vld [vmem:[%s1 + $0x64] sm:$0xf]
  %v60 = vld [vmem:[%s1 + $0x68] sm:$0xf]
  %v61 = vld [vmem:[%s1 + $0x6c] sm:$0xf]
  %v62 = vld [vmem:[%s1 + $0x70] sm:$0xf]
  %v63 = vld [vmem:[%s1 + $0x74] sm:$0xf]
  %v64 = vld [vmem:[%s1 + $0x78] sm:$0xf]
  %v65 = vld [vmem:[%s1 + $0x7c] sm:$0xf]
  %v66 = vld [vmem:[%s1 + $0x80] sm:$0xf]
  %v67 = vld [vmem:[%s1 + $0x84] sm:$0xf]
  %v68 = vld [vmem:[%s1 + $0x88] sm:$0xf]
  %v69 = vld [vmem:[%s1 + $0x8c] sm:$0xf]
  %v70 = vld [vmem:[%s1 + $0x90] sm:$0xf]
  %v71 = vld [vmem:[%s1 + $0x94] sm:$0xf]
  %v72 = vld [vmem:[%s1 + $0x98] sm:$0xf]
  %v73 = vld [vmem:[%s1 + $0x9c] sm:$0xf]
  %v74 = vld [vmem:[%s1 + $0xa0] sm:$0xf]
  %v75 = vld [vmem:[%s1 + $0xa4] sm:$0xf]
  %v76 = vld [vmem:[%s1 + $0xa8] sm:$0xf]
  %v77 = vld [vmem:[%s1 + $0xac] sm:$0xf]
  %v78 = vld [vmem:[%s1 + $0xb0] sm:$0xf]
  %v79 = vld [vmem:[%s1 + $0xb4] sm:$0xf]
  %v80 = vld [vmem:[%s1 + $0xb8] sm:$0xf]
  %v81 = vld [vmem:[%s1 + $0xbc] sm:$0xf]
  %v90 = vunpack.c.l.b16 %v26
  %v91 = vunpack.c.h.b16 %v26
  %v92 = vunpack.c.l.b16 %v27
  %v93 = vunpack.c.l.b16 %v28
  %v94 = vunpack.c.h.b16 %v28
  %v95 = vunpack.c.l.b16 %v29
  %v96 = vunpack.c.l.b16 %v30
  %v97 = vunpack.c.h.b16 %v30
  %v98 = vunpack.c.l.b16 %v31
  %v99 = vunpack.c.l.b16 %v32
  %v100 = vunpack.c.h.b16 %v32
  %v101 = vunpack.c.l.b16 %v33
  %v102 = vpack.c.b16 %v93, %v90
  %v103 = vpack.c.b16 %v94, %v91
  %v104 = vpack.c.b16 %v95, %v92
  %v105 = vpack.c.b16 %v99, %v96
  %v106 = vpack.c.b16 %v100, %v97
  %v107 = vpack.c.b16 %v101, %v98
  %v162 = vunpack.c.l.b16 %v34
  %v163 = vunpack.c.l.b16 %v35
  %v164 = vunpack.c.l.b16 %v36
  %v165 = vunpack.c.l.b16 %v37
  %v166 = vunpack.c.l.b16 %v38
  %v167 = vunpack.c.l.b16 %v39
  %v168 = vunpack.c.l.b16 %v40
  %v169 = vunpack.c.l.b16 %v41
  %v170 = vunpack.c.l.b16 %v42
  %v171 = vunpack.c.l.b16 %v43
  %v172 = vunpack.c.l.b16 %v44
  %v173 = vunpack.c.l.b16 %v45
  %v174 = vunpack.c.l.b16 %v46
  %v175 = vunpack.c.l.b16 %v47
  %v176 = vunpack.c.l.b16 %v48
  %v177 = vunpack.c.l.b16 %v49
  %v178 = vunpack.c.l.b16 %v50
  %v179 = vunpack.c.l.b16 %v51
  %v180 = vunpack.c.l.b16 %v52
  %v181 = vunpack.c.l.b16 %v53
  %v182 = vunpack.c.l.b16 %v54
  %v183 = vunpack.c.l.b16 %v55
  %v184 = vunpack.c.l.b16 %v56
  %v185 = vunpack.c.l.b16 %v57
  %v186 = vunpack.c.l.b16 %v58
  %v187 = vunpack.c.l.b16 %v59
  %v188 = vunpack.c.l.b16 %v60
  %v189 = vunpack.c.l.b16 %v61
  %v190 = vunpack.c.l.b16 %v62
  %v191 = vunpack.c.l.b16 %v63
  %v192 = vunpack.c.l.b16 %v64
  %v193 = vunpack.c.l.b16 %v65
  %v194 = vunpack.c.l.b16 %v66
  %v195 = vunpack.c.l.b16 %v67
  %v196 = vunpack.c.l.b16 %v68
  %v197 = vunpack.c.l.b16 %v69
  %v198 = vunpack.c.l.b16 %v70
  %v199 = vunpack.c.l.b16 %v71
  %v200 = vunpack.c.l.b16 %v72
  %v201 = vunpack.c.l.b16 %v73
  %v202 = vunpack.c.l.b16 %v74
  %v203 = vunpack.c.l.b16 %v75
  %v204 = vunpack.c.l.b16 %v76
  %v205 = vunpack.c.l.b16 %v77
  %v206 = vunpack.c.l.b16 %v78
  %v207 = vunpack.c.l.b16 %v79
  %v208 = vunpack.c.l.b16 %v80
  %v209 = vunpack.c.l.b16 %v81
  %v210 = vpack.c.b16 %v163, %v162
  %v211 = vpack.c.b16 %v165, %v164
  %v212 = vpack.c.b16 %v167, %v166
  %v213 = vpack.c.b16 %v169, %v168
  %v214 = vpack.c.b16 %v171, %v170
  %v215 = vpack.c.b16 %v173, %v172
  %v216 = vpack.c.b16 %v175, %v174
  %v217 = vpack.c.b16 %v177, %v176
  %v218 = vpack.c.b16 %v179, %v178
  %v219 = vpack.c.b16 %v181, %v180
  %v220 = vpack.c.b16 %v183, %v182
  %v221 = vpack.c.b16 %v185, %v184
  %v222 = vpack.c.b16 %v187, %v186
  %v223 = vpack.c.b16 %v189, %v188
  %v224 = vpack.c.b16 %v191, %v190
  %v225 = vpack.c.b16 %v193, %v192
  %v226 = vpack.c.b16 %v195, %v194
  %v227 = vpack.c.b16 %v197, %v196
  %v228 = vpack.c.b16 %v199, %v198
  %v229 = vpack.c.b16 %v201, %v200
  %v230 = vpack.c.b16 %v203, %v202
  %v231 = vpack.c.b16 %v205, %v204
  %v232 = vpack.c.b16 %v207, %v206
  %v233 = vpack.c.b16 %v209, %v208
  %258 = vmatpush.bf16.msra.mxu0 %v217
  %259 = vmatpush.bf16.msra.mxu0 %v216
  %260 = vmatpush.bf16.msra.mxu0 %v215
  %261 = vmatpush.bf16.msra.mxu0 %v214
  %262 = vmatpush.bf16.msra.mxu0 %v213
  %263 = vmatpush.bf16.msra.mxu0 %v212
  %264 = vmatpush.bf16.msra.mxu0 %v211
  %265 = vmatpush.bf16.msra.mxu0 %v210
  %266 = vmatmul.bf16.gmra.mxu0 %v102
  %v267 = vpop.f32.mrf.mxu0
  %v268 = vadd.f32 0.0, %v267
  %v269 = vpop.f32.mrf.mxu0
  %v270 = vadd.f32 0.0, %v269
  %271 = vmatmul.bf16.gmra.mxu0 %v105
  %v272 = vpop.f32.mrf.mxu0
  %v273 = vadd.f32 0.0, %v272
  %v274 = vpop.f32.mrf.mxu0
  %v275 = vadd.f32 0.0, %v274
  %276 = vdwg.mxu0
  %277 = vmatpush.bf16.msra.mxu0 %v225
  %278 = vmatpush.bf16.msra.mxu0 %v224
  %279 = vmatpush.bf16.msra.mxu0 %v223
  %280 = vmatpush.bf16.msra.mxu0 %v222
  %281 = vmatpush.bf16.msra.mxu0 %v221
  %282 = vmatpush.bf16.msra.mxu0 %v220
  %283 = vmatpush.bf16.msra.mxu0 %v219
  %284 = vmatpush.bf16.msra.mxu0 %v218
  %285 = vmatmul.bf16.gmra.mxu0 %v103
  %v286 = vpop.f32.mrf.mxu0
  %v287 = vadd.f32 %v268, %v286
  %v288 = vpop.f32.mrf.mxu0
  %v289 = vadd.f32 %v270, %v288
  %290 = vmatmul.bf16.gmra.mxu0 %v106
  %v291 = vpop.f32.mrf.mxu0
  %v292 = vadd.f32 %v273, %v291
  %v293 = vpop.f32.mrf.mxu0
  %v294 = vadd.f32 %v275, %v293
  %295 = vdwg.mxu0
  %296 = vmatpush.bf16.msra.mxu0 %v233
  %297 = vmatpush.bf16.msra.mxu0 %v232
  %298 = vmatpush.bf16.msra.mxu0 %v231
  %299 = vmatpush.bf16.msra.mxu0 %v230
  %300 = vmatpush.bf16.msra.mxu0 %v229
  %301 = vmatpush.bf16.msra.mxu0 %v228
  %302 = vmatpush.bf16.msra.mxu0 %v227
  %303 = vmatpush.bf16.msra.mxu0 %v226
  %304 = vmatmul.bf16.gmra.mxu0 %v104
  %v305 = vpop.f32.mrf.mxu0
  %v306 = vadd.f32 %v287, %v305
  %v307 = vpop.f32.mrf.mxu0
  %v308 = vadd.f32 %v289, %v307
  %309 = vmatmul.bf16.gmra.mxu0 %v107
  %v310 = vpop.f32.mrf.mxu0
  %v311 = vadd.f32 %v292, %v310
  %v312 = vpop.f32.mrf.mxu0
  %v313 = vadd.f32 %v294, %v312
  %314 = vdwg.mxu0
  %v315 = vadd.f32 %v22, %v306
  %v316 = vadd.f32 %v23, %v308
  %v317 = vadd.f32 %v24, %v311
  %v318 = vadd.f32 %v25, %v313
  %319 = vst [vmem:[#allocation2] sm:$0xff] %v315
  %320 = vst [vmem:[#allocation2 + $0x8] sm:$0xff] %v316
  %321 = vst [vmem:[#allocation2 + $0x10] sm:$0xff] %v317
  %322 = vst [vmem:[#allocation2 + $0x18] sm:$0xff] %v318
  // Predicated region
  $region18: #{_forward_nchw.13} parent=0 // pred_check
    %p323 = pneg %p14
  $region19: #{_forward_nchw.13} parent=0 // pred_check_branch
    %325 = sbr.rel (%p323) target = $region21
  $region20: #{_forward_nchw.13} parent=0 // pred_region
    %v326 = vld [vmem:[#allocation2] sm:$0xff]
    %v327 = vld [vmem:[#allocation2 + $0x8] sm:$0xff]
    %v328 = vld [vmem:[#allocation2 + $0x10] sm:$0xff]
    %v329 = vld [vmem:[#allocation2 + $0x18] sm:$0xff]
    %v330 = vld [vmem:[%s2] sm:$0x1]
    %v332 = vperm.slane %v330, 0
    %v334 = vadd.f32 %v326, %v332
    %v335 = vadd.f32 %v327, %v332
    %v336 = vadd.f32 %v328, %v332
    %v337 = vadd.f32 %v329, %v332
    %v338 = vmax.f32 %v334, 0.0
    %v339 = vmax.f32 %v335, 0.0
    %v340 = vmax.f32 %v336, 0.0
    %v341 = vmax.f32 %v337, 0.0
    %v342 = vpack.c.bf16 %v338, %v338
    %v343 = vpack.c.bf16 %v339, %v339
    %v344 = vpack.c.bf16 %v340, %v340
    %v345 = vpack.c.bf16 %v341, %v341
    %346 = vst [vmem:[%s3] sm:$0xf] %v342
    %347 = vst [vmem:[%s3 + $0x4] sm:$0xf] %v343
    %348 = vst [vmem:[%s3 + $0x8] sm:$0xf] %v344
    %349 = vst [vmem:[%s3 + $0xc] sm:$0xf] %v345
  $region21: #{_forward_nchw.13} parent=0 // pred_fallthru
    _
  // Predicated region
  $region22: #{_forward_nchw.13} parent=0 // pred_check
    _
  $region23: #{_forward_nchw.13} parent=0 // pred_check_branch
    %351 = sbr.rel (0) target = $region25
  $region24: #{_forward_nchw.13} parent=0 // pred_region
    _
  $region25: #{_forward_nchw.13} parent=0 // pred_fallthru
    _
  // Predicated region
  $region26: #{_forward_nchw.13} parent=0 // pred_check
    _
  $region27: #{_forward_nchw.13} parent=0 // pred_check_branch
    %353 = sbr.rel (0) target = $region29
  $region28: #{_forward_nchw.13} parent=0 // pred_region
    _
  $region29: #{_forward_nchw.13} parent=0 // pred_fallthru
    _

// kernel: _forward_nchw.14
$region0: #{_forward_nchw.14}
  #allocation0 [shape = 'u32[]', space=smem, size = 0x4, offset = 0x4, fixed_abs, tag = 'smem constant byte address 0x4 - core index']
  #allocation1 [shape = 'u32[72,128]{1,0:T(1,128)}', space=vmem, size = 0x9000, scoped, tag = 'internal scratch']
  #allocation2 [shape = 'f32[128,128]{1,0:T(8,128)}', space=vmem, size = 0x10000, scoped, tag = 'scratch operand']
  %s0 = inlined_call_operand.vmem [shape: bf16[128,256], index: 0, kind: input, shape index: {}]
  %s1 = inlined_call_operand.vmem [shape: bf16[256,128], index: 1, kind: input, shape index: {}]
  %s2 = inlined_call_operand.vmem [shape: f32[1,128], index: 2, kind: input, shape index: {}]
  %s3 = inlined_call_operand.vmem [shape: bf16[128,128], index: 3, kind: output, shape index: {}]
  %s4 = sld [smem:[#allocation0]]
  $region30: #{_forward_nchw.14} parent=0
    _
  %s6 = ssub.s32 1, %s4
  %s7 = scalar_select 0, %s6, %s4
  // Predicated region
  $region2: #{_forward_nchw.14} parent=0 // pred_check
    _
  $region3: #{_forward_nchw.14} parent=0 // pred_check_branch
    %9 = sbr.rel (0) target = $region5
  $region4: #{_forward_nchw.14} parent=0 // pred_region
    _
  $region5: #{_forward_nchw.14} parent=0 // pred_fallthru
    _
  // Predicated region
  $region6: #{_forward_nchw.14} parent=0 // pred_check
    _
  $region7: #{_forward_nchw.14} parent=0 // pred_check_branch
    %11 = sbr.rel (0) target = $region9
  $region8: #{_forward_nchw.14} parent=0 // pred_region
    _
  $region9: #{_forward_nchw.14} parent=0 // pred_fallthru
    _
  // Predicated region
  $region10: #{_forward_nchw.14} parent=0 // pred_check
    _
  $region11: #{_forward_nchw.14} parent=0 // pred_check_branch
    %13 = sbr.rel (0) target = $region13
  $region12: #{_forward_nchw.14} parent=0 // pred_region
    _
  $region13: #{_forward_nchw.14} parent=0 // pred_fallthru
    _
  %p14 = scmp.eq.s32.totalorder 0, 0
  // Predicated region
  $region14: #{_forward_nchw.14} parent=0 // pred_check
    %p15 = pneg %p14
  $region15: #{_forward_nchw.14} parent=0 // pred_check_branch
    %17 = sbr.rel (%p15) target = $region17
  $region16: #{_forward_nchw.14} parent=0 // pred_region
    %18 = vst [vmem:[#allocation2] sm:$0xff] 0.0
    %19 = vst [vmem:[#allocation2 + $0x8] sm:$0xff] 0.0
    %20 = vst [vmem:[#allocation2 + $0x10] sm:$0xff] 0.0
    %21 = vst [vmem:[#allocation2 + $0x18] sm:$0xff] 0.0
    %22 = vst [vmem:[#allocation2 + $0x20] sm:$0xff] 0.0
    %23 = vst [vmem:[#allocation2 + $0x28] sm:$0xff] 0.0
    %24 = vst [vmem:[#allocation2 + $0x30] sm:$0xff] 0.0
    %25 = vst [vmem:[#allocation2 + $0x38] sm:$0xff] 0.0
    %26 = vst [vmem:[#allocation2 + $0x40] sm:$0xff] 0.0
    %27 = vst [vmem:[#allocation2 + $0x48] sm:$0xff] 0.0
    %28 = vst [vmem:[#allocation2 + $0x50] sm:$0xff] 0.0
    %29 = vst [vmem:[#allocation2 + $0x58] sm:$0xff] 0.0
    %30 = vst [vmem:[#allocation2 + $0x60] sm:$0xff] 0.0
    %31 = vst [vmem:[#allocation2 + $0x68] sm:$0xff] 0.0
    %32 = vst [vmem:[#allocation2 + $0x70] sm:$0xff] 0.0
    %33 = vst [vmem:[#allocation2 + $0x78] sm:$0xff] 0.0
  $region17: #{_forward_nchw.14} parent=0 // pred_fallthru
    _
  %v34 = vld [vmem:[#allocation2] sm:$0xff]
  %v35 = vld [vmem:[#allocation2 + $0x8] sm:$0xff]
  %v36 = vld [vmem:[#allocation2 + $0x10] sm:$0xff]
  %v37 = vld [vmem:[#allocation2 + $0x18] sm:$0xff]
  %v38 = vld [vmem:[#allocation2 + $0x20] sm:$0xff]
  %v39 = vld [vmem:[#allocation2 + $0x28] sm:$0xff]
  %v40 = vld [vmem:[#allocation2 + $0x30] sm:$0xff]
  %v41 = vld [vmem:[#allocation2 + $0x38] sm:$0xff]
  %v42 = vld [vmem:[#allocation2 + $0x40] sm:$0xff]
  %v43 = vld [vmem:[#allocation2 + $0x48] sm:$0xff]
  %v44 = vld [vmem:[#allocation2 + $0x50] sm:$0xff]
  %v45 = vld [vmem:[#allocation2 + $0x58] sm:$0xff]
  %v46 = vld [vmem:[#allocation2 + $0x60] sm:$0xff]
  %v47 = vld [vmem:[#allocation2 + $0x68] sm:$0xff]
  %v48 = vld [vmem:[#allocation2 + $0x70] sm:$0xff]
  %v49 = vld [vmem:[#allocation2 + $0x78] sm:$0xff]
  %v50 = vld [vmem:[%s0] sm:$0xff]
  %v51 = vld [vmem:[%s0 + $0x8] sm:$0xff]
  %v52 = vld [vmem:[%s0 + $0x10] sm:$0xff]
  %v53 = vld [vmem:[%s0 + $0x18] sm:$0xff]
  %v54 = vld [vmem:[%s0 + $0x20] sm:$0xff]
  %v55 = vld [vmem:[%s0 + $0x28] sm:$0xff]
  %v56 = vld [vmem:[%s0 + $0x30] sm:$0xff]
  %v57 = vld [vmem:[%s0 + $0x38] sm:$0xff]
  %v58 = vld [vmem:[%s0 + $0x40] sm:$0xff]
  %v59 = vld [vmem:[%s0 + $0x48] sm:$0xff]
  %v60 = vld [vmem:[%s0 + $0x50] sm:$0xff]
  %v61 = vld [vmem:[%s0 + $0x58] sm:$0xff]
  %v62 = vld [vmem:[%s0 + $0x60] sm:$0xff]
  %v63 = vld [vmem:[%s0 + $0x68] sm:$0xff]
  %v64 = vld [vmem:[%s0 + $0x70] sm:$0xff]
  %v65 = vld [vmem:[%s0 + $0x78] sm:$0xff]
  %v66 = vld [vmem:[%s1] sm:$0xf]
  %v67 = vld [vmem:[%s1 + $0x4] sm:$0xf]
  %v68 = vld [vmem:[%s1 + $0x8] sm:$0xf]
  %v69 = vld [vmem:[%s1 + $0xc] sm:$0xf]
  %v70 = vld [vmem:[%s1 + $0x10] sm:$0xf]
  %v71 = vld [vmem:[%s1 + $0x14] sm:$0xf]
  %v72 = vld [vmem:[%s1 + $0x18] sm:$0xf]
  %v73 = vld [vmem:[%s1 + $0x1c] sm:$0xf]
  %v74 = vld [vmem:[%s1 + $0x20] sm:$0xf]
  %v75 = vld [vmem:[%s1 + $0x24] sm:$0xf]
  %v76 = vld [vmem:[%s1 + $0x28] sm:$0xf]
  %v77 = vld [vmem:[%s1 + $0x2c] sm:$0xf]
  %v78 = vld [vmem:[%s1 + $0x30] sm:$0xf]
  %v79 = vld [vmem:[%s1 + $0x34] sm:$0xf]
  %v80 = vld [vmem:[%s1 + $0x38] sm:$0xf]
  %v81 = vld [vmem:[%s1 + $0x3c] sm:$0xf]
  %v82 = vld [vmem:[%s1 + $0x40] sm:$0xf]
  %v83 = vld [vmem:[%s1 + $0x44] sm:$0xf]
  %v84 = vld [vmem:[%s1 + $0x48] sm:$0xf]
  %v85 = vld [vmem:[%s1 + $0x4c] sm:$0xf]
  %v86 = vld [vmem:[%s1 + $0x50] sm:$0xf]
  %v87 = vld [vmem:[%s1 + $0x54] sm:$0xf]
  %v88 = vld [vmem:[%s1 + $0x58] sm:$0xf]
  %v89 = vld [vmem:[%s1 + $0x5c] sm:$0xf]
  %v90 = vld [vmem:[%s1 + $0x60] sm:$0xf]
  %v91 = vld [vmem:[%s1 + $0x64] sm:$0xf]
  %v92 = vld [vmem:[%s1 + $0x68] sm:$0xf]
  %v93 = vld [vmem:[%s1 + $0x6c] sm:$0xf]
  %v94 = vld [vmem:[%s1 + $0x70] sm:$0xf]
  %v95 = vld [vmem:[%s1 + $0x74] sm:$0xf]
  %v96 = vld [vmem:[%s1 + $0x78] sm:$0xf]
  %v97 = vld [vmem:[%s1 + $0x7c] sm:$0xf]
  %v114 = vunpack.c.l.b16 %v50
  %v115 = vunpack.c.h.b16 %v50
  %v116 = vunpack.c.l.b16 %v51
  %v117 = vunpack.c.h.b16 %v51
  %v118 = vunpack.c.l.b16 %v52
  %v119 = vunpack.c.h.b16 %v52
  %v120 = vunpack.c.l.b16 %v53
  %v121 = vunpack.c.h.b16 %v53
  %v122 = vunpack.c.l.b16 %v54
  %v123 = vunpack.c.h.b16 %v54
  %v124 = vunpack.c.l.b16 %v55
  %v125 = vunpack.c.h.b16 %v55
  %v126 = vunpack.c.l.b16 %v56
  %v127 = vunpack.c.h.b16 %v56
  %v128 = vunpack.c.l.b16 %v57
  %v129 = vunpack.c.h.b16 %v57
  %v130 = vunpack.c.l.b16 %v58
  %v131 = vunpack.c.h.b16 %v58
  %v132 = vunpack.c.l.b16 %v59
  %v133 = vunpack.c.h.b16 %v59
  %v134 = vunpack.c.l.b16 %v60
  %v135 = vunpack.c.h.b16 %v60
  %v136 = vunpack.c.l.b16 %v61
  %v137 = vunpack.c.h.b16 %v61
  %v138 = vunpack.c.l.b16 %v62
  %v139 = vunpack.c.h.b16 %v62
  %v140 = vunpack.c.l.b16 %v63
  %v141 = vunpack.c.h.b16 %v63
  %v142 = vunpack.c.l.b16 %v64
  %v143 = vunpack.c.h.b16 %v64
  %v144 = vunpack.c.l.b16 %v65
  %v145 = vunpack.c.h.b16 %v65
  %v146 = vpack.c.b16 %v116, %v114
  %v147 = vpack.c.b16 %v117, %v115
  %v148 = vpack.c.b16 %v120, %v118
  %v149 = vpack.c.b16 %v121, %v119
  %v150 = vpack.c.b16 %v124, %v122
  %v151 = vpack.c.b16 %v125, %v123
  %v152 = vpack.c.b16 %v128, %v126
  %v153 = vpack.c.b16 %v129, %v127
  %v154 = vpack.c.b16 %v132, %v130
  %v155 = vpack.c.b16 %v133, %v131
  %v156 = vpack.c.b16 %v136, %v134
  %v157 = vpack.c.b16 %v137, %v135
  %v158 = vpack.c.b16 %v140, %v138
  %v159 = vpack.c.b16 %v141, %v139
  %v160 = vpack.c.b16 %v144, %v142
  %v161 = vpack.c.b16 %v145, %v143
  %v210 = vunpack.c.l.b16 %v66
  %v211 = vunpack.c.l.b16 %v67
  %v212 = vunpack.c.l.b16 %v68
  %v213 = vunpack.c.l.b16 %v69
  %v214 = vunpack.c.l.b16 %v70
  %v215 = vunpack.c.l.b16 %v71
  %v216 = vunpack.c.l.b16 %v72
  %v217 = vunpack.c.l.b16 %v73
  %v218 = vunpack.c.l.b16 %v74
  %v219 = vunpack.c.l.b16 %v75
  %v220 = vunpack.c.l.b16 %v76
  %v221 = vunpack.c.l.b16 %v77
  %v222 = vunpack.c.l.b16 %v78
  %v223 = vunpack.c.l.b16 %v79
  %v224 = vunpack.c.l.b16 %v80
  %v225 = vunpack.c.l.b16 %v81
  %v226 = vunpack.c.l.b16 %v82
  %v227 = vunpack.c.l.b16 %v83
  %v228 = vunpack.c.l.b16 %v84
  %v229 = vunpack.c.l.b16 %v85
  %v230 = vunpack.c.l.b16 %v86
  %v231 = vunpack.c.l.b16 %v87
  %v232 = vunpack.c.l.b16 %v88
  %v233 = vunpack.c.l.b16 %v89
  %v234 = vunpack.c.l.b16 %v90
  %v235 = vunpack.c.l.b16 %v91
  %v236 = vunpack.c.l.b16 %v92
  %v237 = vunpack.c.l.b16 %v93
  %v238 = vunpack.c.l.b16 %v94
  %v239 = vunpack.c.l.b16 %v95
  %v240 = vunpack.c.l.b16 %v96
  %v241 = vunpack.c.l.b16 %v97
  %v242 = vpack.c.b16 %v211, %v210
  %v243 = vpack.c.b16 %v213, %v212
  %v244 = vpack.c.b16 %v215, %v214
  %v245 = vpack.c.b16 %v217, %v216
  %v246 = vpack.c.b16 %v219, %v218
  %v247 = vpack.c.b16 %v221, %v220
  %v248 = vpack.c.b16 %v223, %v222
  %v249 = vpack.c.b16 %v225, %v224
  %v250 = vpack.c.b16 %v227, %v226
  %v251 = vpack.c.b16 %v229, %v228
  %v252 = vpack.c.b16 %v231, %v230
  %v253 = vpack.c.b16 %v233, %v232
  %v254 = vpack.c.b16 %v235, %v234
  %v255 = vpack.c.b16 %v237, %v236
  %v256 = vpack.c.b16 %v239, %v238
  %v257 = vpack.c.b16 %v241, %v240
  %274 = vmatpush.bf16.msra.mxu0 %v249
  %275 = vmatpush.bf16.msra.mxu0 %v248
  %276 = vmatpush.bf16.msra.mxu0 %v247
  %277 = vmatpush.bf16.msra.mxu0 %v246
  %278 = vmatpush.bf16.msra.mxu0 %v245
  %279 = vmatpush.bf16.msra.mxu0 %v244
  %280 = vmatpush.bf16.msra.mxu0 %v243
  %281 = vmatpush.bf16.msra.mxu0 %v242
  %282 = vmatmul.bf16.gmra.mxu0 %v146
  %v283 = vpop.f32.mrf.mxu0
  %v284 = vadd.f32 0.0, %v283
  %v285 = vpop.f32.mrf.mxu0
  %v286 = vadd.f32 0.0, %v285
  %287 = vmatmul.bf16.gmra.mxu0 %v148
  %v288 = vpop.f32.mrf.mxu0
  %v289 = vadd.f32 0.0, %v288
  %v290 = vpop.f32.mrf.mxu0
  %v291 = vadd.f32 0.0, %v290
  %292 = vmatmul.bf16.gmra.mxu0 %v150
  %v293 = vpop.f32.mrf.mxu0
  %v294 = vadd.f32 0.0, %v293
  %v295 = vpop.f32.mrf.mxu0
  %v296 = vadd.f32 0.0, %v295
  %297 = vmatmul.bf16.gmra.mxu0 %v152
  %v298 = vpop.f32.mrf.mxu0
  %v299 = vadd.f32 0.0, %v298
  %v300 = vpop.f32.mrf.mxu0
  %v301 = vadd.f32 0.0, %v300
  %302 = vmatmul.bf16.gmra.mxu0 %v154
  %v303 = vpop.f32.mrf.mxu0
  %v304 = vadd.f32 0.0, %v303
  %v305 = vpop.f32.mrf.mxu0
  %v306 = vadd.f32 0.0, %v305
  %307 = vmatmul.bf16.gmra.mxu0 %v156
  %v308 = vpop.f32.mrf.mxu0
  %v309 = vadd.f32 0.0, %v308
  %v310 = vpop.f32.mrf.mxu0
  %v311 = vadd.f32 0.0, %v310
  %312 = vmatmul.bf16.gmra.mxu0 %v158
  %v313 = vpop.f32.mrf.mxu0
  %v314 = vadd.f32 0.0, %v313
  %v315 = vpop.f32.mrf.mxu0
  %v316 = vadd.f32 0.0, %v315
  %317 = vmatmul.bf16.gmra.mxu0 %v160
  %v318 = vpop.f32.mrf.mxu0
  %v319 = vadd.f32 0.0, %v318
  %v320 = vpop.f32.mrf.mxu0
  %v321 = vadd.f32 0.0, %v320
  %322 = vdwg.mxu0
  %323 = vmatpush.bf16.msra.mxu0 %v257
  %324 = vmatpush.bf16.msra.mxu0 %v256
  %325 = vmatpush.bf16.msra.mxu0 %v255
  %326 = vmatpush.bf16.msra.mxu0 %v254
  %327 = vmatpush.bf16.msra.mxu0 %v253
  %328 = vmatpush.bf16.msra.mxu0 %v252
  %329 = vmatpush.bf16.msra.mxu0 %v251
  %330 = vmatpush.bf16.msra.mxu0 %v250
  %331 = vmatmul.bf16.gmra.mxu0 %v147
  %v332 = vpop.f32.mrf.mxu0
  %v333 = vadd.f32 %v284, %v332
  %v334 = vpop.f32.mrf.mxu0
  %v335 = vadd.f32 %v286, %v334
  %336 = vmatmul.bf16.gmra.mxu0 %v149
  %v337 = vpop.f32.mrf.mxu0
  %v338 = vadd.f32 %v289, %v337
  %v339 = vpop.f32.mrf.mxu0
  %v340 = vadd.f32 %v291, %v339
  %341 = vmatmul.bf16.gmra.mxu0 %v151
  %v342 = vpop.f32.mrf.mxu0
  %v343 = vadd.f32 %v294, %v342
  %v344 = vpop.f32.mrf.mxu0
  %v345 = vadd.f32 %v296, %v344
  %346 = vmatmul.bf16.gmra.mxu0 %v153
  %v347 = vpop.f32.mrf.mxu0
  %v348 = vadd.f32 %v299, %v347
  %v349 = vpop.f32.mrf.mxu0
  %v350 = vadd.f32 %v301, %v349
  %351 = vmatmul.bf16.gmra.mxu0 %v155
  %v352 = vpop.f32.mrf.mxu0
  %v353 = vadd.f32 %v304, %v352
  %v354 = vpop.f32.mrf.mxu0
  %v355 = vadd.f32 %v306, %v354
  %356 = vmatmul.bf16.gmra.mxu0 %v157
  %v357 = vpop.f32.mrf.mxu0
  %v358 = vadd.f32 %v309, %v357
  %v359 = vpop.f32.mrf.mxu0
  %v360 = vadd.f32 %v311, %v359
  %361 = vmatmul.bf16.gmra.mxu0 %v159
  %v362 = vpop.f32.mrf.mxu0
  %v363 = vadd.f32 %v314, %v362
  %v364 = vpop.f32.mrf.mxu0
  %v365 = vadd.f32 %v316, %v364
  %366 = vmatmul.bf16.gmra.mxu0 %v161
  %v367 = vpop.f32.mrf.mxu0
  %v368 = vadd.f32 %v319, %v367
  %v369 = vpop.f32.mrf.mxu0
  %v370 = vadd.f32 %v321, %v369
  %371 = vdwg.mxu0
  %v372 = vadd.f32 %v34, %v333
  %v373 = vadd.f32 %v35, %v335
  %v374 = vadd.f32 %v36, %v338
  %v375 = vadd.f32 %v37, %v340
  %v376 = vadd.f32 %v38, %v343
  %v377 = vadd.f32 %v39, %v345
  %v378 = vadd.f32 %v40, %v348
  %v379 = vadd.f32 %v41, %v350
  %v380 = vadd.f32 %v42, %v353
  %v381 = vadd.f32 %v43, %v355
  %v382 = vadd.f32 %v44, %v358
  %v383 = vadd.f32 %v45, %v360
  %v384 = vadd.f32 %v46, %v363
  %v385 = vadd.f32 %v47, %v365
  %v386 = vadd.f32 %v48, %v368
  %v387 = vadd.f32 %v49, %v370
  %388 = vst [vmem:[#allocation2] sm:$0xff] %v372
  %389 = vst [vmem:[#allocation2 + $0x8] sm:$0xff] %v373
  %390 = vst [vmem:[#allocation2 + $0x10] sm:$0xff] %v374
  %391 = vst [vmem:[#allocation2 + $0x18] sm:$0xff] %v375
  %392 = vst [vmem:[#allocation2 + $0x20] sm:$0xff] %v376
  %393 = vst [vmem:[#allocation2 + $0x28] sm:$0xff] %v377
  %394 = vst [vmem:[#allocation2 + $0x30] sm:$0xff] %v378
  %395 = vst [vmem:[#allocation2 + $0x38] sm:$0xff] %v379
  %396 = vst [vmem:[#allocation2 + $0x40] sm:$0xff] %v380
  %397 = vst [vmem:[#allocation2 + $0x48] sm:$0xff] %v381
  %398 = vst [vmem:[#allocation2 + $0x50] sm:$0xff] %v382
  %399 = vst [vmem:[#allocation2 + $0x58] sm:$0xff] %v383
  %400 = vst [vmem:[#allocation2 + $0x60] sm:$0xff] %v384
  %401 = vst [vmem:[#allocation2 + $0x68] sm:$0xff] %v385
  %402 = vst [vmem:[#allocation2 + $0x70] sm:$0xff] %v386
  %403 = vst [vmem:[#allocation2 + $0x78] sm:$0xff] %v387
  // Predicated region
  $region18: #{_forward_nchw.14} parent=0 // pred_check
    %p404 = pneg %p14
  $region19: #{_forward_nchw.14} parent=0 // pred_check_branch
    %406 = sbr.rel (%p404) target = $region21
  $region20: #{_forward_nchw.14} parent=0 // pred_region
    %v407 = vld [vmem:[#allocation2] sm:$0xff]
    %v408 = vld [vmem:[#allocation2 + $0x8] sm:$0xff]
    %v409 = vld [vmem:[#allocation2 + $0x10] sm:$0xff]
    %v410 = vld [vmem:[#allocation2 + $0x18] sm:$0xff]
    %v411 = vld [vmem:[#allocation2 + $0x20] sm:$0xff]
    %v412 = vld [vmem:[#allocation2 + $0x28] sm:$0xff]
    %v413 = vld [vmem:[#allocation2 + $0x30] sm:$0xff]
    %v414 = vld [vmem:[#allocation2 + $0x38] sm:$0xff]
    %v415 = vld [vmem:[#allocation2 + $0x40] sm:$0xff]
    %v416 = vld [vmem:[#allocation2 + $0x48] sm:$0xff]
    %v417 = vld [vmem:[#allocation2 + $0x50] sm:$0xff]
    %v418 = vld [vmem:[#allocation2 + $0x58] sm:$0xff]
    %v419 = vld [vmem:[#allocation2 + $0x60] sm:$0xff]
    %v420 = vld [vmem:[#allocation2 + $0x68] sm:$0xff]
    %v421 = vld [vmem:[#allocation2 + $0x70] sm:$0xff]
    %v422 = vld [vmem:[#allocation2 + $0x78] sm:$0xff]
    %v423 = vld [vmem:[%s2] sm:$0x1]
    %v425 = vperm.slane %v423, 0
    %v427 = vadd.f32 %v407, %v425
    %v428 = vadd.f32 %v408, %v425
    %v429 = vadd.f32 %v409, %v425
    %v430 = vadd.f32 %v410, %v425
    %v431 = vadd.f32 %v411, %v425
    %v432 = vadd.f32 %v412, %v425
    %v433 = vadd.f32 %v413, %v425
    %v434 = vadd.f32 %v414, %v425
    %v435 = vadd.f32 %v415, %v425
    %v436 = vadd.f32 %v416, %v425
    %v437 = vadd.f32 %v417, %v425
    %v438 = vadd.f32 %v418, %v425
    %v439 = vadd.f32 %v419, %v425
    %v440 = vadd.f32 %v420, %v425
    %v441 = vadd.f32 %v421, %v425
    %v442 = vadd.f32 %v422, %v425
    %v443 = vmax.f32 %v427, 0.0
    %v444 = vmax.f32 %v428, 0.0
    %v445 = vmax.f32 %v429, 0.0
    %v446 = vmax.f32 %v430, 0.0
    %v447 = vmax.f32 %v431, 0.0
    %v448 = vmax.f32 %v432, 0.0
    %v449 = vmax.f32 %v433, 0.0
    %v450 = vmax.f32 %v434, 0.0
    %v451 = vmax.f32 %v435, 0.0
    %v452 = vmax.f32 %v436, 0.0
    %v453 = vmax.f32 %v437, 0.0
    %v454 = vmax.f32 %v438, 0.0
    %v455 = vmax.f32 %v439, 0.0
    %v456 = vmax.f32 %v440, 0.0
    %v457 = vmax.f32 %v441, 0.0
    %v458 = vmax.f32 %v442, 0.0
    %v459 = vpack.c.bf16 %v443, %v443
    %v460 = vpack.c.bf16 %v444, %v444
    %v461 = vpack.c.bf16 %v445, %v445
    %v462 = vpack.c.bf16 %v446, %v446
    %v463 = vpack.c.bf16 %v447, %v447
    %v464 = vpack.c.bf16 %v448, %v448
    %v465 = vpack.c.bf16 %v449, %v449
    %v466 = vpack.c.bf16 %v450, %v450
    %v467 = vpack.c.bf16 %v451, %v451
    %v468 = vpack.c.bf16 %v452, %v452
    %v469 = vpack.c.bf16 %v453, %v453
    %v470 = vpack.c.bf16 %v454, %v454
    %v471 = vpack.c.bf16 %v455, %v455
    %v472 = vpack.c.bf16 %v456, %v456
    %v473 = vpack.c.bf16 %v457, %v457
    %v474 = vpack.c.bf16 %v458, %v458
    %475 = vst [vmem:[%s3] sm:$0xf] %v459
    %476 = vst [vmem:[%s3 + $0x4] sm:$0xf] %v460
    %477 = vst [vmem:[%s3 + $0x8] sm:$0xf] %v461
    %478 = vst [vmem:[%s3 + $0xc] sm:$0xf] %v462
    %479 = vst [vmem:[%s3 + $0x10] sm:$0xf] %v463
    %480 = vst [vmem:[%s3 + $0x14] sm:$0xf] %v464
    %481 = vst [vmem:[%s3 + $0x18] sm:$0xf] %v465
    %482 = vst [vmem:[%s3 + $0x1c] sm:$0xf] %v466
    %483 = vst [vmem:[%s3 + $0x20] sm:$0xf] %v467
    %484 = vst [vmem:[%s3 + $0x24] sm:$0xf] %v468
    %485 = vst [vmem:[%s3 + $0x28] sm:$0xf] %v469
    %486 = vst [vmem:[%s3 + $0x2c] sm:$0xf] %v470
    %487 = vst [vmem:[%s3 + $0x30] sm:$0xf] %v471
    %488 = vst [vmem:[%s3 + $0x34] sm:$0xf] %v472
    %489 = vst [vmem:[%s3 + $0x38] sm:$0xf] %v473
    %490 = vst [vmem:[%s3 + $0x3c] sm:$0xf] %v474
  $region21: #{_forward_nchw.14} parent=0 // pred_fallthru
    _
  // Predicated region
  $region22: #{_forward_nchw.14} parent=0 // pred_check
    _
  $region23: #{_forward_nchw.14} parent=0 // pred_check_branch
    %492 = sbr.rel (0) target = $region25
  $region24: #{_forward_nchw.14} parent=0 // pred_region
    _
  $region25: #{_forward_nchw.14} parent=0 // pred_fallthru
    _
  // Predicated region
  $region26: #{_forward_nchw.14} parent=0 // pred_check
    _
  $region27: #{_forward_nchw.14} parent=0 // pred_check_branch
    %494 = sbr.rel (0) target = $region29
  $region28: #{_forward_nchw.14} parent=0 // pred_region
    _
  $region29: #{_forward_nchw.14} parent=0 // pred_fallthru
    _

// kernel: _forward_nchw.15
$region0: #{_forward_nchw.15}
  #allocation0 [shape = 'u32[]', space=smem, size = 0x4, offset = 0x4, fixed_abs, tag = 'smem constant byte address 0x4 - core index']
  #allocation1 [shape = 'u32[72,128]{1,0:T(1,128)}', space=vmem, size = 0x9000, scoped, tag = 'internal scratch']
  #allocation2 [shape = 'f32[256,128]{1,0:T(8,128)}', space=vmem, size = 0x20000, scoped, tag = 'scratch operand']
  %s0 = inlined_call_operand.vmem [shape: bf16[512,256], index: 0, kind: input, shape index: {}]
  %s1 = inlined_call_operand.vmem [shape: bf16[256,128], index: 1, kind: input, shape index: {}]
  %s2 = inlined_call_operand.vmem [shape: f32[1,128], index: 2, kind: input, shape index: {}]
  %s3 = inlined_call_operand.vmem [shape: f32[512,128], index: 3, kind: output, shape index: {}]
  %s4 = sld [smem:[#allocation0]]
  $region53: #{_forward_nchw.15} parent=0
    _
  %s6 = ssub.s32 1, %s4
  %s7 = scalar_select 0, %s6, %s4
  loop: start=0, step=1, limit=4
  $region2: #{_forward_nchw.15} parent=0 // loop_pre_header
    _
  $region3: #{_forward_nchw.15} parent=0 // loop_header
    %s9 = sphi 0, %s13
    %p10 = scmp.ge.s32.totalorder %s9, 4
    %s16 = sphi 0, %s28
    %s17 = sphi 0, %s24
    %s18 = sphi 0, %s16
    %s19 = sphi 0, %s17
    %s20 = sphi 0, %s18
    %s21 = sphi 0, %s19
    %s33 = sphi 0, %s35
    %s36 = sphi 0, %s33
    %s37 = sphi 0, %s36
    %s53 = sphi 0, %s37
    %s59 = sphi 0, %s61
    %s62 = sphi 0, %s59
    %s63 = sphi 0, %s62
    %s79 = sphi 0, %s63
    %s83 = sphi 0, %s83
    %s85 = sphi 0, %s83
    %s86 = sphi 0, %s85
    %s100 = sphi 0, %s86
    %s106 = sphi 0, %s108
    %s109 = sphi 0, %s106
    %s110 = sphi 0, %s109
    %s126 = sphi 0, %s110
  $region4: #{_forward_nchw.15} parent=0 // loop_header_branch
    %12 = sbr.rel (%p10) target = $region8
  $region5: #{_forward_nchw.15} parent=0 // loop_body
    %s14 = ssub.s32 %s9, 1
    %s15 = ssub.s32 %s9, 2
    %s22 = sadd.s32 1, %s17
    %p23 = scmp.ge.s32.totalorder %s22, 1
    %s24 = scalar_select %p23, 0, %s22
    %s25 = sadd.s32 1, %s16
    %s26 = scalar_select %p23, %s25, %s16
    %p27 = scmp.ge.s32.totalorder %s26, 2
    %s28 = scalar_select %p27, 0, %s26
    %s29 = ssub.s32 %s16, %s28
    %s30 = ssub.s32 %s17, %s24
    %s31 = sor.u32 %s29, %s30
    %p32 = scmp.eq.s32.totalorder %s31, 0
    %s34 = sadd.s32 %s33, 1
    %s35 = scalar_select %p32, %s33, %s34
    %p38 = pneg %p32
    %p39 = scmp.eq.s32.totalorder %s9, 1
    %p40 = por %p38, %p39
    %p41 = scmp.ne.s32.totalorder %s33, %s36
    %p42 = scmp.eq.s32.totalorder %s9, 0
    %p43 = por %p41, %p42
    %p44 = scmp.ne.s32.totalorder %s33, %s36
    %p45 = scmp.eq.s32.totalorder %s14, 1
    %p46 = por %p44, %p45
    %p47 = scmp.ne.s32.totalorder %s36, %s37
    %p48 = scmp.eq.s32.totalorder %s14, 0
    %p49 = por %p47, %p48
    %p50 = scmp.ne.s32.totalorder %s36, %s37
    %p51 = scmp.eq.s32.totalorder %s15, 1
    %p52 = por %p50, %p51
    %p54 = scmp.ne.s32.totalorder %s37, %s53
    %p55 = scmp.eq.s32.totalorder %s15, 0
    %p56 = por %p54, %p55
    %s57 = ssub.s32 %s17, %s24
    %p58 = scmp.eq.s32.totalorder %s57, 0
    %s60 = sadd.s32 %s59, 1
    %s61 = scalar_select %p58, %s59, %s60
    %p64 = pneg %p58
    %p65 = scmp.eq.s32.totalorder %s9, 1
    %p66 = por %p64, %p65
    %p67 = scmp.ne.s32.totalorder %s59, %s62
    %p68 = scmp.eq.s32.totalorder %s9, 0
    %p69 = por %p67, %p68
    %p70 = scmp.ne.s32.totalorder %s59, %s62
    %p71 = scmp.eq.s32.totalorder %s14, 1
    %p72 = por %p70, %p71
    %p73 = scmp.ne.s32.totalorder %s62, %s63
    %p74 = scmp.eq.s32.totalorder %s14, 0
    %p75 = por %p73, %p74
    %p76 = scmp.ne.s32.totalorder %s62, %s63
    %p77 = scmp.eq.s32.totalorder %s15, 1
    %p78 = por %p76, %p77
    %p80 = scmp.ne.s32.totalorder %s63, %s79
    %p81 = scmp.eq.s32.totalorder %s15, 0
    %p82 = por %p80, %p81
    %s84 = sadd.s32 %s83, 1
    %p87 = scmp.eq.s32.totalorder %s9, 1
    %p88 = scmp.ne.s32.totalorder %s83, %s85
    %p89 = scmp.eq.s32.totalorder %s9, 0
    %p90 = por %p88, %p89
    %p91 = scmp.ne.s32.totalorder %s83, %s85
    %p92 = scmp.eq.s32.totalorder %s14, 1
    %p93 = por %p91, %p92
    %p94 = scmp.ne.s32.totalorder %s85, %s86
    %p95 = scmp.eq.s32.totalorder %s14, 0
    %p96 = por %p94, %p95
    %p97 = scmp.ne.s32.totalorder %s85, %s86
    %p98 = scmp.eq.s32.totalorder %s15, 1
    %p99 = por %p97, %p98
    %p101 = scmp.ne.s32.totalorder %s86, %s100
    %p102 = scmp.eq.s32.totalorder %s15, 0
    %p103 = por %p101, %p102
    %s104 = ssub.s32 %s16, %s28
    %p105 = scmp.eq.s32.totalorder %s104, 0
    %s107 = sadd.s32 %s106, 1
    %s108 = scalar_select %p105, %s106, %s107
    %p111 = pneg %p105
    %p112 = scmp.eq.s32.totalorder %s9, 1
    %p113 = por %p111, %p112
    %p114 = scmp.ne.s32.totalorder %s106, %s109
    %p115 = scmp.eq.s32.totalorder %s9, 0
    %p116 = por %p114, %p115
    %p117 = scmp.ne.s32.totalorder %s106, %s109
    %p118 = scmp.eq.s32.totalorder %s14, 1
    %p119 = por %p117, %p118
    %p120 = scmp.ne.s32.totalorder %s109, %s110
    %p121 = scmp.eq.s32.totalorder %s14, 0
    %p122 = por %p120, %p121
    %p123 = scmp.ne.s32.totalorder %s109, %s110
    %p124 = scmp.eq.s32.totalorder %s15, 1
    %p125 = por %p123, %p124
    %p127 = scmp.ne.s32.totalorder %s110, %s126
    %p128 = scmp.eq.s32.totalorder %s15, 0
    %p129 = por %p127, %p128
    %p130 = scmp.le.s32.totalorder 1, %s9
    %p131 = scmp.lt.s32.totalorder %s9, 3
    %p132 = pnand %p130, %p131
    %p133 = pneg %p132
    // Predicated region
    $region9: #{_forward_nchw.15} parent=5 // pred_check
      _
    $region10: #{_forward_nchw.15} parent=5 // pred_check_branch
      %135 = sbr.rel (%p132) target = $region12
    $region11: #{_forward_nchw.15} parent=5 // pred_region
      %s136 = ssub.s32 %s9, 1
      // Predicated region
      $region13: #{_forward_nchw.15} parent=11 // pred_check
        %p137 = pneg %p75
      $region14: #{_forward_nchw.15} parent=11 // pred_check_branch
        %139 = sbr.rel (%p137) target = $region16
      $region15: #{_forward_nchw.15} parent=11 // pred_region
        %s140 = smul.u32 32, %s19
        %p141 = scmp.lt.s32.totalorder %s140, 31
        %s142 = scalar_select %p141, %s140, 31
        %s143 = smul.addr %s142, 4
        %s144 = scalar_lea.vmem %s1, %s143
        %s145 = smul.u32 32, %s19
      $region16: #{_forward_nchw.15} parent=11 // pred_fallthru
        _
      // Predicated region
      $region17: #{_forward_nchw.15} parent=11 // pred_check
        %p146 = pneg %p96
      $region18: #{_forward_nchw.15} parent=11 // pred_check_branch
        %148 = sbr.rel (%p146) target = $region20
      $region19: #{_forward_nchw.15} parent=11 // pred_region
        _
      $region20: #{_forward_nchw.15} parent=11 // pred_fallthru
        _
    $region12: #{_forward_nchw.15} parent=5 // pred_fallthru
      _
    %p149 = scmp.lt.s32.totalorder %s9, 2
    // Predicated region
    $region21: #{_forward_nchw.15} parent=5 // pred_check
      %p150 = pneg %p149
    $region22: #{_forward_nchw.15} parent=5 // pred_check_branch
      %152 = sbr.rel (%p150) target = $region24
    $region23: #{_forward_nchw.15} parent=5 // pred_region
      // Predicated region
      $region25: #{_forward_nchw.15} parent=23 // pred_check
        %p153 = pneg %p43
      $region26: #{_forward_nchw.15} parent=23 // pred_check_branch
        %155 = sbr.rel (%p153) target = $region28
      $region27: #{_forward_nchw.15} parent=23 // pred_region
        %s156 = smul.u32 32, %s16
        %s157 = smul.u32 2, %s17
        %p158 = scmp.lt.s32.totalorder %s156, 63
        %s159 = scalar_select %p158, %s156, 63
        %p160 = scmp.lt.s32.totalorder %s157, 1
        %s161 = scalar_select %p160, %s157, 1
        %s162 = smul.addr %s159, 2
        %s163 = sadd.s32 %s161, %s162
        %s164 = smul.addr %s163, 4
        %s165 = scalar_lea.vmem %s0, %s164
        %s166 = smul.u32 32, %s16
        %s167 = smul.u32 2, %s17
      $region28: #{_forward_nchw.15} parent=23 // pred_fallthru
        _
    $region24: #{_forward_nchw.15} parent=5 // pred_fallthru
      _
    %p168 = scmp.le.s32.totalorder 1, %s9
    %p169 = scmp.lt.s32.totalorder %s9, 3
    %p170 = pnand %p168, %p169
    %p171 = pneg %p170
    // Predicated region
    $region29: #{_forward_nchw.15} parent=5 // pred_check
      _
    $region30: #{_forward_nchw.15} parent=5 // pred_check_branch
      %173 = sbr.rel (%p170) target = $region32
    $region31: #{_forward_nchw.15} parent=5 // pred_region
      %s174 = ssub.s32 %s9, 1
      %s175 = smul.u32 32, %s18
      %s176 = smul.u32 2, %s19
      %p177 = scmp.lt.s32.totalorder %s175, 63
      %s178 = scalar_select %p177, %s175, 63
      %p179 = scmp.lt.s32.totalorder %s176, 1
      %s180 = scalar_select %p179, %s176, 1
      %s181 = smul.addr %s178, 2
      %s182 = sadd.s32 %s180, %s181
      %s183 = smul.addr %s182, 4
      %s184 = scalar_lea.vmem %s0, %s183
      %p185 = pneg %p49
      %p186 = pneg %p46
      %s187 = smul.u32 32, %s19
      %p188 = scmp.lt.s32.totalorder %s187, 31
      %s189 = scalar_select %p188, %s187, 31
      %s190 = smul.addr %s189, 4
      %s191 = scalar_lea.vmem %s1, %s190
      %p192 = pneg %p75
      %p193 = pneg %p72
      %p194 = pneg %p96
      %p195 = pneg %p93
      %p196 = pneg %p122
      %p197 = pneg %p119
      %s198 = smul.u32 32, %s18
      %p199 = scmp.lt.s32.totalorder %s198, 63
      %s200 = scalar_select %p199, %s198, 63
      %s201 = smul.addr %s200, 8
      %s202 = scalar_lea.vmem %s3, %s201
      %s203 = smul.u32 32, %s18
      %s204 = smul.u32 2, %s19
      %p205 = scmp.lt.s32.totalorder %s203, 63
      %s206 = scalar_select %p205, %s203, 63
      %p207 = scmp.lt.s32.totalorder %s204, 1
      %s208 = scalar_select %p207, %s204, 1
      %s209 = smul.addr %s206, 2
      %s210 = sadd.s32 %s208, %s209
      %s211 = smul.addr %s210, 4
      %s212 = scalar_lea.vmem %s0, %s211
      %s213 = smul.u32 32, %s18
      %s214 = smul.u32 2, %s19
      %s215 = smul.u32 32, %s19
      %p216 = scmp.lt.s32.totalorder %s215, 31
      %s217 = scalar_select %p216, %s215, 31
      %s218 = smul.addr %s217, 4
      %s219 = scalar_lea.vmem %s1, %s218
      %s220 = smul.u32 32, %s19
      %s221 = smul.u32 32, %s18
      %p222 = scmp.lt.s32.totalorder %s221, 63
      %s223 = scalar_select %p222, %s221, 63
      %s224 = smul.addr %s223, 8
      %s225 = scalar_lea.vmem %s3, %s224
      %s226 = smul.u32 32, %s18
      %p227 = scmp.eq.s32.totalorder %s19, 0
      // Predicated region
      $region33: #{_forward_nchw.15} parent=31 // pred_check
        %p228 = pneg %p227
      $region34: #{_forward_nchw.15} parent=31 // pred_check_branch
        %230 = sbr.rel (%p228) target = $region36
      $region35: #{_forward_nchw.15} parent=31 // pred_region
        %231 = vst [vmem:[#allocation2] sm:$0xff] 0.0
        %232 = vst [vmem:[#allocation2 + $0x8] sm:$0xff] 0.0
        %233 = vst [vmem:[#allocation2 + $0x10] sm:$0xff] 0.0
        %234 = vst [vmem:[#allocation2 + $0x18] sm:$0xff] 0.0
        %235 = vst [vmem:[#allocation2 + $0x20] sm:$0xff] 0.0
        %236 = vst [vmem:[#allocation2 + $0x28] sm:$0xff] 0.0
        %237 = vst [vmem:[#allocation2 + $0x30] sm:$0xff] 0.0
        %238 = vst [vmem:[#allocation2 + $0x38] sm:$0xff] 0.0
        %239 = vst [vmem:[#allocation2 + $0x40] sm:$0xff] 0.0
        %240 = vst [vmem:[#allocation2 + $0x48] sm:$0xff] 0.0
        %241 = vst [vmem:[#allocation2 + $0x50] sm:$0xff] 0.0
        %242 = vst [vmem:[#allocation2 + $0x58] sm:$0xff] 0.0
        %243 = vst [vmem:[#allocation2 + $0x60] sm:$0xff] 0.0
        %244 = vst [vmem:[#allocation2 + $0x68] sm:$0xff] 0.0
        %245 = vst [vmem:[#allocation2 + $0x70] sm:$0xff] 0.0
        %246 = vst [vmem:[#allocation2 + $0x78] sm:$0xff] 0.0
        %247 = vst [vmem:[#allocation2 + $0x80] sm:$0xff] 0.0
        %248 = vst [vmem:[#allocation2 + $0x88] sm:$0xff] 0.0
        %249 = vst [vmem:[#allocation2 + $0x90] sm:$0xff] 0.0
        %250 = vst [vmem:[#allocation2 + $0x98] sm:$0xff] 0.0
        %251 = vst [vmem:[#allocation2 + $0xa0] sm:$0xff] 0.0
        %252 = vst [vmem:[#allocation2 + $0xa8] sm:$0xff] 0.0
        %253 = vst [vmem:[#allocation2 + $0xb0] sm:$0xff] 0.0
        %254 = vst [vmem:[#allocation2 + $0xb8] sm:$0xff] 0.0
        %255 = vst [vmem:[#allocation2 + $0xc0] sm:$0xff] 0.0
        %256 = vst [vmem:[#allocation2 + $0xc8] sm:$0xff] 0.0
        %257 = vst [vmem:[#allocation2 + $0xd0] sm:$0xff] 0.0
        %258 = vst [vmem:[#allocation2 + $0xd8] sm:$0xff] 0.0
        %259 = vst [vmem:[#allocation2 + $0xe0] sm:$0xff] 0.0
        %260 = vst [vmem:[#allocation2 + $0xe8] sm:$0xff] 0.0
        %261 = vst [vmem:[#allocation2 + $0xf0] sm:$0xff] 0.0
        %262 = vst [vmem:[#allocation2 + $0xf8] sm:$0xff] 0.0
      $region36: #{_forward_nchw.15} parent=31 // pred_fallthru
        _
      %v263 = vld [vmem:[#allocation2] sm:$0xff]
      %v264 = vld [vmem:[#allocation2 + $0x8] sm:$0xff]
      %v265 = vld [vmem:[#allocation2 + $0x10] sm:$0xff]
      %v266 = vld [vmem:[#allocation2 + $0x18] sm:$0xff]
      %v267 = vld [vmem:[#allocation2 + $0x20] sm:$0xff]
      %v268 = vld [vmem:[#allocation2 + $0x28] sm:$0xff]
      %v269 = vld [vmem:[#allocation2 + $0x30] sm:$0xff]
      %v270 = vld [vmem:[#allocation2 + $0x38] sm:$0xff]
      %v271 = vld [vmem:[#allocation2 + $0x40] sm:$0xff]
      %v272 = vld [vmem:[#allocation2 + $0x48] sm:$0xff]
      %v273 = vld [vmem:[#allocation2 + $0x50] sm:$0xff]
      %v274 = vld [vmem:[#allocation2 + $0x58] sm:$0xff]
      %v275 = vld [vmem:[#allocation2 + $0x60] sm:$0xff]
      %v276 = vld [vmem:[#allocation2 + $0x68] sm:$0xff]
      %v277 = vld [vmem:[#allocation2 + $0x70] sm:$0xff]
      %v278 = vld [vmem:[#allocation2 + $0x78] sm:$0xff]
      %v279 = vld [vmem:[#allocation2 + $0x80] sm:$0xff]
      %v280 = vld [vmem:[#allocation2 + $0x88] sm:$0xff]
      %v281 = vld [vmem:[#allocation2 + $0x90] sm:$0xff]
      %v282 = vld [vmem:[#allocation2 + $0x98] sm:$0xff]
      %v283 = vld [vmem:[#allocation2 + $0xa0] sm:$0xff]
      %v284 = vld [vmem:[#allocation2 + $0xa8] sm:$0xff]
      %v285 = vld [vmem:[#allocation2 + $0xb0] sm:$0xff]
      %v286 = vld [vmem:[#allocation2 + $0xb8] sm:$0xff]
      %v287 = vld [vmem:[#allocation2 + $0xc0] sm:$0xff]
      %v288 = vld [vmem:[#allocation2 + $0xc8] sm:$0xff]
      %v289 = vld [vmem:[#allocation2 + $0xd0] sm:$0xff]
      %v290 = vld [vmem:[#allocation2 + $0xd8] sm:$0xff]
      %v291 = vld [vmem:[#allocation2 + $0xe0] sm:$0xff]
      %v292 = vld [vmem:[#allocation2 + $0xe8] sm:$0xff]
      %v293 = vld [vmem:[#allocation2 + $0xf0] sm:$0xff]
      %v294 = vld [vmem:[#allocation2 + $0xf8] sm:$0xff]
      %v295 = vld [vmem:[%s212] sm:$0xff]
      %v296 = vld [vmem:[%s212 + $0x8] sm:$0xff]
      %v297 = vld [vmem:[%s212 + $0x10] sm:$0xff]
      %v298 = vld [vmem:[%s212 + $0x18] sm:$0xff]
      %v299 = vld [vmem:[%s212 + $0x20] sm:$0xff]
      %v300 = vld [vmem:[%s212 + $0x28] sm:$0xff]
      %v301 = vld [vmem:[%s212 + $0x30] sm:$0xff]
      %v302 = vld [vmem:[%s212 + $0x38] sm:$0xff]
      %v303 = vld [vmem:[%s212 + $0x40] sm:$0xff]
      %v304 = vld [vmem:[%s212 + $0x48] sm:$0xff]
      %v305 = vld [vmem:[%s212 + $0x50] sm:$0xff]
      %v306 = vld [vmem:[%s212 + $0x58] sm:$0xff]
      %v307 = vld [vmem:[%s212 + $0x60] sm:$0xff]
      %v308 = vld [vmem:[%s212 + $0x68] sm:$0xff]
      %v309 = vld [vmem:[%s212 + $0x70] sm:$0xff]
      %v310 = vld [vmem:[%s212 + $0x78] sm:$0xff]
      %v311 = vld [vmem:[%s212 + $0x80] sm:$0xff]
      %v312 = vld [vmem:[%s212 + $0x88] sm:$0xff]
      %v313 = vld [vmem:[%s212 + $0x90] sm:$0xff]
      %v314 = vld [vmem:[%s212 + $0x98] sm:$0xff]
      %v315 = vld [vmem:[%s212 + $0xa0] sm:$0xff]
      %v316 = vld [vmem:[%s212 + $0xa8] sm:$0xff]
      %v317 = vld [vmem:[%s212 + $0xb0] sm:$0xff]
      %v318 = vld [vmem:[%s212 + $0xb8] sm:$0xff]
      %v319 = vld [vmem:[%s212 + $0xc0] sm:$0xff]
      %v320 = vld [vmem:[%s212 + $0xc8] sm:$0xff]
      %v321 = vld [vmem:[%s212 + $0xd0] sm:$0xff]
      %v322 = vld [vmem:[%s212 + $0xd8] sm:$0xff]
      %v323 = vld [vmem:[%s212 + $0xe0] sm:$0xff]
      %v324 = vld [vmem:[%s212 + $0xe8] sm:$0xff]
      %v325 = vld [vmem:[%s212 + $0xf0] sm:$0xff]
      %v326 = vld [vmem:[%s212 + $0xf8] sm:$0xff]
      %v327 = vld [vmem:[%s219] sm:$0xf]
      %v328 = vld [vmem:[%s219 + $0x4] sm:$0xf]
      %v329 = vld [vmem:[%s219 + $0x8] sm:$0xf]
      %v330 = vld [vmem:[%s219 + $0xc] sm:$0xf]
      %v331 = vld [vmem:[%s219 + $0x10] sm:$0xf]
      %v332 = vld [vmem:[%s219 + $0x14] sm:$0xf]
      %v333 = vld [vmem:[%s219 + $0x18] sm:$0xf]
      %v334 = vld [vmem:[%s219 + $0x1c] sm:$0xf]
      %v335 = vld [vmem:[%s219 + $0x20] sm:$0xf]
      %v336 = vld [vmem:[%s219 + $0x24] sm:$0xf]
      %v337 = vld [vmem:[%s219 + $0x28] sm:$0xf]
      %v338 = vld [vmem:[%s219 + $0x2c] sm:$0xf]
      %v339 = vld [vmem:[%s219 + $0x30] sm:$0xf]
      %v340 = vld [vmem:[%s219 + $0x34] sm:$0xf]
      %v341 = vld [vmem:[%s219 + $0x38] sm:$0xf]
      %v342 = vld [vmem:[%s219 + $0x3c] sm:$0xf]
      %v343 = vld [vmem:[%s219 + $0x40] sm:$0xf]
      %v344 = vld [vmem:[%s219 + $0x44] sm:$0xf]
      %v345 = vld [vmem:[%s219 + $0x48] sm:$0xf]
      %v346 = vld [vmem:[%s219 + $0x4c] sm:$0xf]
      %v347 = vld [vmem:[%s219 + $0x50] sm:$0xf]
      %v348 = vld [vmem:[%s219 + $0x54] sm:$0xf]
      %v349 = vld [vmem:[%s219 + $0x58] sm:$0xf]
      %v350 = vld [vmem:[%s219 + $0x5c] sm:$0xf]
      %v351 = vld [vmem:[%s219 + $0x60] sm:$0xf]
      %v352 = vld [vmem:[%s219 + $0x64] sm:$0xf]
      %v353 = vld [vmem:[%s219 + $0x68] sm:$0xf]
      %v354 = vld [vmem:[%s219 + $0x6c] sm:$0xf]
      %v355 = vld [vmem:[%s219 + $0x70] sm:$0xf]
      %v356 = vld [vmem:[%s219 + $0x74] sm:$0xf]
      %v357 = vld [vmem:[%s219 + $0x78] sm:$0xf]
      %v358 = vld [vmem:[%s219 + $0x7c] sm:$0xf]
      %v391 = vunpack.c.l.b16 %v295
      %v392 = vunpack.c.h.b16 %v295
      %v393 = vunpack.c.l.b16 %v296
      %v394 = vunpack.c.h.b16 %v296
      %v395 = vunpack.c.l.b16 %v297
      %v396 = vunpack.c.h.b16 %v297
      %v397 = vunpack.c.l.b16 %v298
      %v398 = vunpack.c.h.b16 %v298
      %v399 = vunpack.c.l.b16 %v299
      %v400 = vunpack.c.h.b16 %v299
      %v401 = vunpack.c.l.b16 %v300
      %v402 = vunpack.c.h.b16 %v300
      %v403 = vunpack.c.l.b16 %v301
      %v404 = vunpack.c.h.b16 %v301
      %v405 = vunpack.c.l.b16 %v302
      %v406 = vunpack.c.h.b16 %v302
      %v407 = vunpack.c.l.b16 %v303
      %v408 = vunpack.c.h.b16 %v303
      %v409 = vunpack.c.l.b16 %v304
      %v410 = vunpack.c.h.b16 %v304
      %v411 = vunpack.c.l.b16 %v305
      %v412 = vunpack.c.h.b16 %v305
      %v413 = vunpack.c.l.b16 %v306
      %v414 = vunpack.c.h.b16 %v306
      %v415 = vunpack.c.l.b16 %v307
      %v416 = vunpack.c.h.b16 %v307
      %v417 = vunpack.c.l.b16 %v308
      %v418 = vunpack.c.h.b16 %v308
      %v419 = vunpack.c.l.b16 %v309
      %v420 = vunpack.c.h.b16 %v309
      %v421 = vunpack.c.l.b16 %v310
      %v422 = vunpack.c.h.b16 %v310
      %v423 = vunpack.c.l.b16 %v311
      %v424 = vunpack.c.h.b16 %v311
      %v425 = vunpack.c.l.b16 %v312
      %v426 = vunpack.c.h.b16 %v312
      %v427 = vunpack.c.l.b16 %v313
      %v428 = vunpack.c.h.b16 %v313
      %v429 = vunpack.c.l.b16 %v314
      %v430 = vunpack.c.h.b16 %v314
      %v431 = vunpack.c.l.b16 %v315
      %v432 = vunpack.c.h.b16 %v315
      %v433 = vunpack.c.l.b16 %v316
      %v434 = vunpack.c.h.b16 %v316
      %v435 = vunpack.c.l.b16 %v317
      %v436 = vunpack.c.h.b16 %v317
      %v437 = vunpack.c.l.b16 %v318
      %v438 = vunpack.c.h.b16 %v318
      %v439 = vunpack.c.l.b16 %v319
      %v440 = vunpack.c.h.b16 %v319
      %v441 = vunpack.c.l.b16 %v320
      %v442 = vunpack.c.h.b16 %v320
      %v443 = vunpack.c.l.b16 %v321
      %v444 = vunpack.c.h.b16 %v321
      %v445 = vunpack.c.l.b16 %v322
      %v446 = vunpack.c.h.b16 %v322
      %v447 = vunpack.c.l.b16 %v323
      %v448 = vunpack.c.h.b16 %v323
      %v449 = vunpack.c.l.b16 %v324
      %v450 = vunpack.c.h.b16 %v324
      %v451 = vunpack.c.l.b16 %v325
      %v452 = vunpack.c.h.b16 %v325
      %v453 = vunpack.c.l.b16 %v326
      %v454 = vunpack.c.h.b16 %v326
      %v455 = vpack.c.b16 %v393, %v391
      %v456 = vpack.c.b16 %v394, %v392
      %v457 = vpack.c.b16 %v397, %v395
      %v458 = vpack.c.b16 %v398, %v396
      %v459 = vpack.c.b16 %v401, %v399
      %v460 = vpack.c.b16 %v402, %v400
      %v461 = vpack.c.b16 %v405, %v403
      %v462 = vpack.c.b16 %v406, %v404
      %v463 = vpack.c.b16 %v409, %v407
      %v464 = vpack.c.b16 %v410, %v408
      %v465 = vpack.c.b16 %v413, %v411
      %v466 = vpack.c.b16 %v414, %v412
      %v467 = vpack.c.b16 %v417, %v415
      %v468 = vpack.c.b16 %v418, %v416
      %v469 = vpack.c.b16 %v421, %v419
      %v470 = vpack.c.b16 %v422, %v420
      %v471 = vpack.c.b16 %v425, %v423
      %v472 = vpack.c.b16 %v426, %v424
      %v473 = vpack.c.b16 %v429, %v427
      %v474 = vpack.c.b16 %v430, %v428
      %v475 = vpack.c.b16 %v433, %v431
      %v476 = vpack.c.b16 %v434, %v432
      %v477 = vpack.c.b16 %v437, %v435
      %v478 = vpack.c.b16 %v438, %v436
      %v479 = vpack.c.b16 %v441, %v439
      %v480 = vpack.c.b16 %v442, %v440
      %v481 = vpack.c.b16 %v445, %v443
      %v482 = vpack.c.b16 %v446, %v444
      %v483 = vpack.c.b16 %v449, %v447
      %v484 = vpack.c.b16 %v450, %v448
      %v485 = vpack.c.b16 %v453, %v451
      %v486 = vpack.c.b16 %v454, %v452
      %v551 = vunpack.c.l.b16 %v327
      %v552 = vunpack.c.l.b16 %v328
      %v553 = vunpack.c.l.b16 %v329
      %v554 = vunpack.c.l.b16 %v330
      %v555 = vunpack.c.l.b16 %v331
      %v556 = vunpack.c.l.b16 %v332
      %v557 = vunpack.c.l.b16 %v333
      %v558 = vunpack.c.l.b16 %v334
      %v559 = vunpack.c.l.b16 %v335
      %v560 = vunpack.c.l.b16 %v336
      %v561 = vunpack.c.l.b16 %v337
      %v562 = vunpack.c.l.b16 %v338
      %v563 = vunpack.c.l.b16 %v339
      %v564 = vunpack.c.l.b16 %v340
      %v565 = vunpack.c.l.b16 %v341
      %v566 = vunpack.c.l.b16 %v342
      %v567 = vunpack.c.l.b16 %v343
      %v568 = vunpack.c.l.b16 %v344
      %v569 = vunpack.c.l.b16 %v345
      %v570 = vunpack.c.l.b16 %v346
      %v571 = vunpack.c.l.b16 %v347
      %v572 = vunpack.c.l.b16 %v348
      %v573 = vunpack.c.l.b16 %v349
      %v574 = vunpack.c.l.b16 %v350
      %v575 = vunpack.c.l.b16 %v351
      %v576 = vunpack.c.l.b16 %v352
      %v577 = vunpack.c.l.b16 %v353
      %v578 = vunpack.c.l.b16 %v354
      %v579 = vunpack.c.l.b16 %v355
      %v580 = vunpack.c.l.b16 %v356
      %v581 = vunpack.c.l.b16 %v357
      %v582 = vunpack.c.l.b16 %v358
      %v583 = vpack.c.b16 %v552, %v551
      %v584 = vpack.c.b16 %v554, %v553
      %v585 = vpack.c.b16 %v556, %v555
      %v586 = vpack.c.b16 %v558, %v557
      %v587 = vpack.c.b16 %v560, %v559
      %v588 = vpack.c.b16 %v562, %v561
      %v589 = vpack.c.b16 %v564, %v563
      %v590 = vpack.c.b16 %v566, %v565
      %v591 = vpack.c.b16 %v568, %v567
      %v592 = vpack.c.b16 %v570, %v569
      %v593 = vpack.c.b16 %v572, %v571
      %v594 = vpack.c.b16 %v574, %v573
      %v595 = vpack.c.b16 %v576, %v575
      %v596 = vpack.c.b16 %v578, %v577
      %v597 = vpack.c.b16 %v580, %v579
      %v598 = vpack.c.b16 %v582, %v581
      %615 = vmatpush.bf16.msra.mxu0 %v590
      %616 = vmatpush.bf16.msra.mxu0 %v589
      %617 = vmatpush.bf16.msra.mxu0 %v588
      %618 = vmatpush.bf16.msra.mxu0 %v587
      %619 = vmatpush.bf16.msra.mxu0 %v586
      %620 = vmatpush.bf16.msra.mxu0 %v585
      %621 = vmatpush.bf16.msra.mxu0 %v584
      %622 = vmatpush.bf16.msra.mxu0 %v583
      %623 = vmatmul.bf16.gmra.mxu0 %v455
      %v624 = vpop.f32.mrf.mxu0
      %v625 = vadd.f32 0.0, %v624
      %v626 = vpop.f32.mrf.mxu0
      %v627 = vadd.f32 0.0, %v626
      %628 = vmatmul.bf16.gmra.mxu0 %v457
      %v629 = vpop.f32.mrf.mxu0
      %v630 = vadd.f32 0.0, %v629
      %v631 = vpop.f32.mrf.mxu0
      %v632 = vadd.f32 0.0, %v631
      %633 = vmatmul.bf16.gmra.mxu0 %v459
      %v634 = vpop.f32.mrf.mxu0
      %v635 = vadd.f32 0.0, %v634
      %v636 = vpop.f32.mrf.mxu0
      %v637 = vadd.f32 0.0, %v636
      %638 = vmatmul.bf16.gmra.mxu0 %v461
      %v639 = vpop.f32.mrf.mxu0
      %v640 = vadd.f32 0.0, %v639
      %v641 = vpop.f32.mrf.mxu0
      %v642 = vadd.f32 0.0, %v641
      %643 = vmatmul.bf16.gmra.mxu0 %v463
      %v644 = vpop.f32.mrf.mxu0
      %v645 = vadd.f32 0.0, %v644
      %v646 = vpop.f32.mrf.mxu0
      %v647 = vadd.f32 0.0, %v646
      %648 = vmatmul.bf16.gmra.mxu0 %v465
      %v649 = vpop.f32.mrf.mxu0
      %v650 = vadd.f32 0.0, %v649
      %v651 = vpop.f32.mrf.mxu0
      %v652 = vadd.f32 0.0, %v651
      %653 = vmatmul.bf16.gmra.mxu0 %v467
      %v654 = vpop.f32.mrf.mxu0
      %v655 = vadd.f32 0.0, %v654
      %v656 = vpop.f32.mrf.mxu0
      %v657 = vadd.f32 0.0, %v656
      %658 = vmatmul.bf16.gmra.mxu0 %v469
      %v659 = vpop.f32.mrf.mxu0
      %v660 = vadd.f32 0.0, %v659
      %v661 = vpop.f32.mrf.mxu0
      %v662 = vadd.f32 0.0, %v661
      %663 = vmatmul.bf16.gmra.mxu0 %v471
      %v664 = vpop.f32.mrf.mxu0
      %v665 = vadd.f32 0.0, %v664
      %v666 = vpop.f32.mrf.mxu0
      %v667 = vadd.f32 0.0, %v666
      %668 = vmatmul.bf16.gmra.mxu0 %v473
      %v669 = vpop.f32.mrf.mxu0
      %v670 = vadd.f32 0.0, %v669
      %v671 = vpop.f32.mrf.mxu0
      %v672 = vadd.f32 0.0, %v671
      %673 = vmatmul.bf16.gmra.mxu0 %v475
      %v674 = vpop.f32.mrf.mxu0
      %v675 = vadd.f32 0.0, %v674
      %v676 = vpop.f32.mrf.mxu0
      %v677 = vadd.f32 0.0, %v676
      %678 = vmatmul.bf16.gmra.mxu0 %v477
      %v679 = vpop.f32.mrf.mxu0
      %v680 = vadd.f32 0.0, %v679
      %v681 = vpop.f32.mrf.mxu0
      %v682 = vadd.f32 0.0, %v681
      %683 = vmatmul.bf16.gmra.mxu0 %v479
      %v684 = vpop.f32.mrf.mxu0
      %v685 = vadd.f32 0.0, %v684
      %v686 = vpop.f32.mrf.mxu0
      %v687 = vadd.f32 0.0, %v686
      %688 = vmatmul.bf16.gmra.mxu0 %v481
      %v689 = vpop.f32.mrf.mxu0
      %v690 = vadd.f32 0.0, %v689
      %v691 = vpop.f32.mrf.mxu0
      %v692 = vadd.f32 0.0, %v691
      %693 = vmatmul.bf16.gmra.mxu0 %v483
      %v694 = vpop.f32.mrf.mxu0
      %v695 = vadd.f32 0.0, %v694
      %v696 = vpop.f32.mrf.mxu0
      %v697 = vadd.f32 0.0, %v696
      %698 = vmatmul.bf16.gmra.mxu0 %v485
      %v699 = vpop.f32.mrf.mxu0
      %v700 = vadd.f32 0.0, %v699
      %v701 = vpop.f32.mrf.mxu0
      %v702 = vadd.f32 0.0, %v701
      %703 = vdwg.mxu0
      %704 = vmatpush.bf16.msra.mxu0 %v598
      %705 = vmatpush.bf16.msra.mxu0 %v597
      %706 = vmatpush.bf16.msra.mxu0 %v596
      %707 = vmatpush.bf16.msra.mxu0 %v595
      %708 = vmatpush.bf16.msra.mxu0 %v594
      %709 = vmatpush.bf16.msra.mxu0 %v593
      %710 = vmatpush.bf16.msra.mxu0 %v592
      %711 = vmatpush.bf16.msra.mxu0 %v591
      %712 = vmatmul.bf16.gmra.mxu0 %v456
      %v713 = vpop.f32.mrf.mxu0
      %v714 = vadd.f32 %v625, %v713
      %v715 = vpop.f32.mrf.mxu0
      %v716 = vadd.f32 %v627, %v715
      %717 = vmatmul.bf16.gmra.mxu0 %v458
      %v718 = vpop.f32.mrf.mxu0
      %v719 = vadd.f32 %v630, %v718
      %v720 = vpop.f32.mrf.mxu0
      %v721 = vadd.f32 %v632, %v720
      %722 = vmatmul.bf16.gmra.mxu0 %v460
      %v723 = vpop.f32.mrf.mxu0
      %v724 = vadd.f32 %v635, %v723
      %v725 = vpop.f32.mrf.mxu0
      %v726 = vadd.f32 %v637, %v725
      %727 = vmatmul.bf16.gmra.mxu0 %v462
      %v728 = vpop.f32.mrf.mxu0
      %v729 = vadd.f32 %v640, %v728
      %v730 = vpop.f32.mrf.mxu0
      %v731 = vadd.f32 %v642, %v730
      %732 = vmatmul.bf16.gmra.mxu0 %v464
      %v733 = vpop.f32.mrf.mxu0
      %v734 = vadd.f32 %v645, %v733
      %v735 = vpop.f32.mrf.mxu0
      %v736 = vadd.f32 %v647, %v735
      %737 = vmatmul.bf16.gmra.mxu0 %v466
      %v738 = vpop.f32.mrf.mxu0
      %v739 = vadd.f32 %v650, %v738
      %v740 = vpop.f32.mrf.mxu0
      %v741 = vadd.f32 %v652, %v740
      %742 = vmatmul.bf16.gmra.mxu0 %v468
      %v743 = vpop.f32.mrf.mxu0
      %v744 = vadd.f32 %v655, %v743
      %v745 = vpop.f32.mrf.mxu0
      %v746 = vadd.f32 %v657, %v745
      %747 = vmatmul.bf16.gmra.mxu0 %v470
      %v748 = vpop.f32.mrf.mxu0
      %v749 = vadd.f32 %v660, %v748
      %v750 = vpop.f32.mrf.mxu0
      %v751 = vadd.f32 %v662, %v750
      %752 = vmatmul.bf16.gmra.mxu0 %v472
      %v753 = vpop.f32.mrf.mxu0
      %v754 = vadd.f32 %v665, %v753
      %v755 = vpop.f32.mrf.mxu0
      %v756 = vadd.f32 %v667, %v755
      %757 = vmatmul.bf16.gmra.mxu0 %v474
      %v758 = vpop.f32.mrf.mxu0
      %v759 = vadd.f32 %v670, %v758
      %v760 = vpop.f32.mrf.mxu0
      %v761 = vadd.f32 %v672, %v760
      %762 = vmatmul.bf16.gmra.mxu0 %v476
      %v763 = vpop.f32.mrf.mxu0
      %v764 = vadd.f32 %v675, %v763
      %v765 = vpop.f32.mrf.mxu0
      %v766 = vadd.f32 %v677, %v765
      %767 = vmatmul.bf16.gmra.mxu0 %v478
      %v768 = vpop.f32.mrf.mxu0
      %v769 = vadd.f32 %v680, %v768
      %v770 = vpop.f32.mrf.mxu0
      %v771 = vadd.f32 %v682, %v770
      %772 = vmatmul.bf16.gmra.mxu0 %v480
      %v773 = vpop.f32.mrf.mxu0
      %v774 = vadd.f32 %v685, %v773
      %v775 = vpop.f32.mrf.mxu0
      %v776 = vadd.f32 %v687, %v775
      %777 = vmatmul.bf16.gmra.mxu0 %v482
      %v778 = vpop.f32.mrf.mxu0
      %v779 = vadd.f32 %v690, %v778
      %v780 = vpop.f32.mrf.mxu0
      %v781 = vadd.f32 %v692, %v780
      %782 = vmatmul.bf16.gmra.mxu0 %v484
      %v783 = vpop.f32.mrf.mxu0
      %v784 = vadd.f32 %v695, %v783
      %v785 = vpop.f32.mrf.mxu0
      %v786 = vadd.f32 %v697, %v785
      %787 = vmatmul.bf16.gmra.mxu0 %v486
      %v788 = vpop.f32.mrf.mxu0
      %v789 = vadd.f32 %v700, %v788
      %v790 = vpop.f32.mrf.mxu0
      %v791 = vadd.f32 %v702, %v790
      %792 = vdwg.mxu0
      %v793 = vadd.f32 %v263, %v714
      %v794 = vadd.f32 %v264, %v716
      %v795 = vadd.f32 %v265, %v719
      %v796 = vadd.f32 %v266, %v721
      %v797 = vadd.f32 %v267, %v724
      %v798 = vadd.f32 %v268, %v726
      %v799 = vadd.f32 %v269, %v729
      %v800 = vadd.f32 %v270, %v731
      %v801 = vadd.f32 %v271, %v734
      %v802 = vadd.f32 %v272, %v736
      %v803 = vadd.f32 %v273, %v739
      %v804 = vadd.f32 %v274, %v741
      %v805 = vadd.f32 %v275, %v744
      %v806 = vadd.f32 %v276, %v746
      %v807 = vadd.f32 %v277, %v749
      %v808 = vadd.f32 %v278, %v751
      %v809 = vadd.f32 %v279, %v754
      %v810 = vadd.f32 %v280, %v756
      %v811 = vadd.f32 %v281, %v759
      %v812 = vadd.f32 %v282, %v761
      %v813 = vadd.f32 %v283, %v764
      %v814 = vadd.f32 %v284, %v766
      %v815 = vadd.f32 %v285, %v769
      %v816 = vadd.f32 %v286, %v771
      %v817 = vadd.f32 %v287, %v774
      %v818 = vadd.f32 %v288, %v776
      %v819 = vadd.f32 %v289, %v779
      %v820 = vadd.f32 %v290, %v781
      %v821 = vadd.f32 %v291, %v784
      %v822 = vadd.f32 %v292, %v786
      %v823 = vadd.f32 %v293, %v789
      %v824 = vadd.f32 %v294, %v791
      %825 = vst [vmem:[#allocation2] sm:$0xff] %v793
      %826 = vst [vmem:[#allocation2 + $0x8] sm:$0xff] %v794
      %827 = vst [vmem:[#allocation2 + $0x10] sm:$0xff] %v795
      %828 = vst [vmem:[#allocation2 + $0x18] sm:$0xff] %v796
      %829 = vst [vmem:[#allocation2 + $0x20] sm:$0xff] %v797
      %830 = vst [vmem:[#allocation2 + $0x28] sm:$0xff] %v798
      %831 = vst [vmem:[#allocation2 + $0x30] sm:$0xff] %v799
      %832 = vst [vmem:[#allocation2 + $0x38] sm:$0xff] %v800
      %833 = vst [vmem:[#allocation2 + $0x40] sm:$0xff] %v801
      %834 = vst [vmem:[#allocation2 + $0x48] sm:$0xff] %v802
      %835 = vst [vmem:[#allocation2 + $0x50] sm:$0xff] %v803
      %836 = vst [vmem:[#allocation2 + $0x58] sm:$0xff] %v804
      %837 = vst [vmem:[#allocation2 + $0x60] sm:$0xff] %v805
      %838 = vst [vmem:[#allocation2 + $0x68] sm:$0xff] %v806
      %839 = vst [vmem:[#allocation2 + $0x70] sm:$0xff] %v807
      %840 = vst [vmem:[#allocation2 + $0x78] sm:$0xff] %v808
      %841 = vst [vmem:[#allocation2 + $0x80] sm:$0xff] %v809
      %842 = vst [vmem:[#allocation2 + $0x88] sm:$0xff] %v810
      %843 = vst [vmem:[#allocation2 + $0x90] sm:$0xff] %v811
      %844 = vst [vmem:[#allocation2 + $0x98] sm:$0xff] %v812
      %845 = vst [vmem:[#allocation2 + $0xa0] sm:$0xff] %v813
      %846 = vst [vmem:[#allocation2 + $0xa8] sm:$0xff] %v814
      %847 = vst [vmem:[#allocation2 + $0xb0] sm:$0xff] %v815
      %848 = vst [vmem:[#allocation2 + $0xb8] sm:$0xff] %v816
      %849 = vst [vmem:[#allocation2 + $0xc0] sm:$0xff] %v817
      %850 = vst [vmem:[#allocation2 + $0xc8] sm:$0xff] %v818
      %851 = vst [vmem:[#allocation2 + $0xd0] sm:$0xff] %v819
      %852 = vst [vmem:[#allocation2 + $0xd8] sm:$0xff] %v820
      %853 = vst [vmem:[#allocation2 + $0xe0] sm:$0xff] %v821
      %854 = vst [vmem:[#allocation2 + $0xe8] sm:$0xff] %v822
      %855 = vst [vmem:[#allocation2 + $0xf0] sm:$0xff] %v823
      %856 = vst [vmem:[#allocation2 + $0xf8] sm:$0xff] %v824
      // Predicated region
      $region37: #{_forward_nchw.15} parent=31 // pred_check
        %p857 = pneg %p227
      $region38: #{_forward_nchw.15} parent=31 // pred_check_branch
        %859 = sbr.rel (%p857) target = $region40
      $region39: #{_forward_nchw.15} parent=31 // pred_region
        %v860 = vld [vmem:[#allocation2] sm:$0xff]
        %v861 = vld [vmem:[#allocation2 + $0x8] sm:$0xff]
        %v862 = vld [vmem:[#allocation2 + $0x10] sm:$0xff]
        %v863 = vld [vmem:[#allocation2 + $0x18] sm:$0xff]
        %v864 = vld [vmem:[#allocation2 + $0x20] sm:$0xff]
        %v865 = vld [vmem:[#allocation2 + $0x28] sm:$0xff]
        %v866 = vld [vmem:[#allocation2 + $0x30] sm:$0xff]
        %v867 = vld [vmem:[#allocation2 + $0x38] sm:$0xff]
        %v868 = vld [vmem:[#allocation2 + $0x40] sm:$0xff]
        %v869 = vld [vmem:[#allocation2 + $0x48] sm:$0xff]
        %v870 = vld [vmem:[#allocation2 + $0x50] sm:$0xff]
        %v871 = vld [vmem:[#allocation2 + $0x58] sm:$0xff]
        %v872 = vld [vmem:[#allocation2 + $0x60] sm:$0xff]
        %v873 = vld [vmem:[#allocation2 + $0x68] sm:$0xff]
        %v874 = vld [vmem:[#allocation2 + $0x70] sm:$0xff]
        %v875 = vld [vmem:[#allocation2 + $0x78] sm:$0xff]
        %v876 = vld [vmem:[#allocation2 + $0x80] sm:$0xff]
        %v877 = vld [vmem:[#allocation2 + $0x88] sm:$0xff]
        %v878 = vld [vmem:[#allocation2 + $0x90] sm:$0xff]
        %v879 = vld [vmem:[#allocation2 + $0x98] sm:$0xff]
        %v880 = vld [vmem:[#allocation2 + $0xa0] sm:$0xff]
        %v881 = vld [vmem:[#allocation2 + $0xa8] sm:$0xff]
        %v882 = vld [vmem:[#allocation2 + $0xb0] sm:$0xff]
        %v883 = vld [vmem:[#allocation2 + $0xb8] sm:$0xff]
        %v884 = vld [vmem:[#allocation2 + $0xc0] sm:$0xff]
        %v885 = vld [vmem:[#allocation2 + $0xc8] sm:$0xff]
        %v886 = vld [vmem:[#allocation2 + $0xd0] sm:$0xff]
        %v887 = vld [vmem:[#allocation2 + $0xd8] sm:$0xff]
        %v888 = vld [vmem:[#allocation2 + $0xe0] sm:$0xff]
        %v889 = vld [vmem:[#allocation2 + $0xe8] sm:$0xff]
        %v890 = vld [vmem:[#allocation2 + $0xf0] sm:$0xff]
        %v891 = vld [vmem:[#allocation2 + $0xf8] sm:$0xff]
        %v892 = vld [vmem:[%s2] sm:$0x1]
        %v894 = vperm.slane %v892, 0
        %v896 = vadd.f32 %v860, %v894
        %v897 = vadd.f32 %v861, %v894
        %v898 = vadd.f32 %v862, %v894
        %v899 = vadd.f32 %v863, %v894
        %v900 = vadd.f32 %v864, %v894
        %v901 = vadd.f32 %v865, %v894
        %v902 = vadd.f32 %v866, %v894
        %v903 = vadd.f32 %v867, %v894
        %v904 = vadd.f32 %v868, %v894
        %v905 = vadd.f32 %v869, %v894
        %v906 = vadd.f32 %v870, %v894
        %v907 = vadd.f32 %v871, %v894
        %v908 = vadd.f32 %v872, %v894
        %v909 = vadd.f32 %v873, %v894
        %v910 = vadd.f32 %v874, %v894
        %v911 = vadd.f32 %v875, %v894
        %v912 = vadd.f32 %v876, %v894
        %v913 = vadd.f32 %v877, %v894
        %v914 = vadd.f32 %v878, %v894
        %v915 = vadd.f32 %v879, %v894
        %v916 = vadd.f32 %v880, %v894
        %v917 = vadd.f32 %v881, %v894
        %v918 = vadd.f32 %v882, %v894
        %v919 = vadd.f32 %v883, %v894
        %v920 = vadd.f32 %v884, %v894
        %v921 = vadd.f32 %v885, %v894
        %v922 = vadd.f32 %v886, %v894
        %v923 = vadd.f32 %v887, %v894
        %v924 = vadd.f32 %v888, %v894
        %v925 = vadd.f32 %v889, %v894
        %v926 = vadd.f32 %v890, %v894
        %v927 = vadd.f32 %v891, %v894
        %928 = vst [vmem:[%s225] sm:$0xff] %v896
        %929 = vst [vmem:[%s225 + $0x8] sm:$0xff] %v897
        %930 = vst [vmem:[%s225 + $0x10] sm:$0xff] %v898
        %931 = vst [vmem:[%s225 + $0x18] sm:$0xff] %v899
        %932 = vst [vmem:[%s225 + $0x20] sm:$0xff] %v900
        %933 = vst [vmem:[%s225 + $0x28] sm:$0xff] %v901
        %934 = vst [vmem:[%s225 + $0x30] sm:$0xff] %v902
        %935 = vst [vmem:[%s225 + $0x38] sm:$0xff] %v903
        %936 = vst [vmem:[%s225 + $0x40] sm:$0xff] %v904
        %937 = vst [vmem:[%s225 + $0x48] sm:$0xff] %v905
        %938 = vst [vmem:[%s225 + $0x50] sm:$0xff] %v906
        %939 = vst [vmem:[%s225 + $0x58] sm:$0xff] %v907
        %940 = vst [vmem:[%s225 + $0x60] sm:$0xff] %v908
        %941 = vst [vmem:[%s225 + $0x68] sm:$0xff] %v909
        %942 = vst [vmem:[%s225 + $0x70] sm:$0xff] %v910
        %943 = vst [vmem:[%s225 + $0x78] sm:$0xff] %v911
        %944 = vst [vmem:[%s225 + $0x80] sm:$0xff] %v912
        %945 = vst [vmem:[%s225 + $0x88] sm:$0xff] %v913
        %946 = vst [vmem:[%s225 + $0x90] sm:$0xff] %v914
        %947 = vst [vmem:[%s225 + $0x98] sm:$0xff] %v915
        %948 = vst [vmem:[%s225 + $0xa0] sm:$0xff] %v916
        %949 = vst [vmem:[%s225 + $0xa8] sm:$0xff] %v917
        %950 = vst [vmem:[%s225 + $0xb0] sm:$0xff] %v918
        %951 = vst [vmem:[%s225 + $0xb8] sm:$0xff] %v919
        %952 = vst [vmem:[%s225 + $0xc0] sm:$0xff] %v920
        %953 = vst [vmem:[%s225 + $0xc8] sm:$0xff] %v921
        %954 = vst [vmem:[%s225 + $0xd0] sm:$0xff] %v922
        %955 = vst [vmem:[%s225 + $0xd8] sm:$0xff] %v923
        %956 = vst [vmem:[%s225 + $0xe0] sm:$0xff] %v924
        %957 = vst [vmem:[%s225 + $0xe8] sm:$0xff] %v925
        %958 = vst [vmem:[%s225 + $0xf0] sm:$0xff] %v926
        %959 = vst [vmem:[%s225 + $0xf8] sm:$0xff] %v927
      $region40: #{_forward_nchw.15} parent=31 // pred_fallthru
        _
      %s960 = smul.u32 32, %s18
      %p961 = scmp.lt.s32.totalorder %s960, 63
      %s962 = scalar_select %p961, %s960, 63
      %s963 = smul.addr %s962, 8
      %s964 = scalar_lea.vmem %s3, %s963
      // Predicated region
      $region41: #{_forward_nchw.15} parent=31 // pred_check
        %p965 = pneg %p119
      $region42: #{_forward_nchw.15} parent=31 // pred_check_branch
        %967 = sbr.rel (%p965) target = $region44
      $region43: #{_forward_nchw.15} parent=31 // pred_region
        %s968 = smul.u32 32, %s18
      $region44: #{_forward_nchw.15} parent=31 // pred_fallthru
        _
    $region32: #{_forward_nchw.15} parent=5 // pred_fallthru
      _
    %p969 = scmp.le.s32.totalorder 2, %s9
    // Predicated region
    $region45: #{_forward_nchw.15} parent=5 // pred_check
      %p970 = pneg %p969
    $region46: #{_forward_nchw.15} parent=5 // pred_check_branch
      %972 = sbr.rel (%p970) target = $region48
    $region47: #{_forward_nchw.15} parent=5 // pred_region
      %s973 = ssub.s32 %s9, 2
      // Predicated region
      $region49: #{_forward_nchw.15} parent=47 // pred_check
        %p974 = pneg %p125
      $region50: #{_forward_nchw.15} parent=47 // pred_check_branch
        %976 = sbr.rel (%p974) target = $region52
      $region51: #{_forward_nchw.15} parent=47 // pred_region
        %s977 = smul.u32 32, %s20
        %p978 = scmp.lt.s32.totalorder %s977, 63
        %s979 = scalar_select %p978, %s977, 63
        %s980 = smul.addr %s979, 8
        %s981 = scalar_lea.vmem %s3, %s980
      $region52: #{_forward_nchw.15} parent=47 // pred_fallthru
        _
    $region48: #{_forward_nchw.15} parent=5 // pred_fallthru
      _
  $region6: #{_forward_nchw.15} parent=0 // loop_footer
    %s13 = sadd.s32 1, %s9
  $region7: #{_forward_nchw.15} parent=0 // loop_footer_branch
    %8 = sbr.rel target = $region3
  $region8: #{_forward_nchw.15} parent=0 // loop_exit
    _

</llo_original>
